<compile_context>
chip_gen: v7x
topology: tpu7x:2x2x1
jax: 0.10.0
libtpu: 0.0.40
codegen_flags: <defaults>
</compile_context>

<pallas_src>
import functools
import numpy as np

import jax
import jax.numpy as jnp
from jax.experimental import pallas as pl
from jax.experimental.pallas import tpu as pltpu

HIDDEN_DIM = 3072            # matches the reference module constant
LN_EPS = 1e-5

# MXU operand dtype.  bf16 operands, f32 accumulation (preferred_element_type).
MATMUL_DTYPE = jnp.bfloat16


def _mm(a, b):
    """Lane-dense MXU matmul a @ b, bf16 operands, f32 accumulation."""
    return jnp.dot(a.astype(MATMUL_DTYPE), b.astype(MATMUL_DTYPE),
                   preferred_element_type=jnp.float32)


def _layernorm(x, g, b):
    mu = jnp.mean(x, axis=-1, keepdims=True)
    var = jnp.mean(jnp.square(x - mu), axis=-1, keepdims=True)
    return (x - mu) * jax.lax.rsqrt(var + LN_EPS) * g + b


def _gelu_exact(x):
    return 0.5 * x * (1.0 + jax.lax.erf(x * 0.7071067811865476))


def _layer_kernel(src_ref, gfe_ref,
                  n1g_ref, n1b_ref, wg_ref, bg_ref,
                  wqk_ref, bqk_ref, wv_ref, bv_ref,
                  wo_ref, bo_ref, ls1_ref,
                  n2g_ref, n2b_ref, w1_ref, b1_ref, w2_ref, b2_ref, ls2_ref,
                  o_ref, *, num_heads, head_dim, ffn_chunk):
    BT, S, E = src_ref.shape
    G = gfe_ref.shape[2]
    HID = w1_ref.shape[1]
    M = BT * S                                      # rows fed to every matmul

    x = src_ref[...].reshape(M, E)                  # (M, E) f32 residual path
    g = gfe_ref[...].reshape(M, G)

    # ---- attention branch (pre-norm, graph-conditioned query/key) ----------
    src2 = _layernorm(x, n1g_ref[...], n1b_ref[...])          # f32
    gemb = _mm(g, wg_ref[...]) + bg_ref[...]
    qk_in = src2 + gemb                                        # q == k input
    qk = _mm(qk_in, wqk_ref[...]) + bqk_ref[...]               # (M, 2E), fused Q,K
    vv = _mm(src2, wv_ref[...]) + bv_ref[...]                  # (M, E)

    # scale hoisted out of the head loop (single vmul; == folding into wqk)
    scale = 1.0 / float(np.sqrt(head_dim))
    q3 = (qk[:, :E] * scale).reshape(BT, S, E).astype(MATMUL_DTYPE)
    k3 = qk[:, E:].reshape(BT, S, E).astype(MATMUL_DTYPE)
    v3 = vv.reshape(BT, S, E).astype(MATMUL_DTYPE)

    # per-head (S,S) attention, batched over the batch tile; softmax in f32
    ctx_heads = []
    for h in range(num_heads):
        sl = slice(h * head_dim, (h + 1) * head_dim)
        s = jnp.einsum("bqd,bkd->bqk", q3[..., sl], k3[..., sl],
                       preferred_element_type=jnp.float32)
        s = s - jnp.max(s, axis=-1, keepdims=True)
        p = jnp.exp(s)
        p = p / jnp.sum(p, axis=-1, keepdims=True)             # exact softmax
        ctx_heads.append(jnp.einsum("bqk,bkd->bqd", p.astype(MATMUL_DTYPE),
                                    v3[..., sl],
                                    preferred_element_type=jnp.float32))
    ctx = jnp.concatenate(ctx_heads, axis=-1).reshape(M, E)    # (M, E)
    attn = _mm(ctx, wo_ref[...]) + bo_ref[...]                 # ONE K=E out-proj

    x = x + ls1_ref[...] * attn                     # drop_path: identity (eval)

    # ---- feed-forward branch (hidden dim processed in chunks) --------------
    y = _layernorm(x, n2g_ref[...], n2b_ref[...])
    yb = y.astype(MATMUL_DTYPE)
    h2 = jnp.zeros((M, E), jnp.float32)
    for lo in range(0, HID, ffn_chunk):
        hi = min(lo + ffn_chunk, HID)
        h1c = _mm(yb, w1_ref[:, lo:hi]) + b1_ref[:, lo:hi]
        h1c = _gelu_exact(h1c)                      # dropout: identity (eval)
        h2 = h2 + _mm(h1c, w2_ref[lo:hi, :])
    h2 = h2 + b2_ref[...]

    o_ref[...] = (x + ls2_ref[...] * h2).reshape(BT, S, E)


def graph_conditioned_layer(src, graph_features, params, *, num_heads,
                            batch_tile=None, ffn_chunk=512):
    """Batch-major interface (no wrapper transposes).

    src:            (B, S, E) float32
    graph_features: (B, S, G) float32
    returns         (B, S, E) float32
    """
    B, S, E = src.shape
    G = graph_features.shape[-1]
    HID = params["w1"].shape[1]

    if batch_tile is None:
        # keep a 2-wide "parallel" grid (both v7x TensorCores) while still
        # batching batch_tile*S rows per matmul as B grows.
        batch_tile = B // 2 if (B >= 2 and B % 2 == 0) else 1
    assert B % batch_tile == 0
    grid = (B // batch_tile,)

    def wspec(shape):
        # constant index_map -> single-buffered (no useless double buffering)
        return pl.BlockSpec(shape, lambda b: (0, 0),
                            pipeline_mode=pl.Buffered(1))

    out = pl.pallas_call(
        functools.partial(_layer_kernel, num_heads=num_heads,
                          head_dim=E // num_heads, ffn_chunk=ffn_chunk),
        out_shape=jax.ShapeDtypeStruct((B, S, E), jnp.float32),
        grid=grid,
        in_specs=[
            pl.BlockSpec((batch_tile, S, E), lambda b: (b, 0, 0)),   # src
            pl.BlockSpec((batch_tile, S, G), lambda b: (b, 0, 0)),   # graph feats
            wspec((1, E)), wspec((1, E)),            # norm1 gamma / beta
            wspec((G, E)), wspec((1, E)),            # graph_proj W / b
            wspec((E, 2 * E)), wspec((1, 2 * E)),    # fused Q,K proj W / b
            wspec((E, E)), wspec((1, E)),            # V proj W / b
            wspec((E, E)), wspec((1, E)),            # out proj W / b
            wspec((1, E)),                           # layer_scale_1
            wspec((1, E)), wspec((1, E)),            # norm2 gamma / beta
            wspec((E, HID)), wspec((1, HID)),        # linear1 W / b
            wspec((HID, E)), wspec((1, E)),          # linear2 W / b
            wspec((1, E)),                           # layer_scale_2
        ],
        out_specs=pl.BlockSpec((batch_tile, S, E), lambda b: (b, 0, 0)),
        compiler_params=pltpu.CompilerParams(
            dimension_semantics=("parallel",),       # batch tiles across TCs (v7x)
        ),
    )(src, graph_features,
      params["n1_g"], params["n1_b"], params["wg"], params["bg"],
      params["wqk"], params["bqk"], params["wv"], params["bv"],
      params["wo"], params["bo"], params["ls1"],
      params["n2_g"], params["n2_b"], params["w1"], params["b1"],
      params["w2"], params["b2"], params["ls2"])
    return out


# ------------------------------ parameter init ------------------------------

def init_params(key, embed_dim, num_heads, graph_dim, hidden_dim):
    E, G, HID = embed_dim, graph_dim, hidden_dim
    ks = iter(jax.random.split(key, 8))

    def xavier(fan_in, fan_out, shape):
        lim = float(np.sqrt(6.0 / (fan_in + fan_out)))
        return jax.random.uniform(next(ks), shape, jnp.float32, -lim, lim)

    bf16 = jnp.bfloat16
    # weights stored pre-transposed (K, N) and in bf16 (kernel is weight-DMA bound)
    in_proj = xavier(E, 3 * E, (E, 3 * E))           # torch in_proj_weight.T
    return dict(
        n1_g=jnp.ones((1, E), jnp.float32), n1_b=jnp.zeros((1, E), jnp.float32),
        wg=xavier(G, E, (G, E)).astype(bf16), bg=jnp.zeros((1, E), jnp.float32),
        wqk=in_proj[:, :2 * E].astype(bf16), bqk=jnp.zeros((1, 2 * E), jnp.float32),
        wv=in_proj[:, 2 * E:].astype(bf16), bv=jnp.zeros((1, E), jnp.float32),
        wo=xavier(E, E, (E, E)).astype(bf16), bo=jnp.zeros((1, E), jnp.float32),
        ls1=0.1 * jnp.ones((1, E), jnp.float32),
        n2_g=jnp.ones((1, E), jnp.float32), n2_b=jnp.zeros((1, E), jnp.float32),
        w1=xavier(E, HID, (E, HID)).astype(bf16), b1=jnp.zeros((1, HID), jnp.float32),
        w2=xavier(HID, E, (HID, E)).astype(bf16), b2=jnp.zeros((1, E), jnp.float32),
        ls2=0.1 * jnp.ones((1, E), jnp.float32),
    )


# --------------------- pure-JAX reference (correctness) ---------------------

def reference_forward(src, graph_features, p, num_heads):
    """Batch-major f32 reference of the PyTorch layer (eval mode)."""
    B, S, E = src.shape
    Dh = E // num_heads
    f32 = lambda t: t.astype(jnp.float32)

    def ln(t, g, b):
        mu = jnp.mean(t, -1, keepdims=True)
        var = jnp.mean(jnp.square(t - mu), -1, keepdims=True)
        return (t - mu) * jax.lax.rsqrt(var + LN_EPS) * g + b

    x = src
    src2 = ln(x, p["n1_g"][0], p["n1_b"][0])
    gemb = graph_features @ f32(p["wg"]) + p["bg"][0]
    qk_in = src2 + gemb
    qk = qk_in @ f32(p["wqk"]) + p["bqk"][0]
    vv = src2 @ f32(p["wv"]) + p["bv"][0]
    q, k = qk[..., :E], qk[..., E:]

    def heads(t):
        return t.reshape(B, S, num_heads, Dh).transpose(0, 2, 1, 3)

    qh, kh, vh = heads(q), heads(k), heads(vv)
    scores = jnp.einsum("bhqd,bhkd->bhqk", qh, kh) / np.sqrt(Dh)
    probs = jax.nn.softmax(scores, axis=-1)
    ctx = jnp.einsum("bhqk,bhkd->bhqd", probs, vh)
    ctx = ctx.transpose(0, 2, 1, 3).reshape(B, S, E)
    attn = ctx @ f32(p["wo"]) + p["bo"][0]
    x = x + p["ls1"][0] * attn
    y = ln(x, p["n2_g"][0], p["n2_b"][0])
    h1 = y @ f32(p["w1"]) + p["b1"][0]
    h1 = 0.5 * h1 * (1.0 + jax.lax.erf(h1 * 0.7071067811865476))
    h2 = h1 @ f32(p["w2"]) + p["b2"][0]
    return x + p["ls2"][0] * h2


# ----------------------------------- main -----------------------------------

if __name__ == "__main__":
    S, B, E, H, G = 16, 2, 64, 4, 32                 # seq, batch, embed, heads, graph_dim

    key = jax.random.PRNGKey(0)
    k_param, k_src, k_gfe = jax.random.split(key, 3)
    params = init_params(k_param, E, H, G, HIDDEN_DIM)
    # batch-major inputs (no wrapper transposes on the hot path)
    src = jax.random.normal(k_src, (B, S, E), dtype=jnp.float32)
    gfe = jax.random.normal(k_gfe, (B, S, G), dtype=jnp.float32)

    fwd = jax.jit(functools.partial(graph_conditioned_layer, num_heads=H))
    out = fwd(src, gfe, params)
    jax.block_until_ready(out)

    assert out.shape == (B, S, E)
    assert bool(jnp.all(jnp.isfinite(out)))
    ref = reference_forward(src, gfe, params, H)
    err = float(jnp.max(jnp.abs(out - ref)))
    assert err < 3e-2, err                           # bf16-operand matmul tolerance
    print("KERNEL_OK")
</pallas_src>

<mosaic_0001>
module attributes {stable_mosaic.version = 11 : i64} {
  func.func @_layer_kernel(%arg0: i32, %arg1: memref<1x16x64xf32, #tpu.memory_space<vmem>>, %arg2: memref<1x16x32xf32, #tpu.memory_space<vmem>>, %arg3: memref<1x64xf32, #tpu.memory_space<vmem>>, %arg4: memref<1x64xf32, #tpu.memory_space<vmem>>, %arg5: memref<32x64xbf16, #tpu.memory_space<vmem>>, %arg6: memref<1x64xf32, #tpu.memory_space<vmem>>, %arg7: memref<64x128xbf16, #tpu.memory_space<vmem>>, %arg8: memref<1x128xf32, #tpu.memory_space<vmem>>, %arg9: memref<64x64xbf16, #tpu.memory_space<vmem>>, %arg10: memref<1x64xf32, #tpu.memory_space<vmem>>, %arg11: memref<64x64xbf16, #tpu.memory_space<vmem>>, %arg12: memref<1x64xf32, #tpu.memory_space<vmem>>, %arg13: memref<1x64xf32, #tpu.memory_space<vmem>>, %arg14: memref<1x64xf32, #tpu.memory_space<vmem>>, %arg15: memref<1x64xf32, #tpu.memory_space<vmem>>, %arg16: memref<64x3072xbf16, #tpu.memory_space<vmem>>, %arg17: memref<1x3072xf32, #tpu.memory_space<vmem>>, %arg18: memref<3072x64xbf16, #tpu.memory_space<vmem>>, %arg19: memref<1x64xf32, #tpu.memory_space<vmem>>, %arg20: memref<1x64xf32, #tpu.memory_space<vmem>>, %arg21: memref<1x16x64xf32, #tpu.memory_space<vmem>>) attributes {dimension_semantics = [#tpu.dimension_semantics<parallel>], iteration_bounds = array<i64: 2>, scalar_prefetch = 0 : i64, scratch_operands = 0 : i64, tpu.core_type = #tpu.core_type<tc>, window_params = [{transform_indices = @transform_0, window_bounds = array<i64: 1, 16, 64>}, {transform_indices = @transform_1, window_bounds = array<i64: 1, 16, 32>}, {pipeline_mode = #tpu.pipeline_mode<synchronous>, transform_indices = @transform_2, window_bounds = array<i64: 1, 64>}, {pipeline_mode = #tpu.pipeline_mode<synchronous>, transform_indices = @transform_3, window_bounds = array<i64: 1, 64>}, {pipeline_mode = #tpu.pipeline_mode<synchronous>, transform_indices = @transform_4, window_bounds = array<i64: 32, 64>}, {pipeline_mode = #tpu.pipeline_mode<synchronous>, transform_indices = @transform_5, window_bounds = array<i64: 1, 64>}, {pipeline_mode = #tpu.pipeline_mode<synchronous>, transform_indices = @transform_6, window_bounds = array<i64: 64, 128>}, {pipeline_mode = #tpu.pipeline_mode<synchronous>, transform_indices = @transform_7, window_bounds = array<i64: 1, 128>}, {pipeline_mode = #tpu.pipeline_mode<synchronous>, transform_indices = @transform_8, window_bounds = array<i64: 64, 64>}, {pipeline_mode = #tpu.pipeline_mode<synchronous>, transform_indices = @transform_9, window_bounds = array<i64: 1, 64>}, {pipeline_mode = #tpu.pipeline_mode<synchronous>, transform_indices = @transform_10, window_bounds = array<i64: 64, 64>}, {pipeline_mode = #tpu.pipeline_mode<synchronous>, transform_indices = @transform_11, window_bounds = array<i64: 1, 64>}, {pipeline_mode = #tpu.pipeline_mode<synchronous>, transform_indices = @transform_12, window_bounds = array<i64: 1, 64>}, {pipeline_mode = #tpu.pipeline_mode<synchronous>, transform_indices = @transform_13, window_bounds = array<i64: 1, 64>}, {pipeline_mode = #tpu.pipeline_mode<synchronous>, transform_indices = @transform_14, window_bounds = array<i64: 1, 64>}, {pipeline_mode = #tpu.pipeline_mode<synchronous>, transform_indices = @transform_15, window_bounds = array<i64: 64, 3072>}, {pipeline_mode = #tpu.pipeline_mode<synchronous>, transform_indices = @transform_16, window_bounds = array<i64: 1, 3072>}, {pipeline_mode = #tpu.pipeline_mode<synchronous>, transform_indices = @transform_17, window_bounds = array<i64: 3072, 64>}, {pipeline_mode = #tpu.pipeline_mode<synchronous>, transform_indices = @transform_18, window_bounds = array<i64: 1, 64>}, {pipeline_mode = #tpu.pipeline_mode<synchronous>, transform_indices = @transform_19, window_bounds = array<i64: 1, 64>}, {transform_indices = @transform_20, window_bounds = array<i64: 1, 16, 64>}]} {
    %c0 = arith.constant 0 : index
    %c0_0 = arith.constant 0 : index
    %c0_1 = arith.constant 0 : index
    %0 = vector.load %arg1[%c0, %c0_0, %c0_1] : memref<1x16x64xf32, #tpu.memory_space<vmem>>, vector<1x16x64xf32>
    %1 = vector.shape_cast %0 : vector<1x16x64xf32> to vector<16x64xf32>
    %c0_2 = arith.constant 0 : index
    %c0_3 = arith.constant 0 : index
    %c0_4 = arith.constant 0 : index
    %2 = vector.load %arg2[%c0_2, %c0_3, %c0_4] : memref<1x16x32xf32, #tpu.memory_space<vmem>>, vector<1x16x32xf32>
    %3 = vector.shape_cast %2 : vector<1x16x32xf32> to vector<16x32xf32>
    %c0_5 = arith.constant 0 : index
    %c0_6 = arith.constant 0 : index
    %4 = vector.load %arg3[%c0_5, %c0_6] : memref<1x64xf32, #tpu.memory_space<vmem>>, vector<1x64xf32>
    %c0_7 = arith.constant 0 : index
    %c0_8 = arith.constant 0 : index
    %5 = vector.load %arg4[%c0_7, %c0_8] : memref<1x64xf32, #tpu.memory_space<vmem>>, vector<1x64xf32>
    %cst = arith.constant dense<0.000000e+00> : vector<16xf32>
    %6 = vector.multi_reduction <add>, %1, %cst [1] : vector<16x64xf32> to vector<16xf32>
    %7 = vector.shape_cast %6 : vector<16xf32> to vector<16x1xf32>
    %cst_9 = arith.constant 6.400000e+01 : f32
    %8 = vector.broadcast %cst_9 : f32 to vector<16x1xf32>
    %9 = arith.divf %7, %8 : vector<16x1xf32>
    %10 = vector.broadcast %9 : vector<16x1xf32> to vector<16x64xf32>
    %11 = arith.subf %1, %10 : vector<16x64xf32>
    %12 = arith.mulf %11, %11 : vector<16x64xf32>
    %cst_10 = arith.constant dense<0.000000e+00> : vector<16xf32>
    %13 = vector.multi_reduction <add>, %12, %cst_10 [1] : vector<16x64xf32> to vector<16xf32>
    %14 = vector.shape_cast %13 : vector<16xf32> to vector<16x1xf32>
    %cst_11 = arith.constant 6.400000e+01 : f32
    %15 = vector.broadcast %cst_11 : f32 to vector<16x1xf32>
    %16 = arith.divf %14, %15 : vector<16x1xf32>
    %17 = vector.broadcast %9 : vector<16x1xf32> to vector<16x64xf32>
    %18 = arith.subf %1, %17 : vector<16x64xf32>
    %cst_12 = arith.constant 9.99999974E-6 : f32
    %19 = vector.broadcast %cst_12 : f32 to vector<16x1xf32>
    %20 = arith.addf %16, %19 : vector<16x1xf32>
    %21 = math.rsqrt %20 : vector<16x1xf32>
    %22 = vector.broadcast %21 : vector<16x1xf32> to vector<16x64xf32>
    %23 = arith.mulf %18, %22 : vector<16x64xf32>
    %24 = vector.broadcast %4 : vector<1x64xf32> to vector<16x64xf32>
    %25 = arith.mulf %23, %24 : vector<16x64xf32>
    %26 = vector.broadcast %5 : vector<1x64xf32> to vector<16x64xf32>
    %27 = arith.addf %25, %26 : vector<16x64xf32>
    %c0_13 = arith.constant 0 : index
    %c0_14 = arith.constant 0 : index
    %28 = vector.load %arg5[%c0_13, %c0_14] : memref<32x64xbf16, #tpu.memory_space<vmem>>, vector<32x64xbf16>
    %29 = arith.truncf %3 : vector<16x32xf32> to vector<16x32xbf16>
    %cst_15 = arith.constant dense<0.000000e+00> : vector<16x64xf32>
    %30 = tpu.matmul %29, %28, %cst_15 {dimension_numbers = #tpu.dot_dimension_numbers<[1], [0], [0], [1], [0, 0, 1, 1], [], []>} : vector<16x32xbf16>, vector<32x64xbf16>, vector<16x64xf32> -> vector<16x64xf32>
    %c0_16 = arith.constant 0 : index
    %c0_17 = arith.constant 0 : index
    %31 = vector.load %arg6[%c0_16, %c0_17] : memref<1x64xf32, #tpu.memory_space<vmem>>, vector<1x64xf32>
    %32 = vector.broadcast %31 : vector<1x64xf32> to vector<16x64xf32>
    %33 = arith.addf %30, %32 : vector<16x64xf32>
    %34 = arith.addf %27, %33 : vector<16x64xf32>
    %c0_18 = arith.constant 0 : index
    %c0_19 = arith.constant 0 : index
    %35 = vector.load %arg7[%c0_18, %c0_19] : memref<64x128xbf16, #tpu.memory_space<vmem>>, vector<64x128xbf16>
    %36 = arith.truncf %34 : vector<16x64xf32> to vector<16x64xbf16>
    %cst_20 = arith.constant dense<0.000000e+00> : vector<16x128xf32>
    %37 = tpu.matmul %36, %35, %cst_20 {dimension_numbers = #tpu.dot_dimension_numbers<[1], [0], [0], [1], [0, 0, 1, 1], [], []>} : vector<16x64xbf16>, vector<64x128xbf16>, vector<16x128xf32> -> vector<16x128xf32>
    %c0_21 = arith.constant 0 : index
    %c0_22 = arith.constant 0 : index
    %38 = vector.load %arg8[%c0_21, %c0_22] : memref<1x128xf32, #tpu.memory_space<vmem>>, vector<1x128xf32>
    %39 = vector.broadcast %38 : vector<1x128xf32> to vector<16x128xf32>
    %40 = arith.addf %37, %39 : vector<16x128xf32>
    %c0_23 = arith.constant 0 : index
    %c0_24 = arith.constant 0 : index
    %41 = vector.load %arg9[%c0_23, %c0_24] : memref<64x64xbf16, #tpu.memory_space<vmem>>, vector<64x64xbf16>
    %42 = arith.truncf %27 : vector<16x64xf32> to vector<16x64xbf16>
    %cst_25 = arith.constant dense<0.000000e+00> : vector<16x64xf32>
    %43 = tpu.matmul %42, %41, %cst_25 {dimension_numbers = #tpu.dot_dimension_numbers<[1], [0], [0], [1], [0, 0, 1, 1], [], []>} : vector<16x64xbf16>, vector<64x64xbf16>, vector<16x64xf32> -> vector<16x64xf32>
    %c0_26 = arith.constant 0 : index
    %c0_27 = arith.constant 0 : index
    %44 = vector.load %arg10[%c0_26, %c0_27] : memref<1x64xf32, #tpu.memory_space<vmem>>, vector<1x64xf32>
    %45 = vector.broadcast %44 : vector<1x64xf32> to vector<16x64xf32>
    %46 = arith.addf %43, %45 : vector<16x64xf32>
    %47 = vector.extract_strided_slice %40 {offsets = [0, 0], sizes = [16, 64], strides = [1, 1]} : vector<16x128xf32> to vector<16x64xf32>
    %cst_28 = arith.constant 2.500000e-01 : f32
    %48 = vector.broadcast %cst_28 : f32 to vector<16x64xf32>
    %49 = arith.mulf %47, %48 : vector<16x64xf32>
    %50 = vector.shape_cast %49 : vector<16x64xf32> to vector<1x16x64xf32>
    %51 = arith.truncf %50 : vector<1x16x64xf32> to vector<1x16x64xbf16>
    %52 = vector.extract_strided_slice %40 {offsets = [0, 64], sizes = [16, 64], strides = [1, 1]} : vector<16x128xf32> to vector<16x64xf32>
    %53 = vector.shape_cast %52 : vector<16x64xf32> to vector<1x16x64xf32>
    %54 = arith.truncf %53 : vector<1x16x64xf32> to vector<1x16x64xbf16>
    %55 = vector.shape_cast %46 : vector<16x64xf32> to vector<1x16x64xf32>
    %56 = arith.truncf %55 : vector<1x16x64xf32> to vector<1x16x64xbf16>
    %57 = vector.extract_strided_slice %51 {offsets = [0, 0, 0], sizes = [1, 16, 16], strides = [1, 1, 1]} : vector<1x16x64xbf16> to vector<1x16x16xbf16>
    %58 = vector.extract_strided_slice %54 {offsets = [0, 0, 0], sizes = [1, 16, 16], strides = [1, 1, 1]} : vector<1x16x64xbf16> to vector<1x16x16xbf16>
    "tpu.trace_start"() <{level = 10 : i32, message = "bqd,bkd->bqk"}> : () -> ()
    %cst_29 = arith.constant dense<0.000000e+00> : vector<1x16x16xf32>
    %59 = tpu.matmul %57, %58, %cst_29 {dimension_numbers = #tpu.dot_dimension_numbers<[2], [2], [1], [1], [0, 0, 0, 1, 1, 1], [0], [0]>} : vector<1x16x16xbf16>, vector<1x16x16xbf16>, vector<1x16x16xf32> -> vector<1x16x16xf32>
    "tpu.trace_stop"() : () -> ()
    %cst_30 = arith.constant dense<0xFF800000> : vector<1x16xf32>
    %60 = vector.multi_reduction <maximumf>, %59, %cst_30 [2] : vector<1x16x16xf32> to vector<1x16xf32>
    %61 = vector.shape_cast %60 : vector<1x16xf32> to vector<1x16x1xf32>
    %62 = vector.broadcast %61 : vector<1x16x1xf32> to vector<1x16x16xf32>
    %63 = arith.subf %59, %62 : vector<1x16x16xf32>
    %64 = math.exp %63 : vector<1x16x16xf32>
    %cst_31 = arith.constant dense<0.000000e+00> : vector<1x16xf32>
    %65 = vector.multi_reduction <add>, %64, %cst_31 [2] : vector<1x16x16xf32> to vector<1x16xf32>
    %66 = vector.shape_cast %65 : vector<1x16xf32> to vector<1x16x1xf32>
    %67 = vector.broadcast %66 : vector<1x16x1xf32> to vector<1x16x16xf32>
    %68 = arith.divf %64, %67 : vector<1x16x16xf32>
    %69 = arith.truncf %68 : vector<1x16x16xf32> to vector<1x16x16xbf16>
    %70 = vector.extract_strided_slice %56 {offsets = [0, 0, 0], sizes = [1, 16, 16], strides = [1, 1, 1]} : vector<1x16x64xbf16> to vector<1x16x16xbf16>
    "tpu.trace_start"() <{level = 10 : i32, message = "bqk,bkd->bqd"}> : () -> ()
    %cst_32 = arith.constant dense<0.000000e+00> : vector<1x16x16xf32>
    %71 = tpu.matmul %69, %70, %cst_32 {dimension_numbers = #tpu.dot_dimension_numbers<[2], [1], [1], [2], [0, 0, 0, 1, 1, 2], [0], [0]>} : vector<1x16x16xbf16>, vector<1x16x16xbf16>, vector<1x16x16xf32> -> vector<1x16x16xf32>
    "tpu.trace_stop"() : () -> ()
    %72 = vector.extract_strided_slice %51 {offsets = [0, 0, 16], sizes = [1, 16, 16], strides = [1, 1, 1]} : vector<1x16x64xbf16> to vector<1x16x16xbf16>
    %73 = vector.extract_strided_slice %54 {offsets = [0, 0, 16], sizes = [1, 16, 16], strides = [1, 1, 1]} : vector<1x16x64xbf16> to vector<1x16x16xbf16>
    "tpu.trace_start"() <{level = 10 : i32, message = "bqd,bkd->bqk"}> : () -> ()
    %cst_33 = arith.constant dense<0.000000e+00> : vector<1x16x16xf32>
    %74 = tpu.matmul %72, %73, %cst_33 {dimension_numbers = #tpu.dot_dimension_numbers<[2], [2], [1], [1], [0, 0, 0, 1, 1, 1], [0], [0]>} : vector<1x16x16xbf16>, vector<1x16x16xbf16>, vector<1x16x16xf32> -> vector<1x16x16xf32>
    "tpu.trace_stop"() : () -> ()
    %cst_34 = arith.constant dense<0xFF800000> : vector<1x16xf32>
    %75 = vector.multi_reduction <maximumf>, %74, %cst_34 [2] : vector<1x16x16xf32> to vector<1x16xf32>
    %76 = vector.shape_cast %75 : vector<1x16xf32> to vector<1x16x1xf32>
    %77 = vector.broadcast %76 : vector<1x16x1xf32> to vector<1x16x16xf32>
    %78 = arith.subf %74, %77 : vector<1x16x16xf32>
    %79 = math.exp %78 : vector<1x16x16xf32>
    %cst_35 = arith.constant dense<0.000000e+00> : vector<1x16xf32>
    %80 = vector.multi_reduction <add>, %79, %cst_35 [2] : vector<1x16x16xf32> to vector<1x16xf32>
    %81 = vector.shape_cast %80 : vector<1x16xf32> to vector<1x16x1xf32>
    %82 = vector.broadcast %81 : vector<1x16x1xf32> to vector<1x16x16xf32>
    %83 = arith.divf %79, %82 : vector<1x16x16xf32>
    %84 = arith.truncf %83 : vector<1x16x16xf32> to vector<1x16x16xbf16>
    %85 = vector.extract_strided_slice %56 {offsets = [0, 0, 16], sizes = [1, 16, 16], strides = [1, 1, 1]} : vector<1x16x64xbf16> to vector<1x16x16xbf16>
    "tpu.trace_start"() <{level = 10 : i32, message = "bqk,bkd->bqd"}> : () -> ()
    %cst_36 = arith.constant dense<0.000000e+00> : vector<1x16x16xf32>
    %86 = tpu.matmul %84, %85, %cst_36 {dimension_numbers = #tpu.dot_dimension_numbers<[2], [1], [1], [2], [0, 0, 0, 1, 1, 2], [0], [0]>} : vector<1x16x16xbf16>, vector<1x16x16xbf16>, vector<1x16x16xf32> -> vector<1x16x16xf32>
    "tpu.trace_stop"() : () -> ()
    %87 = vector.extract_strided_slice %51 {offsets = [0, 0, 32], sizes = [1, 16, 16], strides = [1, 1, 1]} : vector<1x16x64xbf16> to vector<1x16x16xbf16>
    %88 = vector.extract_strided_slice %54 {offsets = [0, 0, 32], sizes = [1, 16, 16], strides = [1, 1, 1]} : vector<1x16x64xbf16> to vector<1x16x16xbf16>
    "tpu.trace_start"() <{level = 10 : i32, message = "bqd,bkd->bqk"}> : () -> ()
    %cst_37 = arith.constant dense<0.000000e+00> : vector<1x16x16xf32>
    %89 = tpu.matmul %87, %88, %cst_37 {dimension_numbers = #tpu.dot_dimension_numbers<[2], [2], [1], [1], [0, 0, 0, 1, 1, 1], [0], [0]>} : vector<1x16x16xbf16>, vector<1x16x16xbf16>, vector<1x16x16xf32> -> vector<1x16x16xf32>
    "tpu.trace_stop"() : () -> ()
    %cst_38 = arith.constant dense<0xFF800000> : vector<1x16xf32>
    %90 = vector.multi_reduction <maximumf>, %89, %cst_38 [2] : vector<1x16x16xf32> to vector<1x16xf32>
    %91 = vector.shape_cast %90 : vector<1x16xf32> to vector<1x16x1xf32>
    %92 = vector.broadcast %91 : vector<1x16x1xf32> to vector<1x16x16xf32>
    %93 = arith.subf %89, %92 : vector<1x16x16xf32>
    %94 = math.exp %93 : vector<1x16x16xf32>
    %cst_39 = arith.constant dense<0.000000e+00> : vector<1x16xf32>
    %95 = vector.multi_reduction <add>, %94, %cst_39 [2] : vector<1x16x16xf32> to vector<1x16xf32>
    %96 = vector.shape_cast %95 : vector<1x16xf32> to vector<1x16x1xf32>
    %97 = vector.broadcast %96 : vector<1x16x1xf32> to vector<1x16x16xf32>
    %98 = arith.divf %94, %97 : vector<1x16x16xf32>
    %99 = arith.truncf %98 : vector<1x16x16xf32> to vector<1x16x16xbf16>
    %100 = vector.extract_strided_slice %56 {offsets = [0, 0, 32], sizes = [1, 16, 16], strides = [1, 1, 1]} : vector<1x16x64xbf16> to vector<1x16x16xbf16>
    "tpu.trace_start"() <{level = 10 : i32, message = "bqk,bkd->bqd"}> : () -> ()
    %cst_40 = arith.constant dense<0.000000e+00> : vector<1x16x16xf32>
    %101 = tpu.matmul %99, %100, %cst_40 {dimension_numbers = #tpu.dot_dimension_numbers<[2], [1], [1], [2], [0, 0, 0, 1, 1, 2], [0], [0]>} : vector<1x16x16xbf16>, vector<1x16x16xbf16>, vector<1x16x16xf32> -> vector<1x16x16xf32>
    "tpu.trace_stop"() : () -> ()
    %102 = vector.extract_strided_slice %51 {offsets = [0, 0, 48], sizes = [1, 16, 16], strides = [1, 1, 1]} : vector<1x16x64xbf16> to vector<1x16x16xbf16>
    %103 = vector.extract_strided_slice %54 {offsets = [0, 0, 48], sizes = [1, 16, 16], strides = [1, 1, 1]} : vector<1x16x64xbf16> to vector<1x16x16xbf16>
    "tpu.trace_start"() <{level = 10 : i32, message = "bqd,bkd->bqk"}> : () -> ()
    %cst_41 = arith.constant dense<0.000000e+00> : vector<1x16x16xf32>
    %104 = tpu.matmul %102, %103, %cst_41 {dimension_numbers = #tpu.dot_dimension_numbers<[2], [2], [1], [1], [0, 0, 0, 1, 1, 1], [0], [0]>} : vector<1x16x16xbf16>, vector<1x16x16xbf16>, vector<1x16x16xf32> -> vector<1x16x16xf32>
    "tpu.trace_stop"() : () -> ()
    %cst_42 = arith.constant dense<0xFF800000> : vector<1x16xf32>
    %105 = vector.multi_reduction <maximumf>, %104, %cst_42 [2] : vector<1x16x16xf32> to vector<1x16xf32>
    %106 = vector.shape_cast %105 : vector<1x16xf32> to vector<1x16x1xf32>
    %107 = vector.broadcast %106 : vector<1x16x1xf32> to vector<1x16x16xf32>
    %108 = arith.subf %104, %107 : vector<1x16x16xf32>
    %109 = math.exp %108 : vector<1x16x16xf32>
    %cst_43 = arith.constant dense<0.000000e+00> : vector<1x16xf32>
    %110 = vector.multi_reduction <add>, %109, %cst_43 [2] : vector<1x16x16xf32> to vector<1x16xf32>
    %111 = vector.shape_cast %110 : vector<1x16xf32> to vector<1x16x1xf32>
    %112 = vector.broadcast %111 : vector<1x16x1xf32> to vector<1x16x16xf32>
    %113 = arith.divf %109, %112 : vector<1x16x16xf32>
    %114 = arith.truncf %113 : vector<1x16x16xf32> to vector<1x16x16xbf16>
    %115 = vector.extract_strided_slice %56 {offsets = [0, 0, 48], sizes = [1, 16, 16], strides = [1, 1, 1]} : vector<1x16x64xbf16> to vector<1x16x16xbf16>
    "tpu.trace_start"() <{level = 10 : i32, message = "bqk,bkd->bqd"}> : () -> ()
    %cst_44 = arith.constant dense<0.000000e+00> : vector<1x16x16xf32>
    %116 = tpu.matmul %114, %115, %cst_44 {dimension_numbers = #tpu.dot_dimension_numbers<[2], [1], [1], [2], [0, 0, 0, 1, 1, 2], [0], [0]>} : vector<1x16x16xbf16>, vector<1x16x16xbf16>, vector<1x16x16xf32> -> vector<1x16x16xf32>
    "tpu.trace_stop"() : () -> ()
    %117 = tpu.concatenate %71, %86, %101, %116 in 2 : vector<1x16x16xf32>, vector<1x16x16xf32>, vector<1x16x16xf32>, vector<1x16x16xf32> -> vector<1x16x64xf32>
    %118 = vector.shape_cast %117 : vector<1x16x64xf32> to vector<16x64xf32>
    %c0_45 = arith.constant 0 : index
    %c0_46 = arith.constant 0 : index
    %119 = vector.load %arg11[%c0_45, %c0_46] : memref<64x64xbf16, #tpu.memory_space<vmem>>, vector<64x64xbf16>
    %120 = arith.truncf %118 : vector<16x64xf32> to vector<16x64xbf16>
    %cst_47 = arith.constant dense<0.000000e+00> : vector<16x64xf32>
    %121 = tpu.matmul %120, %119, %cst_47 {dimension_numbers = #tpu.dot_dimension_numbers<[1], [0], [0], [1], [0, 0, 1, 1], [], []>} : vector<16x64xbf16>, vector<64x64xbf16>, vector<16x64xf32> -> vector<16x64xf32>
    %c0_48 = arith.constant 0 : index
    %c0_49 = arith.constant 0 : index
    %122 = vector.load %arg12[%c0_48, %c0_49] : memref<1x64xf32, #tpu.memory_space<vmem>>, vector<1x64xf32>
    %123 = vector.broadcast %122 : vector<1x64xf32> to vector<16x64xf32>
    %124 = arith.addf %121, %123 : vector<16x64xf32>
    %c0_50 = arith.constant 0 : index
    %c0_51 = arith.constant 0 : index
    %125 = vector.load %arg13[%c0_50, %c0_51] : memref<1x64xf32, #tpu.memory_space<vmem>>, vector<1x64xf32>
    %126 = vector.broadcast %125 : vector<1x64xf32> to vector<16x64xf32>
    %127 = arith.mulf %126, %124 : vector<16x64xf32>
    %128 = arith.addf %1, %127 : vector<16x64xf32>
    %c0_52 = arith.constant 0 : index
    %c0_53 = arith.constant 0 : index
    %129 = vector.load %arg14[%c0_52, %c0_53] : memref<1x64xf32, #tpu.memory_space<vmem>>, vector<1x64xf32>
    %c0_54 = arith.constant 0 : index
    %c0_55 = arith.constant 0 : index
    %130 = vector.load %arg15[%c0_54, %c0_55] : memref<1x64xf32, #tpu.memory_space<vmem>>, vector<1x64xf32>
    %cst_56 = arith.constant dense<0.000000e+00> : vector<16xf32>
    %131 = vector.multi_reduction <add>, %128, %cst_56 [1] : vector<16x64xf32> to vector<16xf32>
    %132 = vector.shape_cast %131 : vector<16xf32> to vector<16x1xf32>
    %cst_57 = arith.constant 6.400000e+01 : f32
    %133 = vector.broadcast %cst_57 : f32 to vector<16x1xf32>
    %134 = arith.divf %132, %133 : vector<16x1xf32>
    %135 = vector.broadcast %134 : vector<16x1xf32> to vector<16x64xf32>
    %136 = arith.subf %128, %135 : vector<16x64xf32>
    %137 = arith.mulf %136, %136 : vector<16x64xf32>
    %cst_58 = arith.constant dense<0.000000e+00> : vector<16xf32>
    %138 = vector.multi_reduction <add>, %137, %cst_58 [1] : vector<16x64xf32> to vector<16xf32>
    %139 = vector.shape_cast %138 : vector<16xf32> to vector<16x1xf32>
    %cst_59 = arith.constant 6.400000e+01 : f32
    %140 = vector.broadcast %cst_59 : f32 to vector<16x1xf32>
    %141 = arith.divf %139, %140 : vector<16x1xf32>
    %142 = vector.broadcast %134 : vector<16x1xf32> to vector<16x64xf32>
    %143 = arith.subf %128, %142 : vector<16x64xf32>
    %cst_60 = arith.constant 9.99999974E-6 : f32
    %144 = vector.broadcast %cst_60 : f32 to vector<16x1xf32>
    %145 = arith.addf %141, %144 : vector<16x1xf32>
    %146 = math.rsqrt %145 : vector<16x1xf32>
    %147 = vector.broadcast %146 : vector<16x1xf32> to vector<16x64xf32>
    %148 = arith.mulf %143, %147 : vector<16x64xf32>
    %149 = vector.broadcast %129 : vector<1x64xf32> to vector<16x64xf32>
    %150 = arith.mulf %148, %149 : vector<16x64xf32>
    %151 = vector.broadcast %130 : vector<1x64xf32> to vector<16x64xf32>
    %152 = arith.addf %150, %151 : vector<16x64xf32>
    %153 = arith.truncf %152 : vector<16x64xf32> to vector<16x64xbf16>
    %cst_61 = arith.constant 0.000000e+00 : f32
    %154 = vector.broadcast %cst_61 : f32 to vector<16x64xf32>
    %c0_62 = arith.constant 0 : index
    %c0_63 = arith.constant 0 : index
    %155 = vector.load %arg16[%c0_62, %c0_63] : memref<64x3072xbf16, #tpu.memory_space<vmem>>, vector<64x512xbf16>
    %cst_64 = arith.constant dense<0.000000e+00> : vector<16x512xf32>
    %156 = tpu.matmul %153, %155, %cst_64 {dimension_numbers = #tpu.dot_dimension_numbers<[1], [0], [0], [1], [0, 0, 1, 1], [], []>} : vector<16x64xbf16>, vector<64x512xbf16>, vector<16x512xf32> -> vector<16x512xf32>
    %c0_65 = arith.constant 0 : index
    %c0_66 = arith.constant 0 : index
    %157 = vector.load %arg17[%c0_65, %c0_66] : memref<1x3072xf32, #tpu.memory_space<vmem>>, vector<1x512xf32>
    %158 = vector.broadcast %157 : vector<1x512xf32> to vector<16x512xf32>
    %159 = arith.addf %156, %158 : vector<16x512xf32>
    %cst_67 = arith.constant 5.000000e-01 : f32
    %160 = vector.broadcast %cst_67 : f32 to vector<16x512xf32>
    %161 = arith.mulf %160, %159 : vector<16x512xf32>
    %cst_68 = arith.constant 0.707106769 : f32
    %162 = vector.broadcast %cst_68 : f32 to vector<16x512xf32>
    %163 = arith.mulf %159, %162 : vector<16x512xf32>
    %164 = math.erf %163 : vector<16x512xf32>
    %cst_69 = arith.constant 1.000000e+00 : f32
    %165 = vector.broadcast %cst_69 : f32 to vector<16x512xf32>
    %166 = arith.addf %165, %164 : vector<16x512xf32>
    %167 = arith.mulf %161, %166 : vector<16x512xf32>
    %c0_70 = arith.constant 0 : index
    %c0_71 = arith.constant 0 : index
    %168 = vector.load %arg18[%c0_70, %c0_71] : memref<3072x64xbf16, #tpu.memory_space<vmem>>, vector<512x64xbf16>
    %169 = arith.truncf %167 : vector<16x512xf32> to vector<16x512xbf16>
    %cst_72 = arith.constant dense<0.000000e+00> : vector<16x64xf32>
    %170 = tpu.matmul %169, %168, %cst_72 {dimension_numbers = #tpu.dot_dimension_numbers<[1], [0], [0], [1], [0, 0, 1, 1], [], []>} : vector<16x512xbf16>, vector<512x64xbf16>, vector<16x64xf32> -> vector<16x64xf32>
    %171 = arith.addf %154, %170 : vector<16x64xf32>
    %c0_73 = arith.constant 0 : index
    %c512 = arith.constant 512 : index
    %172 = vector.load %arg16[%c0_73, %c512] : memref<64x3072xbf16, #tpu.memory_space<vmem>>, vector<64x512xbf16>
    %cst_74 = arith.constant dense<0.000000e+00> : vector<16x512xf32>
    %173 = tpu.matmul %153, %172, %cst_74 {dimension_numbers = #tpu.dot_dimension_numbers<[1], [0], [0], [1], [0, 0, 1, 1], [], []>} : vector<16x64xbf16>, vector<64x512xbf16>, vector<16x512xf32> -> vector<16x512xf32>
    %c0_75 = arith.constant 0 : index
    %c512_76 = arith.constant 512 : index
    %174 = vector.load %arg17[%c0_75, %c512_76] : memref<1x3072xf32, #tpu.memory_space<vmem>>, vector<1x512xf32>
    %175 = vector.broadcast %174 : vector<1x512xf32> to vector<16x512xf32>
    %176 = arith.addf %173, %175 : vector<16x512xf32>
    %cst_77 = arith.constant 5.000000e-01 : f32
    %177 = vector.broadcast %cst_77 : f32 to vector<16x512xf32>
    %178 = arith.mulf %177, %176 : vector<16x512xf32>
    %cst_78 = arith.constant 0.707106769 : f32
    %179 = vector.broadcast %cst_78 : f32 to vector<16x512xf32>
    %180 = arith.mulf %176, %179 : vector<16x512xf32>
    %181 = math.erf %180 : vector<16x512xf32>
    %cst_79 = arith.constant 1.000000e+00 : f32
    %182 = vector.broadcast %cst_79 : f32 to vector<16x512xf32>
    %183 = arith.addf %182, %181 : vector<16x512xf32>
    %184 = arith.mulf %178, %183 : vector<16x512xf32>
    %c512_80 = arith.constant 512 : index
    %c0_81 = arith.constant 0 : index
    %185 = vector.load %arg18[%c512_80, %c0_81] : memref<3072x64xbf16, #tpu.memory_space<vmem>>, vector<512x64xbf16>
    %186 = arith.truncf %184 : vector<16x512xf32> to vector<16x512xbf16>
    %cst_82 = arith.constant dense<0.000000e+00> : vector<16x64xf32>
    %187 = tpu.matmul %186, %185, %cst_82 {dimension_numbers = #tpu.dot_dimension_numbers<[1], [0], [0], [1], [0, 0, 1, 1], [], []>} : vector<16x512xbf16>, vector<512x64xbf16>, vector<16x64xf32> -> vector<16x64xf32>
    %188 = arith.addf %171, %187 : vector<16x64xf32>
    %c0_83 = arith.constant 0 : index
    %c1024 = arith.constant 1024 : index
    %189 = vector.load %arg16[%c0_83, %c1024] : memref<64x3072xbf16, #tpu.memory_space<vmem>>, vector<64x512xbf16>
    %cst_84 = arith.constant dense<0.000000e+00> : vector<16x512xf32>
    %190 = tpu.matmul %153, %189, %cst_84 {dimension_numbers = #tpu.dot_dimension_numbers<[1], [0], [0], [1], [0, 0, 1, 1], [], []>} : vector<16x64xbf16>, vector<64x512xbf16>, vector<16x512xf32> -> vector<16x512xf32>
    %c0_85 = arith.constant 0 : index
    %c1024_86 = arith.constant 1024 : index
    %191 = vector.load %arg17[%c0_85, %c1024_86] : memref<1x3072xf32, #tpu.memory_space<vmem>>, vector<1x512xf32>
    %192 = vector.broadcast %191 : vector<1x512xf32> to vector<16x512xf32>
    %193 = arith.addf %190, %192 : vector<16x512xf32>
    %cst_87 = arith.constant 5.000000e-01 : f32
    %194 = vector.broadcast %cst_87 : f32 to vector<16x512xf32>
    %195 = arith.mulf %194, %193 : vector<16x512xf32>
    %cst_88 = arith.constant 0.707106769 : f32
    %196 = vector.broadcast %cst_88 : f32 to vector<16x512xf32>
    %197 = arith.mulf %193, %196 : vector<16x512xf32>
    %198 = math.erf %197 : vector<16x512xf32>
    %cst_89 = arith.constant 1.000000e+00 : f32
    %199 = vector.broadcast %cst_89 : f32 to vector<16x512xf32>
    %200 = arith.addf %199, %198 : vector<16x512xf32>
    %201 = arith.mulf %195, %200 : vector<16x512xf32>
    %c1024_90 = arith.constant 1024 : index
    %c0_91 = arith.constant 0 : index
    %202 = vector.load %arg18[%c1024_90, %c0_91] : memref<3072x64xbf16, #tpu.memory_space<vmem>>, vector<512x64xbf16>
    %203 = arith.truncf %201 : vector<16x512xf32> to vector<16x512xbf16>
    %cst_92 = arith.constant dense<0.000000e+00> : vector<16x64xf32>
    %204 = tpu.matmul %203, %202, %cst_92 {dimension_numbers = #tpu.dot_dimension_numbers<[1], [0], [0], [1], [0, 0, 1, 1], [], []>} : vector<16x512xbf16>, vector<512x64xbf16>, vector<16x64xf32> -> vector<16x64xf32>
    %205 = arith.addf %188, %204 : vector<16x64xf32>
    %c0_93 = arith.constant 0 : index
    %c1536 = arith.constant 1536 : index
    %206 = vector.load %arg16[%c0_93, %c1536] : memref<64x3072xbf16, #tpu.memory_space<vmem>>, vector<64x512xbf16>
    %cst_94 = arith.constant dense<0.000000e+00> : vector<16x512xf32>
    %207 = tpu.matmul %153, %206, %cst_94 {dimension_numbers = #tpu.dot_dimension_numbers<[1], [0], [0], [1], [0, 0, 1, 1], [], []>} : vector<16x64xbf16>, vector<64x512xbf16>, vector<16x512xf32> -> vector<16x512xf32>
    %c0_95 = arith.constant 0 : index
    %c1536_96 = arith.constant 1536 : index
    %208 = vector.load %arg17[%c0_95, %c1536_96] : memref<1x3072xf32, #tpu.memory_space<vmem>>, vector<1x512xf32>
    %209 = vector.broadcast %208 : vector<1x512xf32> to vector<16x512xf32>
    %210 = arith.addf %207, %209 : vector<16x512xf32>
    %cst_97 = arith.constant 5.000000e-01 : f32
    %211 = vector.broadcast %cst_97 : f32 to vector<16x512xf32>
    %212 = arith.mulf %211, %210 : vector<16x512xf32>
    %cst_98 = arith.constant 0.707106769 : f32
    %213 = vector.broadcast %cst_98 : f32 to vector<16x512xf32>
    %214 = arith.mulf %210, %213 : vector<16x512xf32>
    %215 = math.erf %214 : vector<16x512xf32>
    %cst_99 = arith.constant 1.000000e+00 : f32
    %216 = vector.broadcast %cst_99 : f32 to vector<16x512xf32>
    %217 = arith.addf %216, %215 : vector<16x512xf32>
    %218 = arith.mulf %212, %217 : vector<16x512xf32>
    %c1536_100 = arith.constant 1536 : index
    %c0_101 = arith.constant 0 : index
    %219 = vector.load %arg18[%c1536_100, %c0_101] : memref<3072x64xbf16, #tpu.memory_space<vmem>>, vector<512x64xbf16>
    %220 = arith.truncf %218 : vector<16x512xf32> to vector<16x512xbf16>
    %cst_102 = arith.constant dense<0.000000e+00> : vector<16x64xf32>
    %221 = tpu.matmul %220, %219, %cst_102 {dimension_numbers = #tpu.dot_dimension_numbers<[1], [0], [0], [1], [0, 0, 1, 1], [], []>} : vector<16x512xbf16>, vector<512x64xbf16>, vector<16x64xf32> -> vector<16x64xf32>
    %222 = arith.addf %205, %221 : vector<16x64xf32>
    %c0_103 = arith.constant 0 : index
    %c2048 = arith.constant 2048 : index
    %223 = vector.load %arg16[%c0_103, %c2048] : memref<64x3072xbf16, #tpu.memory_space<vmem>>, vector<64x512xbf16>
    %cst_104 = arith.constant dense<0.000000e+00> : vector<16x512xf32>
    %224 = tpu.matmul %153, %223, %cst_104 {dimension_numbers = #tpu.dot_dimension_numbers<[1], [0], [0], [1], [0, 0, 1, 1], [], []>} : vector<16x64xbf16>, vector<64x512xbf16>, vector<16x512xf32> -> vector<16x512xf32>
    %c0_105 = arith.constant 0 : index
    %c2048_106 = arith.constant 2048 : index
    %225 = vector.load %arg17[%c0_105, %c2048_106] : memref<1x3072xf32, #tpu.memory_space<vmem>>, vector<1x512xf32>
    %226 = vector.broadcast %225 : vector<1x512xf32> to vector<16x512xf32>
    %227 = arith.addf %224, %226 : vector<16x512xf32>
    %cst_107 = arith.constant 5.000000e-01 : f32
    %228 = vector.broadcast %cst_107 : f32 to vector<16x512xf32>
    %229 = arith.mulf %228, %227 : vector<16x512xf32>
    %cst_108 = arith.constant 0.707106769 : f32
    %230 = vector.broadcast %cst_108 : f32 to vector<16x512xf32>
    %231 = arith.mulf %227, %230 : vector<16x512xf32>
    %232 = math.erf %231 : vector<16x512xf32>
    %cst_109 = arith.constant 1.000000e+00 : f32
    %233 = vector.broadcast %cst_109 : f32 to vector<16x512xf32>
    %234 = arith.addf %233, %232 : vector<16x512xf32>
    %235 = arith.mulf %229, %234 : vector<16x512xf32>
    %c2048_110 = arith.constant 2048 : index
    %c0_111 = arith.constant 0 : index
    %236 = vector.load %arg18[%c2048_110, %c0_111] : memref<3072x64xbf16, #tpu.memory_space<vmem>>, vector<512x64xbf16>
    %237 = arith.truncf %235 : vector<16x512xf32> to vector<16x512xbf16>
    %cst_112 = arith.constant dense<0.000000e+00> : vector<16x64xf32>
    %238 = tpu.matmul %237, %236, %cst_112 {dimension_numbers = #tpu.dot_dimension_numbers<[1], [0], [0], [1], [0, 0, 1, 1], [], []>} : vector<16x512xbf16>, vector<512x64xbf16>, vector<16x64xf32> -> vector<16x64xf32>
    %239 = arith.addf %222, %238 : vector<16x64xf32>
    %c0_113 = arith.constant 0 : index
    %c2560 = arith.constant 2560 : index
    %240 = vector.load %arg16[%c0_113, %c2560] : memref<64x3072xbf16, #tpu.memory_space<vmem>>, vector<64x512xbf16>
    %cst_114 = arith.constant dense<0.000000e+00> : vector<16x512xf32>
    %241 = tpu.matmul %153, %240, %cst_114 {dimension_numbers = #tpu.dot_dimension_numbers<[1], [0], [0], [1], [0, 0, 1, 1], [], []>} : vector<16x64xbf16>, vector<64x512xbf16>, vector<16x512xf32> -> vector<16x512xf32>
    %c0_115 = arith.constant 0 : index
    %c2560_116 = arith.constant 2560 : index
    %242 = vector.load %arg17[%c0_115, %c2560_116] : memref<1x3072xf32, #tpu.memory_space<vmem>>, vector<1x512xf32>
    %243 = vector.broadcast %242 : vector<1x512xf32> to vector<16x512xf32>
    %244 = arith.addf %241, %243 : vector<16x512xf32>
    %cst_117 = arith.constant 5.000000e-01 : f32
    %245 = vector.broadcast %cst_117 : f32 to vector<16x512xf32>
    %246 = arith.mulf %245, %244 : vector<16x512xf32>
    %cst_118 = arith.constant 0.707106769 : f32
    %247 = vector.broadcast %cst_118 : f32 to vector<16x512xf32>
    %248 = arith.mulf %244, %247 : vector<16x512xf32>
    %249 = math.erf %248 : vector<16x512xf32>
    %cst_119 = arith.constant 1.000000e+00 : f32
    %250 = vector.broadcast %cst_119 : f32 to vector<16x512xf32>
    %251 = arith.addf %250, %249 : vector<16x512xf32>
    %252 = arith.mulf %246, %251 : vector<16x512xf32>
    %c2560_120 = arith.constant 2560 : index
    %c0_121 = arith.constant 0 : index
    %253 = vector.load %arg18[%c2560_120, %c0_121] : memref<3072x64xbf16, #tpu.memory_space<vmem>>, vector<512x64xbf16>
    %254 = arith.truncf %252 : vector<16x512xf32> to vector<16x512xbf16>
    %cst_122 = arith.constant dense<0.000000e+00> : vector<16x64xf32>
    %255 = tpu.matmul %254, %253, %cst_122 {dimension_numbers = #tpu.dot_dimension_numbers<[1], [0], [0], [1], [0, 0, 1, 1], [], []>} : vector<16x512xbf16>, vector<512x64xbf16>, vector<16x64xf32> -> vector<16x64xf32>
    %256 = arith.addf %239, %255 : vector<16x64xf32>
    %c0_123 = arith.constant 0 : index
    %c0_124 = arith.constant 0 : index
    %257 = vector.load %arg19[%c0_123, %c0_124] : memref<1x64xf32, #tpu.memory_space<vmem>>, vector<1x64xf32>
    %258 = vector.broadcast %257 : vector<1x64xf32> to vector<16x64xf32>
    %259 = arith.addf %256, %258 : vector<16x64xf32>
    %c0_125 = arith.constant 0 : index
    %c0_126 = arith.constant 0 : index
    %260 = vector.load %arg20[%c0_125, %c0_126] : memref<1x64xf32, #tpu.memory_space<vmem>>, vector<1x64xf32>
    %261 = vector.broadcast %260 : vector<1x64xf32> to vector<16x64xf32>
    %262 = arith.mulf %261, %259 : vector<16x64xf32>
    %263 = arith.addf %128, %262 : vector<16x64xf32>
    %264 = vector.shape_cast %263 : vector<16x64xf32> to vector<1x16x64xf32>
    %c0_127 = arith.constant 0 : index
    %c0_128 = arith.constant 0 : index
    %c0_129 = arith.constant 0 : index
    %265 = vector.load %arg21[%c0_127, %c0_128, %c0_129] : memref<1x16x64xf32, #tpu.memory_space<vmem>>, vector<1x16x64xf32>
    tpu.vector_store %arg21[%c0_127, %c0_128, %c0_129], %264 {strides = array<i32>} : memref<1x16x64xf32, #tpu.memory_space<vmem>>, vector<1x16x64xf32>,
    return
  }
  func.func @transform_0(%arg0: i32) -> (i32, i32, i32) {
    %c0_i32 = arith.constant 0 : i32
    %c0_i32_0 = arith.constant 0 : i32
    %c0_i32_1 = arith.constant 0 : i32
    return %arg0, %c0_i32, %c0_i32_0 : i32, i32, i32
  }
  func.func @transform_1(%arg0: i32) -> (i32, i32, i32) {
    %c0_i32 = arith.constant 0 : i32
    %c0_i32_0 = arith.constant 0 : i32
    %c0_i32_1 = arith.constant 0 : i32
    return %arg0, %c0_i32, %c0_i32_0 : i32, i32, i32
  }
  func.func @transform_2(%arg0: i32) -> (i32, i32) {
    %c0_i32 = arith.constant 0 : i32
    %c0_i32_0 = arith.constant 0 : i32
    %c0_i32_1 = arith.constant 0 : i32
    return %c0_i32, %c0_i32_0 : i32, i32
  }
  func.func @transform_3(%arg0: i32) -> (i32, i32) {
    %c0_i32 = arith.constant 0 : i32
    %c0_i32_0 = arith.constant 0 : i32
    %c0_i32_1 = arith.constant 0 : i32
    return %c0_i32, %c0_i32_0 : i32, i32
  }
  func.func @transform_4(%arg0: i32) -> (i32, i32) {
    %c0_i32 = arith.constant 0 : i32
    %c0_i32_0 = arith.constant 0 : i32
    %c0_i32_1 = arith.constant 0 : i32
    return %c0_i32, %c0_i32_0 : i32, i32
  }
  func.func @transform_5(%arg0: i32) -> (i32, i32) {
    %c0_i32 = arith.constant 0 : i32
    %c0_i32_0 = arith.constant 0 : i32
    %c0_i32_1 = arith.constant 0 : i32
    return %c0_i32, %c0_i32_0 : i32, i32
  }
  func.func @transform_6(%arg0: i32) -> (i32, i32) {
    %c0_i32 = arith.constant 0 : i32
    %c0_i32_0 = arith.constant 0 : i32
    %c0_i32_1 = arith.constant 0 : i32
    return %c0_i32, %c0_i32_0 : i32, i32
  }
  func.func @transform_7(%arg0: i32) -> (i32, i32) {
    %c0_i32 = arith.constant 0 : i32
    %c0_i32_0 = arith.constant 0 : i32
    %c0_i32_1 = arith.constant 0 : i32
    return %c0_i32, %c0_i32_0 : i32, i32
  }
  func.func @transform_8(%arg0: i32) -> (i32, i32) {
    %c0_i32 = arith.constant 0 : i32
    %c0_i32_0 = arith.constant 0 : i32
    %c0_i32_1 = arith.constant 0 : i32
    return %c0_i32, %c0_i32_0 : i32, i32
  }
  func.func @transform_9(%arg0: i32) -> (i32, i32) {
    %c0_i32 = arith.constant 0 : i32
    %c0_i32_0 = arith.constant 0 : i32
    %c0_i32_1 = arith.constant 0 : i32
    return %c0_i32, %c0_i32_0 : i32, i32
  }
  func.func @transform_10(%arg0: i32) -> (i32, i32) {
    %c0_i32 = arith.constant 0 : i32
    %c0_i32_0 = arith.constant 0 : i32
    %c0_i32_1 = arith.constant 0 : i32
    return %c0_i32, %c0_i32_0 : i32, i32
  }
  func.func @transform_11(%arg0: i32) -> (i32, i32) {
    %c0_i32 = arith.constant 0 : i32
    %c0_i32_0 = arith.constant 0 : i32
    %c0_i32_1 = arith.constant 0 : i32
    return %c0_i32, %c0_i32_0 : i32, i32
  }
  func.func @transform_12(%arg0: i32) -> (i32, i32) {
    %c0_i32 = arith.constant 0 : i32
    %c0_i32_0 = arith.constant 0 : i32
    %c0_i32_1 = arith.constant 0 : i32
    return %c0_i32, %c0_i32_0 : i32, i32
  }
  func.func @transform_13(%arg0: i32) -> (i32, i32) {
    %c0_i32 = arith.constant 0 : i32
    %c0_i32_0 = arith.constant 0 : i32
    %c0_i32_1 = arith.constant 0 : i32
    return %c0_i32, %c0_i32_0 : i32, i32
  }
  func.func @transform_14(%arg0: i32) -> (i32, i32) {
    %c0_i32 = arith.constant 0 : i32
    %c0_i32_0 = arith.constant 0 : i32
    %c0_i32_1 = arith.constant 0 : i32
    return %c0_i32, %c0_i32_0 : i32, i32
  }
  func.func @transform_15(%arg0: i32) -> (i32, i32) {
    %c0_i32 = arith.constant 0 : i32
    %c0_i32_0 = arith.constant 0 : i32
    %c0_i32_1 = arith.constant 0 : i32
    return %c0_i32, %c0_i32_0 : i32, i32
  }
  func.func @transform_16(%arg0: i32) -> (i32, i32) {
    %c0_i32 = arith.constant 0 : i32
    %c0_i32_0 = arith.constant 0 : i32
    %c0_i32_1 = arith.constant 0 : i32
    return %c0_i32, %c0_i32_0 : i32, i32
  }
  func.func @transform_17(%arg0: i32) -> (i32, i32) {
    %c0_i32 = arith.constant 0 : i32
    %c0_i32_0 = arith.constant 0 : i32
    %c0_i32_1 = arith.constant 0 : i32
    return %c0_i32, %c0_i32_0 : i32, i32
  }
  func.func @transform_18(%arg0: i32) -> (i32, i32) {
    %c0_i32 = arith.constant 0 : i32
    %c0_i32_0 = arith.constant 0 : i32
    %c0_i32_1 = arith.constant 0 : i32
    return %c0_i32, %c0_i32_0 : i32, i32
  }
  func.func @transform_19(%arg0: i32) -> (i32, i32) {
    %c0_i32 = arith.constant 0 : i32
    %c0_i32_0 = arith.constant 0 : i32
    %c0_i32_1 = arith.constant 0 : i32
    return %c0_i32, %c0_i32_0 : i32, i32
  }
  func.func @transform_20(%arg0: i32) -> (i32, i32, i32) {
    %c0_i32 = arith.constant 0 : i32
    %c0_i32_0 = arith.constant 0 : i32
    %c0_i32_1 = arith.constant 0 : i32
    return %arg0, %c0_i32, %c0_i32_0 : i32, i32, i32
  }
}

</mosaic_0001>

<llo_original>
// kernel: graph_conditioned_layer.1
$region0: #{graph_conditioned_layer.1}
  #allocation0 [shape = 'u32[]', space=smem, size = 0x4, offset = 0x4, fixed_abs, tag = 'smem constant byte address 0x4 - core index']
  #allocation1 [shape = 'u32[144,128]{1,0:T(1,128)}', space=vmem, size = 0x12000, scoped, tag = 'internal scratch']
  %s0 = inlined_call_operand.vmem [shape: f32[2,16,64], index: 0, kind: input, shape index: {}]
  %s1 = inlined_call_operand.vmem [shape: f32[2,16,32], index: 1, kind: input, shape index: {}]
  %s2 = inlined_call_operand.vmem [shape: f32[1,64], index: 2, kind: input, shape index: {}]
  %s3 = inlined_call_operand.vmem [shape: f32[1,64], index: 3, kind: input, shape index: {}]
  %s4 = inlined_call_operand.vmem [shape: bf16[32,64], index: 4, kind: input, shape index: {}]
  %s5 = inlined_call_operand.vmem [shape: f32[1,64], index: 5, kind: input, shape index: {}]
  %s6 = inlined_call_operand.vmem [shape: bf16[64,128], index: 6, kind: input, shape index: {}]
  %s7 = inlined_call_operand.vmem [shape: f32[1,128], index: 7, kind: input, shape index: {}]
  %s8 = inlined_call_operand.vmem [shape: bf16[64,64], index: 8, kind: input, shape index: {}]
  %s9 = inlined_call_operand.vmem [shape: f32[1,64], index: 9, kind: input, shape index: {}]
  %s10 = inlined_call_operand.vmem [shape: bf16[64,64], index: 10, kind: input, shape index: {}]
  %s11 = inlined_call_operand.vmem [shape: f32[1,64], index: 11, kind: input, shape index: {}]
  %s12 = inlined_call_operand.vmem [shape: f32[1,64], index: 12, kind: input, shape index: {}]
  %s13 = inlined_call_operand.vmem [shape: f32[1,64], index: 13, kind: input, shape index: {}]
  %s14 = inlined_call_operand.vmem [shape: f32[1,64], index: 14, kind: input, shape index: {}]
  %s15 = inlined_call_operand.vmem [shape: bf16[64,3072], index: 15, kind: input, shape index: {}]
  %s16 = inlined_call_operand.vmem [shape: f32[1,3072], index: 16, kind: input, shape index: {}]
  %s17 = inlined_call_operand.vmem [shape: bf16[3072,64], index: 17, kind: input, shape index: {}]
  %s18 = inlined_call_operand.vmem [shape: f32[1,64], index: 18, kind: input, shape index: {}]
  %s19 = inlined_call_operand.vmem [shape: f32[1,64], index: 19, kind: input, shape index: {}]
  %s20 = inlined_call_operand.hbm [shape: f32[2,16,64], index: 20, kind: output, shape index: {}]
  %s21 = sld [smem:[#allocation0]]
  $region113: #{graph_conditioned_layer.1} parent=0
    _
  %s23 = ssub.s32 1, %s21
  %s24 = scalar_select 0, %s23, %s21
  $region1: #{graph_conditioned_layer.1} parent=0
    #allocation2 [shape = 'u8[16384]{0}', space=vmem, size = 0x4000, scoped, tag = 'output window, operand 0']
    #allocation3 [shape = 's32[2]{0}', space=sflag, size = 0x8, scoped, tag = 'scoped memory for graph_conditioned_layer.1']
    %25 = vsyncpa [#allocation3], 0
    %s26 = scalar_lea.sflag [#allocation3], 1
    %27 = vsyncpa %s26, 0
    loop: start=0, step=1, limit=4
    $region2: #{graph_conditioned_layer.1} parent=1 // loop_pre_header
      _
    $region3: #{graph_conditioned_layer.1} parent=1 // loop_header
      %s29 = sphi 0, %s33
      %p30 = scmp.ge.s32.totalorder %s29, 4
      %s39 = sphi 0, %s41
      %s42 = sphi 0, %s39
      %s43 = sphi 0, %s42
      %s59 = sphi 0, %s43
      %s65 = sphi 0, %s67
      %s68 = sphi 0, %s65
      %s69 = sphi 0, %s68
      %s85 = sphi 0, %s69
      %s89 = sphi 0, %s89
      %s91 = sphi 0, %s89
      %s92 = sphi 0, %s91
      %s106 = sphi 0, %s92
      %s110 = sphi 0, %s110
      %s112 = sphi 0, %s110
      %s113 = sphi 0, %s112
      %s127 = sphi 0, %s113
      %s131 = sphi 0, %s131
      %s133 = sphi 0, %s131
      %s134 = sphi 0, %s133
      %s148 = sphi 0, %s134
      %s152 = sphi 0, %s152
      %s154 = sphi 0, %s152
      %s155 = sphi 0, %s154
      %s169 = sphi 0, %s155
      %s173 = sphi 0, %s173
      %s175 = sphi 0, %s173
      %s176 = sphi 0, %s175
      %s190 = sphi 0, %s176
      %s194 = sphi 0, %s194
      %s196 = sphi 0, %s194
      %s197 = sphi 0, %s196
      %s211 = sphi 0, %s197
      %s215 = sphi 0, %s215
      %s217 = sphi 0, %s215
      %s218 = sphi 0, %s217
      %s232 = sphi 0, %s218
      %s236 = sphi 0, %s236
      %s238 = sphi 0, %s236
      %s239 = sphi 0, %s238
      %s253 = sphi 0, %s239
      %s257 = sphi 0, %s257
      %s259 = sphi 0, %s257
      %s260 = sphi 0, %s259
      %s274 = sphi 0, %s260
      %s278 = sphi 0, %s278
      %s280 = sphi 0, %s278
      %s281 = sphi 0, %s280
      %s295 = sphi 0, %s281
      %s299 = sphi 0, %s299
      %s301 = sphi 0, %s299
      %s302 = sphi 0, %s301
      %s316 = sphi 0, %s302
      %s320 = sphi 0, %s320
      %s322 = sphi 0, %s320
      %s323 = sphi 0, %s322
      %s337 = sphi 0, %s323
      %s341 = sphi 0, %s341
      %s343 = sphi 0, %s341
      %s344 = sphi 0, %s343
      %s358 = sphi 0, %s344
      %s362 = sphi 0, %s362
      %s364 = sphi 0, %s362
      %s365 = sphi 0, %s364
      %s379 = sphi 0, %s365
      %s383 = sphi 0, %s383
      %s385 = sphi 0, %s383
      %s386 = sphi 0, %s385
      %s400 = sphi 0, %s386
      %s404 = sphi 0, %s404
      %s406 = sphi 0, %s404
      %s407 = sphi 0, %s406
      %s421 = sphi 0, %s407
      %s425 = sphi 0, %s425
      %s427 = sphi 0, %s425
      %s428 = sphi 0, %s427
      %s442 = sphi 0, %s428
      %s446 = sphi 0, %s446
      %s448 = sphi 0, %s446
      %s449 = sphi 0, %s448
      %s463 = sphi 0, %s449
      %s469 = sphi 0, %s471
      %s472 = sphi 0, %s469
      %s473 = sphi 0, %s472
      %s489 = sphi 0, %s473
    $region4: #{graph_conditioned_layer.1} parent=1 // loop_header_branch
      %32 = sbr.rel (%p30) target = $region8
    $region5: #{graph_conditioned_layer.1} parent=1 // loop_body
      %s34 = ssub.s32 %s29, 1
      %s35 = ssub.s32 %s29, 2
      %s36 = sadd.s32 %s29, 1
      %s37 = ssub.s32 %s29, %s36
      %p38 = scmp.eq.s32.totalorder %s37, 0
      %s40 = sadd.s32 %s39, 1
      %s41 = scalar_select %p38, %s39, %s40
      %p44 = pneg %p38
      %p45 = scmp.eq.s32.totalorder %s29, 1
      %p46 = por %p44, %p45
      %p47 = scmp.ne.s32.totalorder %s39, %s42
      %p48 = scmp.eq.s32.totalorder %s29, 0
      %p49 = por %p47, %p48
      %p50 = scmp.ne.s32.totalorder %s39, %s42
      %p51 = scmp.eq.s32.totalorder %s34, 1
      %p52 = por %p50, %p51
      %p53 = scmp.ne.s32.totalorder %s42, %s43
      %p54 = scmp.eq.s32.totalorder %s34, 0
      %p55 = por %p53, %p54
      %p56 = scmp.ne.s32.totalorder %s42, %s43
      %p57 = scmp.eq.s32.totalorder %s35, 1
      %p58 = por %p56, %p57
      %p60 = scmp.ne.s32.totalorder %s43, %s59
      %p61 = scmp.eq.s32.totalorder %s35, 0
      %p62 = por %p60, %p61
      %s63 = ssub.s32 %s29, %s36
      %p64 = scmp.eq.s32.totalorder %s63, 0
      %s66 = sadd.s32 %s65, 1
      %s67 = scalar_select %p64, %s65, %s66
      %p70 = pneg %p64
      %p71 = scmp.eq.s32.totalorder %s29, 1
      %p72 = por %p70, %p71
      %p73 = scmp.ne.s32.totalorder %s65, %s68
      %p74 = scmp.eq.s32.totalorder %s29, 0
      %p75 = por %p73, %p74
      %p76 = scmp.ne.s32.totalorder %s65, %s68
      %p77 = scmp.eq.s32.totalorder %s34, 1
      %p78 = por %p76, %p77
      %p79 = scmp.ne.s32.totalorder %s68, %s69
      %p80 = scmp.eq.s32.totalorder %s34, 0
      %p81 = por %p79, %p80
      %p82 = scmp.ne.s32.totalorder %s68, %s69
      %p83 = scmp.eq.s32.totalorder %s35, 1
      %p84 = por %p82, %p83
      %p86 = scmp.ne.s32.totalorder %s69, %s85
      %p87 = scmp.eq.s32.totalorder %s35, 0
      %p88 = por %p86, %p87
      %s90 = sadd.s32 %s89, 1
      %p93 = scmp.eq.s32.totalorder %s29, 1
      %p94 = scmp.ne.s32.totalorder %s89, %s91
      %p95 = scmp.eq.s32.totalorder %s29, 0
      %p96 = por %p94, %p95
      %p97 = scmp.ne.s32.totalorder %s89, %s91
      %p98 = scmp.eq.s32.totalorder %s34, 1
      %p99 = por %p97, %p98
      %p100 = scmp.ne.s32.totalorder %s91, %s92
      %p101 = scmp.eq.s32.totalorder %s34, 0
      %p102 = por %p100, %p101
      %p103 = scmp.ne.s32.totalorder %s91, %s92
      %p104 = scmp.eq.s32.totalorder %s35, 1
      %p105 = por %p103, %p104
      %p107 = scmp.ne.s32.totalorder %s92, %s106
      %p108 = scmp.eq.s32.totalorder %s35, 0
      %p109 = por %p107, %p108
      %s111 = sadd.s32 %s110, 1
      %p114 = scmp.eq.s32.totalorder %s29, 1
      %p115 = scmp.ne.s32.totalorder %s110, %s112
      %p116 = scmp.eq.s32.totalorder %s29, 0
      %p117 = por %p115, %p116
      %p118 = scmp.ne.s32.totalorder %s110, %s112
      %p119 = scmp.eq.s32.totalorder %s34, 1
      %p120 = por %p118, %p119
      %p121 = scmp.ne.s32.totalorder %s112, %s113
      %p122 = scmp.eq.s32.totalorder %s34, 0
      %p123 = por %p121, %p122
      %p124 = scmp.ne.s32.totalorder %s112, %s113
      %p125 = scmp.eq.s32.totalorder %s35, 1
      %p126 = por %p124, %p125
      %p128 = scmp.ne.s32.totalorder %s113, %s127
      %p129 = scmp.eq.s32.totalorder %s35, 0
      %p130 = por %p128, %p129
      %s132 = sadd.s32 %s131, 1
      %p135 = scmp.eq.s32.totalorder %s29, 1
      %p136 = scmp.ne.s32.totalorder %s131, %s133
      %p137 = scmp.eq.s32.totalorder %s29, 0
      %p138 = por %p136, %p137
      %p139 = scmp.ne.s32.totalorder %s131, %s133
      %p140 = scmp.eq.s32.totalorder %s34, 1
      %p141 = por %p139, %p140
      %p142 = scmp.ne.s32.totalorder %s133, %s134
      %p143 = scmp.eq.s32.totalorder %s34, 0
      %p144 = por %p142, %p143
      %p145 = scmp.ne.s32.totalorder %s133, %s134
      %p146 = scmp.eq.s32.totalorder %s35, 1
      %p147 = por %p145, %p146
      %p149 = scmp.ne.s32.totalorder %s134, %s148
      %p150 = scmp.eq.s32.totalorder %s35, 0
      %p151 = por %p149, %p150
      %s153 = sadd.s32 %s152, 1
      %p156 = scmp.eq.s32.totalorder %s29, 1
      %p157 = scmp.ne.s32.totalorder %s152, %s154
      %p158 = scmp.eq.s32.totalorder %s29, 0
      %p159 = por %p157, %p158
      %p160 = scmp.ne.s32.totalorder %s152, %s154
      %p161 = scmp.eq.s32.totalorder %s34, 1
      %p162 = por %p160, %p161
      %p163 = scmp.ne.s32.totalorder %s154, %s155
      %p164 = scmp.eq.s32.totalorder %s34, 0
      %p165 = por %p163, %p164
      %p166 = scmp.ne.s32.totalorder %s154, %s155
      %p167 = scmp.eq.s32.totalorder %s35, 1
      %p168 = por %p166, %p167
      %p170 = scmp.ne.s32.totalorder %s155, %s169
      %p171 = scmp.eq.s32.totalorder %s35, 0
      %p172 = por %p170, %p171
      %s174 = sadd.s32 %s173, 1
      %p177 = scmp.eq.s32.totalorder %s29, 1
      %p178 = scmp.ne.s32.totalorder %s173, %s175
      %p179 = scmp.eq.s32.totalorder %s29, 0
      %p180 = por %p178, %p179
      %p181 = scmp.ne.s32.totalorder %s173, %s175
      %p182 = scmp.eq.s32.totalorder %s34, 1
      %p183 = por %p181, %p182
      %p184 = scmp.ne.s32.totalorder %s175, %s176
      %p185 = scmp.eq.s32.totalorder %s34, 0
      %p186 = por %p184, %p185
      %p187 = scmp.ne.s32.totalorder %s175, %s176
      %p188 = scmp.eq.s32.totalorder %s35, 1
      %p189 = por %p187, %p188
      %p191 = scmp.ne.s32.totalorder %s176, %s190
      %p192 = scmp.eq.s32.totalorder %s35, 0
      %p193 = por %p191, %p192
      %s195 = sadd.s32 %s194, 1
      %p198 = scmp.eq.s32.totalorder %s29, 1
      %p199 = scmp.ne.s32.totalorder %s194, %s196
      %p200 = scmp.eq.s32.totalorder %s29, 0
      %p201 = por %p199, %p200
      %p202 = scmp.ne.s32.totalorder %s194, %s196
      %p203 = scmp.eq.s32.totalorder %s34, 1
      %p204 = por %p202, %p203
      %p205 = scmp.ne.s32.totalorder %s196, %s197
      %p206 = scmp.eq.s32.totalorder %s34, 0
      %p207 = por %p205, %p206
      %p208 = scmp.ne.s32.totalorder %s196, %s197
      %p209 = scmp.eq.s32.totalorder %s35, 1
      %p210 = por %p208, %p209
      %p212 = scmp.ne.s32.totalorder %s197, %s211
      %p213 = scmp.eq.s32.totalorder %s35, 0
      %p214 = por %p212, %p213
      %s216 = sadd.s32 %s215, 1
      %p219 = scmp.eq.s32.totalorder %s29, 1
      %p220 = scmp.ne.s32.totalorder %s215, %s217
      %p221 = scmp.eq.s32.totalorder %s29, 0
      %p222 = por %p220, %p221
      %p223 = scmp.ne.s32.totalorder %s215, %s217
      %p224 = scmp.eq.s32.totalorder %s34, 1
      %p225 = por %p223, %p224
      %p226 = scmp.ne.s32.totalorder %s217, %s218
      %p227 = scmp.eq.s32.totalorder %s34, 0
      %p228 = por %p226, %p227
      %p229 = scmp.ne.s32.totalorder %s217, %s218
      %p230 = scmp.eq.s32.totalorder %s35, 1
      %p231 = por %p229, %p230
      %p233 = scmp.ne.s32.totalorder %s218, %s232
      %p234 = scmp.eq.s32.totalorder %s35, 0
      %p235 = por %p233, %p234
      %s237 = sadd.s32 %s236, 1
      %p240 = scmp.eq.s32.totalorder %s29, 1
      %p241 = scmp.ne.s32.totalorder %s236, %s238
      %p242 = scmp.eq.s32.totalorder %s29, 0
      %p243 = por %p241, %p242
      %p244 = scmp.ne.s32.totalorder %s236, %s238
      %p245 = scmp.eq.s32.totalorder %s34, 1
      %p246 = por %p244, %p245
      %p247 = scmp.ne.s32.totalorder %s238, %s239
      %p248 = scmp.eq.s32.totalorder %s34, 0
      %p249 = por %p247, %p248
      %p250 = scmp.ne.s32.totalorder %s238, %s239
      %p251 = scmp.eq.s32.totalorder %s35, 1
      %p252 = por %p250, %p251
      %p254 = scmp.ne.s32.totalorder %s239, %s253
      %p255 = scmp.eq.s32.totalorder %s35, 0
      %p256 = por %p254, %p255
      %s258 = sadd.s32 %s257, 1
      %p261 = scmp.eq.s32.totalorder %s29, 1
      %p262 = scmp.ne.s32.totalorder %s257, %s259
      %p263 = scmp.eq.s32.totalorder %s29, 0
      %p264 = por %p262, %p263
      %p265 = scmp.ne.s32.totalorder %s257, %s259
      %p266 = scmp.eq.s32.totalorder %s34, 1
      %p267 = por %p265, %p266
      %p268 = scmp.ne.s32.totalorder %s259, %s260
      %p269 = scmp.eq.s32.totalorder %s34, 0
      %p270 = por %p268, %p269
      %p271 = scmp.ne.s32.totalorder %s259, %s260
      %p272 = scmp.eq.s32.totalorder %s35, 1
      %p273 = por %p271, %p272
      %p275 = scmp.ne.s32.totalorder %s260, %s274
      %p276 = scmp.eq.s32.totalorder %s35, 0
      %p277 = por %p275, %p276
      %s279 = sadd.s32 %s278, 1
      %p282 = scmp.eq.s32.totalorder %s29, 1
      %p283 = scmp.ne.s32.totalorder %s278, %s280
      %p284 = scmp.eq.s32.totalorder %s29, 0
      %p285 = por %p283, %p284
      %p286 = scmp.ne.s32.totalorder %s278, %s280
      %p287 = scmp.eq.s32.totalorder %s34, 1
      %p288 = por %p286, %p287
      %p289 = scmp.ne.s32.totalorder %s280, %s281
      %p290 = scmp.eq.s32.totalorder %s34, 0
      %p291 = por %p289, %p290
      %p292 = scmp.ne.s32.totalorder %s280, %s281
      %p293 = scmp.eq.s32.totalorder %s35, 1
      %p294 = por %p292, %p293
      %p296 = scmp.ne.s32.totalorder %s281, %s295
      %p297 = scmp.eq.s32.totalorder %s35, 0
      %p298 = por %p296, %p297
      %s300 = sadd.s32 %s299, 1
      %p303 = scmp.eq.s32.totalorder %s29, 1
      %p304 = scmp.ne.s32.totalorder %s299, %s301
      %p305 = scmp.eq.s32.totalorder %s29, 0
      %p306 = por %p304, %p305
      %p307 = scmp.ne.s32.totalorder %s299, %s301
      %p308 = scmp.eq.s32.totalorder %s34, 1
      %p309 = por %p307, %p308
      %p310 = scmp.ne.s32.totalorder %s301, %s302
      %p311 = scmp.eq.s32.totalorder %s34, 0
      %p312 = por %p310, %p311
      %p313 = scmp.ne.s32.totalorder %s301, %s302
      %p314 = scmp.eq.s32.totalorder %s35, 1
      %p315 = por %p313, %p314
      %p317 = scmp.ne.s32.totalorder %s302, %s316
      %p318 = scmp.eq.s32.totalorder %s35, 0
      %p319 = por %p317, %p318
      %s321 = sadd.s32 %s320, 1
      %p324 = scmp.eq.s32.totalorder %s29, 1
      %p325 = scmp.ne.s32.totalorder %s320, %s322
      %p326 = scmp.eq.s32.totalorder %s29, 0
      %p327 = por %p325, %p326
      %p328 = scmp.ne.s32.totalorder %s320, %s322
      %p329 = scmp.eq.s32.totalorder %s34, 1
      %p330 = por %p328, %p329
      %p331 = scmp.ne.s32.totalorder %s322, %s323
      %p332 = scmp.eq.s32.totalorder %s34, 0
      %p333 = por %p331, %p332
      %p334 = scmp.ne.s32.totalorder %s322, %s323
      %p335 = scmp.eq.s32.totalorder %s35, 1
      %p336 = por %p334, %p335
      %p338 = scmp.ne.s32.totalorder %s323, %s337
      %p339 = scmp.eq.s32.totalorder %s35, 0
      %p340 = por %p338, %p339
      %s342 = sadd.s32 %s341, 1
      %p345 = scmp.eq.s32.totalorder %s29, 1
      %p346 = scmp.ne.s32.totalorder %s341, %s343
      %p347 = scmp.eq.s32.totalorder %s29, 0
      %p348 = por %p346, %p347
      %p349 = scmp.ne.s32.totalorder %s341, %s343
      %p350 = scmp.eq.s32.totalorder %s34, 1
      %p351 = por %p349, %p350
      %p352 = scmp.ne.s32.totalorder %s343, %s344
      %p353 = scmp.eq.s32.totalorder %s34, 0
      %p354 = por %p352, %p353
      %p355 = scmp.ne.s32.totalorder %s343, %s344
      %p356 = scmp.eq.s32.totalorder %s35, 1
      %p357 = por %p355, %p356
      %p359 = scmp.ne.s32.totalorder %s344, %s358
      %p360 = scmp.eq.s32.totalorder %s35, 0
      %p361 = por %p359, %p360
      %s363 = sadd.s32 %s362, 1
      %p366 = scmp.eq.s32.totalorder %s29, 1
      %p367 = scmp.ne.s32.totalorder %s362, %s364
      %p368 = scmp.eq.s32.totalorder %s29, 0
      %p369 = por %p367, %p368
      %p370 = scmp.ne.s32.totalorder %s362, %s364
      %p371 = scmp.eq.s32.totalorder %s34, 1
      %p372 = por %p370, %p371
      %p373 = scmp.ne.s32.totalorder %s364, %s365
      %p374 = scmp.eq.s32.totalorder %s34, 0
      %p375 = por %p373, %p374
      %p376 = scmp.ne.s32.totalorder %s364, %s365
      %p377 = scmp.eq.s32.totalorder %s35, 1
      %p378 = por %p376, %p377
      %p380 = scmp.ne.s32.totalorder %s365, %s379
      %p381 = scmp.eq.s32.totalorder %s35, 0
      %p382 = por %p380, %p381
      %s384 = sadd.s32 %s383, 1
      %p387 = scmp.eq.s32.totalorder %s29, 1
      %p388 = scmp.ne.s32.totalorder %s383, %s385
      %p389 = scmp.eq.s32.totalorder %s29, 0
      %p390 = por %p388, %p389
      %p391 = scmp.ne.s32.totalorder %s383, %s385
      %p392 = scmp.eq.s32.totalorder %s34, 1
      %p393 = por %p391, %p392
      %p394 = scmp.ne.s32.totalorder %s385, %s386
      %p395 = scmp.eq.s32.totalorder %s34, 0
      %p396 = por %p394, %p395
      %p397 = scmp.ne.s32.totalorder %s385, %s386
      %p398 = scmp.eq.s32.totalorder %s35, 1
      %p399 = por %p397, %p398
      %p401 = scmp.ne.s32.totalorder %s386, %s400
      %p402 = scmp.eq.s32.totalorder %s35, 0
      %p403 = por %p401, %p402
      %s405 = sadd.s32 %s404, 1
      %p408 = scmp.eq.s32.totalorder %s29, 1
      %p409 = scmp.ne.s32.totalorder %s404, %s406
      %p410 = scmp.eq.s32.totalorder %s29, 0
      %p411 = por %p409, %p410
      %p412 = scmp.ne.s32.totalorder %s404, %s406
      %p413 = scmp.eq.s32.totalorder %s34, 1
      %p414 = por %p412, %p413
      %p415 = scmp.ne.s32.totalorder %s406, %s407
      %p416 = scmp.eq.s32.totalorder %s34, 0
      %p417 = por %p415, %p416
      %p418 = scmp.ne.s32.totalorder %s406, %s407
      %p419 = scmp.eq.s32.totalorder %s35, 1
      %p420 = por %p418, %p419
      %p422 = scmp.ne.s32.totalorder %s407, %s421
      %p423 = scmp.eq.s32.totalorder %s35, 0
      %p424 = por %p422, %p423
      %s426 = sadd.s32 %s425, 1
      %p429 = scmp.eq.s32.totalorder %s29, 1
      %p430 = scmp.ne.s32.totalorder %s425, %s427
      %p431 = scmp.eq.s32.totalorder %s29, 0
      %p432 = por %p430, %p431
      %p433 = scmp.ne.s32.totalorder %s425, %s427
      %p434 = scmp.eq.s32.totalorder %s34, 1
      %p435 = por %p433, %p434
      %p436 = scmp.ne.s32.totalorder %s427, %s428
      %p437 = scmp.eq.s32.totalorder %s34, 0
      %p438 = por %p436, %p437
      %p439 = scmp.ne.s32.totalorder %s427, %s428
      %p440 = scmp.eq.s32.totalorder %s35, 1
      %p441 = por %p439, %p440
      %p443 = scmp.ne.s32.totalorder %s428, %s442
      %p444 = scmp.eq.s32.totalorder %s35, 0
      %p445 = por %p443, %p444
      %s447 = sadd.s32 %s446, 1
      %p450 = scmp.eq.s32.totalorder %s29, 1
      %p451 = scmp.ne.s32.totalorder %s446, %s448
      %p452 = scmp.eq.s32.totalorder %s29, 0
      %p453 = por %p451, %p452
      %p454 = scmp.ne.s32.totalorder %s446, %s448
      %p455 = scmp.eq.s32.totalorder %s34, 1
      %p456 = por %p454, %p455
      %p457 = scmp.ne.s32.totalorder %s448, %s449
      %p458 = scmp.eq.s32.totalorder %s34, 0
      %p459 = por %p457, %p458
      %p460 = scmp.ne.s32.totalorder %s448, %s449
      %p461 = scmp.eq.s32.totalorder %s35, 1
      %p462 = por %p460, %p461
      %p464 = scmp.ne.s32.totalorder %s449, %s463
      %p465 = scmp.eq.s32.totalorder %s35, 0
      %p466 = por %p464, %p465
      %s467 = ssub.s32 %s29, %s36
      %p468 = scmp.eq.s32.totalorder %s467, 0
      %s470 = sadd.s32 %s469, 1
      %s471 = scalar_select %p468, %s469, %s470
      %p474 = pneg %p468
      %p475 = scmp.eq.s32.totalorder %s29, 1
      %p476 = por %p474, %p475
      %p477 = scmp.ne.s32.totalorder %s469, %s472
      %p478 = scmp.eq.s32.totalorder %s29, 0
      %p479 = por %p477, %p478
      %p480 = scmp.ne.s32.totalorder %s469, %s472
      %p481 = scmp.eq.s32.totalorder %s34, 1
      %p482 = por %p480, %p481
      %p483 = scmp.ne.s32.totalorder %s472, %s473
      %p484 = scmp.eq.s32.totalorder %s34, 0
      %p485 = por %p483, %p484
      %p486 = scmp.ne.s32.totalorder %s472, %s473
      %p487 = scmp.eq.s32.totalorder %s35, 1
      %p488 = por %p486, %p487
      %p490 = scmp.ne.s32.totalorder %s473, %s489
      %p491 = scmp.eq.s32.totalorder %s35, 0
      %p492 = por %p490, %p491
      %p493 = scmp.le.s32.totalorder 1, %s29
      %p494 = scmp.lt.s32.totalorder %s29, 3
      %p495 = pnand %p493, %p494
      %p496 = pneg %p495
      // Predicated region
      $region9: #{graph_conditioned_layer.1} parent=5 // pred_check
        _
      $region10: #{graph_conditioned_layer.1} parent=5 // pred_check_branch
        %498 = sbr.rel (%p495) target = $region12
      $region11: #{graph_conditioned_layer.1} parent=5 // pred_region
        %s499 = ssub.s32 %s29, 1
        // Predicated region
        $region13: #{graph_conditioned_layer.1} parent=11 // pred_check
          %p500 = pneg %p102
        $region14: #{graph_conditioned_layer.1} parent=11 // pred_check_branch
          %502 = sbr.rel (%p500) target = $region16
        $region15: #{graph_conditioned_layer.1} parent=11 // pred_region
          _
        $region16: #{graph_conditioned_layer.1} parent=11 // pred_fallthru
          _
        // Predicated region
        $region17: #{graph_conditioned_layer.1} parent=11 // pred_check
          %p503 = pneg %p123
        $region18: #{graph_conditioned_layer.1} parent=11 // pred_check_branch
          %505 = sbr.rel (%p503) target = $region20
        $region19: #{graph_conditioned_layer.1} parent=11 // pred_region
          _
        $region20: #{graph_conditioned_layer.1} parent=11 // pred_fallthru
          _
        // Predicated region
        $region21: #{graph_conditioned_layer.1} parent=11 // pred_check
          %p506 = pneg %p144
        $region22: #{graph_conditioned_layer.1} parent=11 // pred_check_branch
          %508 = sbr.rel (%p506) target = $region24
        $region23: #{graph_conditioned_layer.1} parent=11 // pred_region
          _
        $region24: #{graph_conditioned_layer.1} parent=11 // pred_fallthru
          _
        // Predicated region
        $region25: #{graph_conditioned_layer.1} parent=11 // pred_check
          %p509 = pneg %p165
        $region26: #{graph_conditioned_layer.1} parent=11 // pred_check_branch
          %511 = sbr.rel (%p509) target = $region28
        $region27: #{graph_conditioned_layer.1} parent=11 // pred_region
          _
        $region28: #{graph_conditioned_layer.1} parent=11 // pred_fallthru
          _
        // Predicated region
        $region29: #{graph_conditioned_layer.1} parent=11 // pred_check
          %p512 = pneg %p186
        $region30: #{graph_conditioned_layer.1} parent=11 // pred_check_branch
          %514 = sbr.rel (%p512) target = $region32
        $region31: #{graph_conditioned_layer.1} parent=11 // pred_region
          _
        $region32: #{graph_conditioned_layer.1} parent=11 // pred_fallthru
          _
        // Predicated region
        $region33: #{graph_conditioned_layer.1} parent=11 // pred_check
          %p515 = pneg %p207
        $region34: #{graph_conditioned_layer.1} parent=11 // pred_check_branch
          %517 = sbr.rel (%p515) target = $region36
        $region35: #{graph_conditioned_layer.1} parent=11 // pred_region
          _
        $region36: #{graph_conditioned_layer.1} parent=11 // pred_fallthru
          _
        // Predicated region
        $region37: #{graph_conditioned_layer.1} parent=11 // pred_check
          %p518 = pneg %p228
        $region38: #{graph_conditioned_layer.1} parent=11 // pred_check_branch
          %520 = sbr.rel (%p518) target = $region40
        $region39: #{graph_conditioned_layer.1} parent=11 // pred_region
          _
        $region40: #{graph_conditioned_layer.1} parent=11 // pred_fallthru
          _
        // Predicated region
        $region41: #{graph_conditioned_layer.1} parent=11 // pred_check
          %p521 = pneg %p249
        $region42: #{graph_conditioned_layer.1} parent=11 // pred_check_branch
          %523 = sbr.rel (%p521) target = $region44
        $region43: #{graph_conditioned_layer.1} parent=11 // pred_region
          _
        $region44: #{graph_conditioned_layer.1} parent=11 // pred_fallthru
          _
        // Predicated region
        $region45: #{graph_conditioned_layer.1} parent=11 // pred_check
          %p524 = pneg %p270
        $region46: #{graph_conditioned_layer.1} parent=11 // pred_check_branch
          %526 = sbr.rel (%p524) target = $region48
        $region47: #{graph_conditioned_layer.1} parent=11 // pred_region
          _
        $region48: #{graph_conditioned_layer.1} parent=11 // pred_fallthru
          _
        // Predicated region
        $region49: #{graph_conditioned_layer.1} parent=11 // pred_check
          %p527 = pneg %p291
        $region50: #{graph_conditioned_layer.1} parent=11 // pred_check_branch
          %529 = sbr.rel (%p527) target = $region52
        $region51: #{graph_conditioned_layer.1} parent=11 // pred_region
          _
        $region52: #{graph_conditioned_layer.1} parent=11 // pred_fallthru
          _
        // Predicated region
        $region53: #{graph_conditioned_layer.1} parent=11 // pred_check
          %p530 = pneg %p312
        $region54: #{graph_conditioned_layer.1} parent=11 // pred_check_branch
          %532 = sbr.rel (%p530) target = $region56
        $region55: #{graph_conditioned_layer.1} parent=11 // pred_region
          _
        $region56: #{graph_conditioned_layer.1} parent=11 // pred_fallthru
          _
        // Predicated region
        $region57: #{graph_conditioned_layer.1} parent=11 // pred_check
          %p533 = pneg %p333
        $region58: #{graph_conditioned_layer.1} parent=11 // pred_check_branch
          %535 = sbr.rel (%p533) target = $region60
        $region59: #{graph_conditioned_layer.1} parent=11 // pred_region
          _
        $region60: #{graph_conditioned_layer.1} parent=11 // pred_fallthru
          _
        // Predicated region
        $region61: #{graph_conditioned_layer.1} parent=11 // pred_check
          %p536 = pneg %p354
        $region62: #{graph_conditioned_layer.1} parent=11 // pred_check_branch
          %538 = sbr.rel (%p536) target = $region64
        $region63: #{graph_conditioned_layer.1} parent=11 // pred_region
          _
        $region64: #{graph_conditioned_layer.1} parent=11 // pred_fallthru
          _
        // Predicated region
        $region65: #{graph_conditioned_layer.1} parent=11 // pred_check
          %p539 = pneg %p375
        $region66: #{graph_conditioned_layer.1} parent=11 // pred_check_branch
          %541 = sbr.rel (%p539) target = $region68
        $region67: #{graph_conditioned_layer.1} parent=11 // pred_region
          _
        $region68: #{graph_conditioned_layer.1} parent=11 // pred_fallthru
          _
        // Predicated region
        $region69: #{graph_conditioned_layer.1} parent=11 // pred_check
          %p542 = pneg %p396
        $region70: #{graph_conditioned_layer.1} parent=11 // pred_check_branch
          %544 = sbr.rel (%p542) target = $region72
        $region71: #{graph_conditioned_layer.1} parent=11 // pred_region
          _
        $region72: #{graph_conditioned_layer.1} parent=11 // pred_fallthru
          _
        // Predicated region
        $region73: #{graph_conditioned_layer.1} parent=11 // pred_check
          %p545 = pneg %p417
        $region74: #{graph_conditioned_layer.1} parent=11 // pred_check_branch
          %547 = sbr.rel (%p545) target = $region76
        $region75: #{graph_conditioned_layer.1} parent=11 // pred_region
          _
        $region76: #{graph_conditioned_layer.1} parent=11 // pred_fallthru
          _
        // Predicated region
        $region77: #{graph_conditioned_layer.1} parent=11 // pred_check
          %p548 = pneg %p438
        $region78: #{graph_conditioned_layer.1} parent=11 // pred_check_branch
          %550 = sbr.rel (%p548) target = $region80
        $region79: #{graph_conditioned_layer.1} parent=11 // pred_region
          _
        $region80: #{graph_conditioned_layer.1} parent=11 // pred_fallthru
          _
        // Predicated region
        $region81: #{graph_conditioned_layer.1} parent=11 // pred_check
          %p551 = pneg %p459
        $region82: #{graph_conditioned_layer.1} parent=11 // pred_check_branch
          %553 = sbr.rel (%p551) target = $region84
        $region83: #{graph_conditioned_layer.1} parent=11 // pred_region
          _
        $region84: #{graph_conditioned_layer.1} parent=11 // pred_fallthru
          _
      $region12: #{graph_conditioned_layer.1} parent=5 // pred_fallthru
        _
      %p554 = scmp.lt.s32.totalorder %s29, 2
      // Predicated region
      $region85: #{graph_conditioned_layer.1} parent=5 // pred_check
        %p555 = pneg %p554
      $region86: #{graph_conditioned_layer.1} parent=5 // pred_check_branch
        %557 = sbr.rel (%p555) target = $region88
      $region87: #{graph_conditioned_layer.1} parent=5 // pred_region
        // Predicated region
        $region89: #{graph_conditioned_layer.1} parent=87 // pred_check
          %p558 = pneg %p49
        $region90: #{graph_conditioned_layer.1} parent=87 // pred_check_branch
          %560 = sbr.rel (%p558) target = $region92
        $region91: #{graph_conditioned_layer.1} parent=87 // pred_region
          %p561 = scmp.lt.s32.totalorder %s29, 1
          %s562 = scalar_select %p561, %s29, 1
          %s563 = smul.addr %s562, 2
          %s564 = smul.addr %s563, 8
          %s565 = scalar_lea.vmem %s0, %s564
        $region92: #{graph_conditioned_layer.1} parent=87 // pred_fallthru
          _
        // Predicated region
        $region93: #{graph_conditioned_layer.1} parent=87 // pred_check
          %p566 = pneg %p75
        $region94: #{graph_conditioned_layer.1} parent=87 // pred_check_branch
          %568 = sbr.rel (%p566) target = $region96
        $region95: #{graph_conditioned_layer.1} parent=87 // pred_region
          %p569 = scmp.lt.s32.totalorder %s29, 1
          %s570 = scalar_select %p569, %s29, 1
          %s571 = smul.addr %s570, 2
          %s572 = smul.addr %s571, 8
          %s573 = scalar_lea.vmem %s1, %s572
        $region96: #{graph_conditioned_layer.1} parent=87 // pred_fallthru
          _
      $region88: #{graph_conditioned_layer.1} parent=5 // pred_fallthru
        _
      %p574 = scmp.le.s32.totalorder 1, %s29
      %p575 = scmp.lt.s32.totalorder %s29, 3
      %p576 = pnand %p574, %p575
      %p577 = pneg %p576
      // Predicated region
      $region97: #{graph_conditioned_layer.1} parent=5 // pred_check
        _
      $region98: #{graph_conditioned_layer.1} parent=5 // pred_check_branch
        %579 = sbr.rel (%p576) target = $region100
      $region99: #{graph_conditioned_layer.1} parent=5 // pred_region
        %s580 = ssub.s32 %s29, 1
        %p581 = scmp.lt.s32.totalorder %s34, 1
        %s582 = scalar_select %p581, %s34, 1
        %s583 = smul.addr %s582, 2
        %s584 = smul.addr %s583, 8
        %s585 = scalar_lea.vmem %s0, %s584
        %p586 = pneg %p55
        %p587 = pneg %p52
        %p588 = scmp.lt.s32.totalorder %s34, 1
        %s589 = scalar_select %p588, %s34, 1
        %s590 = smul.addr %s589, 2
        %s591 = smul.addr %s590, 8
        %s592 = scalar_lea.vmem %s1, %s591
        %p593 = pneg %p81
        %p594 = pneg %p78
        %p595 = pneg %p102
        %p596 = pneg %p99
        %p597 = pneg %p123
        %p598 = pneg %p120
        %p599 = pneg %p144
        %p600 = pneg %p141
        %p601 = pneg %p165
        %p602 = pneg %p162
        %p603 = pneg %p186
        %p604 = pneg %p183
        %p605 = pneg %p207
        %p606 = pneg %p204
        %p607 = pneg %p228
        %p608 = pneg %p225
        %p609 = pneg %p249
        %p610 = pneg %p246
        %p611 = pneg %p270
        %p612 = pneg %p267
        %p613 = pneg %p291
        %p614 = pneg %p288
        %p615 = pneg %p312
        %p616 = pneg %p309
        %p617 = pneg %p333
        %p618 = pneg %p330
        %p619 = pneg %p354
        %p620 = pneg %p351
        %p621 = pneg %p375
        %p622 = pneg %p372
        %p623 = pneg %p396
        %p624 = pneg %p393
        %p625 = pneg %p417
        %p626 = pneg %p414
        %p627 = pneg %p438
        %p628 = pneg %p435
        %p629 = pneg %p459
        %p630 = pneg %p456
        %p631 = pneg %p485
        %p632 = pneg %p482
        %s633 = sand.u32 %s472, 1
        %s634 = scalar_lea.sflag [#allocation3], %s633
        %s635 = sand.u32 %s472, 1
        %s636 = smul.addr %s635, 16
        %s637 = scalar_lea.vmem [#allocation2], %s636
        %p638 = scmp.lt.s32.totalorder %s34, 1
        %s639 = scalar_select %p638, %s34, 1
        %s640 = smul.addr %s639, 2
        %s641 = smul.addr %s640, 8
        %s642 = scalar_lea.vmem %s0, %s641
        %p643 = scmp.lt.s32.totalorder %s34, 1
        %s644 = scalar_select %p643, %s34, 1
        %s645 = smul.addr %s644, 2
        %s646 = smul.addr %s645, 8
        %s647 = scalar_lea.vmem %s1, %s646
        %v649 = vld [vmem:[%s642] sm:$0xff]
        %v650 = vld [vmem:[%s642 + $0x8] sm:$0xff]
        %v651 = vld [vmem:[%s647] sm:$0xff]
        %v652 = vld [vmem:[%s647 + $0x8] sm:$0xff]
        %v653 = vld [vmem:[%s2] sm:$0x1]
        %v654 = vld [vmem:[%s3] sm:$0x1]
        %vm655 = vcmask 523264
        %v656 = vsel %vm655, %v649, 0.0
        %657 = vadd.xlane.f32.xlu0 %v656
        %v658 = vpop.xlane.xlu0 %657
        %v659 = vsel %vm655, %v650, 0.0
        %660 = vadd.xlane.f32.xlu0 %v659
        %v661 = vpop.xlane.xlu0 %660
        %v662 = vrcp.pop 64.0
        %v663 = vmul.f32 %v658, %v662
        %v664 = vmul.f32 %v661, %v662
        %v665 = vsub.f32 %v649, %v663
        %v666 = vsub.f32 %v650, %v664
        %v667 = vmul.f32 %v665, %v665
        %v668 = vmul.f32 %v666, %v666
        %v669 = vsel %vm655, %v667, 0.0
        %670 = vadd.xlane.f32.xlu0 %v669
        %v671 = vpop.xlane.xlu0 %670
        %v672 = vsel %vm655, %v668, 0.0
        %673 = vadd.xlane.f32.xlu0 %v672
        %v674 = vpop.xlane.xlu0 %673
        %v675 = vmul.f32 %v671, %v662
        %v676 = vmul.f32 %v674, %v662
        %v677 = vadd.f32 %v675, 1e-05
        %v678 = vadd.f32 %v676, 1e-05
        %v679 = vrsqrt.pop %v677
        %v680 = vrsqrt.pop %v678
        %v681 = vmul.f32 %v665, %v679
        %v682 = vmul.f32 %v666, %v680
        %v684 = vlaneseq
        %v685 = vshrl.u32 %v684, 7
        %v686 = vsub.s32 0, %v685
        %v687 = vrot.slane %v653, %v686
        %v689 = vmul.f32 %v681, %v687
        %v690 = vmul.f32 %v682, %v687
        %v692 = vlaneseq
        %v693 = vshrl.u32 %v692, 7
        %v694 = vsub.s32 0, %v693
        %v695 = vrot.slane %v654, %v694
        %v697 = vadd.f32 %v689, %v695
        %v698 = vadd.f32 %v690, %v695
        %v699 = vld [vmem:[%s4] sm:$0xf]
        %v700 = vld [vmem:[%s4 + $0x4] sm:$0xf]
        %v701 = vld [vmem:[%s4 + $0x8] sm:$0xf]
        %v702 = vld [vmem:[%s4 + $0xc] sm:$0xf]
        %v703 = vpack.c.bf16 %v652, %v651
        %v704 = vld [vmem:[%s5] sm:$0x1]
        %v706 = vlaneseq
        %v707 = vshrl.u32 %v706, 7
        %v708 = vsub.s32 0, %v707
        %v709 = vrot.slane %v704, %v708
        %v715 = vunpack.c.l.b16 %v699
        %v716 = vunpack.c.l.b16 %v700
        %v717 = vunpack.c.l.b16 %v701
        %v718 = vunpack.c.l.b16 %v702
        %v719 = vpack.c.b16 %v716, %v715
        %v720 = vpack.c.b16 %v718, %v717
        %vm723 = vcmask 261120
        %v725 = vsel %vm723, %v703, 0
        %727 = vmatprep.subr.bf16.mxu0 0
        %728 = vmatpush1.bf16.msra.mxu0 %v719
        %729 = vmatprep.subr.bf16.mxu0 0
        %730 = vmatpush1.bf16.msra.mxu0 %v720
        %731 = vmatprep.subr.bf16.mxu0 0
        %732 = vmatpush1.bf16.msra.mxu0 0
        %733 = vmatprep.subr.bf16.mxu0 0
        %734 = vmatpush1.bf16.msra.mxu0 0
        %735 = vmatprep.subr.bf16.mxu0 0
        %736 = vmatpush1.bf16.msra.mxu0 0
        %737 = vmatprep.subr.bf16.mxu0 0
        %738 = vmatpush1.bf16.msra.mxu0 0
        %739 = vmatprep.subr.bf16.mxu0 0
        %740 = vmatpush1.bf16.msra.mxu0 0
        %741 = vmatprep.subr.bf16.mxu0 0
        %742 = vmatpush1.bf16.msra.mxu0 0
        %743 = vmatprep.subr.bf16.mxu0 0
        %744 = vmatpush1.bf16.msra.mxu0 0
        %745 = vmatprep.subr.bf16.mxu0 0
        %746 = vmatpush1.bf16.msra.mxu0 0
        %747 = vmatprep.subr.bf16.mxu0 0
        %748 = vmatpush1.bf16.msra.mxu0 0
        %749 = vmatprep.subr.bf16.mxu0 0
        %750 = vmatpush1.bf16.msra.mxu0 0
        %751 = vmatprep.subr.bf16.mxu0 0
        %752 = vmatpush1.bf16.msra.mxu0 0
        %753 = vmatprep.subr.bf16.mxu0 0
        %754 = vmatpush1.bf16.msra.mxu0 0
        %755 = vmatprep.subr.bf16.mxu0 0
        %756 = vmatpush1.bf16.msra.mxu0 0
        %757 = vmatprep.subr.bf16.mxu0 0
        %758 = vmatpush1.bf16.msra.mxu0 0
        %759 = vmatprep.mubr.bf16.mxu0 0
        %760 = vmatmul.mubr.bf16.gmra.mrb[0].mxu0 %v725
        %v761 = vpop.f32.mrb[0].mxu0
        %v762 = vadd.f32 %v709, %v761
        %v763 = vpop.f32.mrb[0].mxu0
        %v764 = vpop.f32.mrb[0].mxu0
        %v765 = vadd.f32 %v709, %v764
        %v766 = vpop.f32.mrb[0].mxu0
        %767 = vdwg.mxu0
        %v768 = vadd.f32 %v697, %v762
        %v769 = vadd.f32 %v698, %v765
        %v770 = vld [vmem:[%s6] sm:$0xf]
        %v771 = vld [vmem:[%s6 + $0x4] sm:$0xf]
        %v772 = vld [vmem:[%s6 + $0x8] sm:$0xf]
        %v773 = vld [vmem:[%s6 + $0xc] sm:$0xf]
        %v774 = vld [vmem:[%s6 + $0x10] sm:$0xf]
        %v775 = vld [vmem:[%s6 + $0x14] sm:$0xf]
        %v776 = vld [vmem:[%s6 + $0x18] sm:$0xf]
        %v777 = vld [vmem:[%s6 + $0x1c] sm:$0xf]
        %v778 = vpack.c.bf16 %v769, %v768
        %v779 = vld [vmem:[%s7] sm:$0x1]
        %v781 = vlaneseq
        %v782 = vshrl.u32 %v781, 7
        %v783 = vsub.s32 0, %v782
        %v784 = vrot.slane %v779, %v783
        %v794 = vunpack.c.l.b16 %v770
        %v795 = vunpack.c.l.b16 %v771
        %v796 = vunpack.c.l.b16 %v772
        %v797 = vunpack.c.l.b16 %v773
        %v798 = vunpack.c.l.b16 %v774
        %v799 = vunpack.c.l.b16 %v775
        %v800 = vunpack.c.l.b16 %v776
        %v801 = vunpack.c.l.b16 %v777
        %v802 = vpack.c.b16 %v795, %v794
        %v803 = vpack.c.b16 %v797, %v796
        %v804 = vpack.c.b16 %v799, %v798
        %v805 = vpack.c.b16 %v801, %v800
        %v811 = vsel %vm655, %v778, 0
        %813 = vmatprep.subr.bf16.mxu0 0
        %814 = vmatpush1.bf16.msra.mxu0 %v802
        %815 = vmatprep.subr.bf16.mxu0 0
        %816 = vmatpush1.bf16.msra.mxu0 %v803
        %817 = vmatprep.subr.bf16.mxu0 0
        %818 = vmatpush1.bf16.msra.mxu0 %v804
        %819 = vmatprep.subr.bf16.mxu0 0
        %820 = vmatpush1.bf16.msra.mxu0 %v805
        %821 = vmatprep.subr.bf16.mxu0 0
        %822 = vmatpush1.bf16.msra.mxu0 0
        %823 = vmatprep.subr.bf16.mxu0 0
        %824 = vmatpush1.bf16.msra.mxu0 0
        %825 = vmatprep.subr.bf16.mxu0 0
        %826 = vmatpush1.bf16.msra.mxu0 0
        %827 = vmatprep.subr.bf16.mxu0 0
        %828 = vmatpush1.bf16.msra.mxu0 0
        %829 = vmatprep.subr.bf16.mxu0 0
        %830 = vmatpush1.bf16.msra.mxu0 0
        %831 = vmatprep.subr.bf16.mxu0 0
        %832 = vmatpush1.bf16.msra.mxu0 0
        %833 = vmatprep.subr.bf16.mxu0 0
        %834 = vmatpush1.bf16.msra.mxu0 0
        %835 = vmatprep.subr.bf16.mxu0 0
        %836 = vmatpush1.bf16.msra.mxu0 0
        %837 = vmatprep.subr.bf16.mxu0 0
        %838 = vmatpush1.bf16.msra.mxu0 0
        %839 = vmatprep.subr.bf16.mxu0 0
        %840 = vmatpush1.bf16.msra.mxu0 0
        %841 = vmatprep.subr.bf16.mxu0 0
        %842 = vmatpush1.bf16.msra.mxu0 0
        %843 = vmatprep.subr.bf16.mxu0 0
        %844 = vmatpush1.bf16.msra.mxu0 0
        %845 = vmatprep.mubr.bf16.mxu0 0
        %846 = vmatmul.mubr.bf16.gmra.mrb[0].mxu0 %v811
        %v847 = vpop.f32.mrb[0].mxu0
        %v848 = vadd.f32 %v784, %v847
        %v849 = vpop.f32.mrb[0].mxu0
        %v850 = vpop.f32.mrb[0].mxu0
        %v851 = vadd.f32 %v784, %v850
        %v852 = vpop.f32.mrb[0].mxu0
        %853 = vdwg.mxu0
        %v854 = vld [vmem:[%s8] sm:$0xf]
        %v855 = vld [vmem:[%s8 + $0x4] sm:$0xf]
        %v856 = vld [vmem:[%s8 + $0x8] sm:$0xf]
        %v857 = vld [vmem:[%s8 + $0xc] sm:$0xf]
        %v858 = vld [vmem:[%s8 + $0x10] sm:$0xf]
        %v859 = vld [vmem:[%s8 + $0x14] sm:$0xf]
        %v860 = vld [vmem:[%s8 + $0x18] sm:$0xf]
        %v861 = vld [vmem:[%s8 + $0x1c] sm:$0xf]
        %v862 = vpack.c.bf16 %v698, %v697
        %v863 = vld [vmem:[%s9] sm:$0x1]
        %v865 = vlaneseq
        %v866 = vshrl.u32 %v865, 7
        %v867 = vsub.s32 0, %v866
        %v868 = vrot.slane %v863, %v867
        %v878 = vunpack.c.l.b16 %v854
        %v879 = vunpack.c.l.b16 %v855
        %v880 = vunpack.c.l.b16 %v856
        %v881 = vunpack.c.l.b16 %v857
        %v882 = vunpack.c.l.b16 %v858
        %v883 = vunpack.c.l.b16 %v859
        %v884 = vunpack.c.l.b16 %v860
        %v885 = vunpack.c.l.b16 %v861
        %v886 = vpack.c.b16 %v879, %v878
        %v887 = vpack.c.b16 %v881, %v880
        %v888 = vpack.c.b16 %v883, %v882
        %v889 = vpack.c.b16 %v885, %v884
        %v895 = vsel %vm655, %v862, 0
        %897 = vmatprep.subr.bf16.mxu0 0
        %898 = vmatpush1.bf16.msra.mxu0 %v886
        %899 = vmatprep.subr.bf16.mxu0 0
        %900 = vmatpush1.bf16.msra.mxu0 %v887
        %901 = vmatprep.subr.bf16.mxu0 0
        %902 = vmatpush1.bf16.msra.mxu0 %v888
        %903 = vmatprep.subr.bf16.mxu0 0
        %904 = vmatpush1.bf16.msra.mxu0 %v889
        %905 = vmatprep.subr.bf16.mxu0 0
        %906 = vmatpush1.bf16.msra.mxu0 0
        %907 = vmatprep.subr.bf16.mxu0 0
        %908 = vmatpush1.bf16.msra.mxu0 0
        %909 = vmatprep.subr.bf16.mxu0 0
        %910 = vmatpush1.bf16.msra.mxu0 0
        %911 = vmatprep.subr.bf16.mxu0 0
        %912 = vmatpush1.bf16.msra.mxu0 0
        %913 = vmatprep.subr.bf16.mxu0 0
        %914 = vmatpush1.bf16.msra.mxu0 0
        %915 = vmatprep.subr.bf16.mxu0 0
        %916 = vmatpush1.bf16.msra.mxu0 0
        %917 = vmatprep.subr.bf16.mxu0 0
        %918 = vmatpush1.bf16.msra.mxu0 0
        %919 = vmatprep.subr.bf16.mxu0 0
        %920 = vmatpush1.bf16.msra.mxu0 0
        %921 = vmatprep.subr.bf16.mxu0 0
        %922 = vmatpush1.bf16.msra.mxu0 0
        %923 = vmatprep.subr.bf16.mxu0 0
        %924 = vmatpush1.bf16.msra.mxu0 0
        %925 = vmatprep.subr.bf16.mxu0 0
        %926 = vmatpush1.bf16.msra.mxu0 0
        %927 = vmatprep.subr.bf16.mxu0 0
        %928 = vmatpush1.bf16.msra.mxu0 0
        %929 = vmatprep.mubr.bf16.mxu0 0
        %930 = vmatmul.mubr.bf16.gmra.mrb[0].mxu0 %v895
        %v931 = vpop.f32.mrb[0].mxu0
        %v932 = vadd.f32 %v868, %v931
        %v933 = vpop.f32.mrb[0].mxu0
        %v934 = vpop.f32.mrb[0].mxu0
        %v935 = vadd.f32 %v868, %v934
        %v936 = vpop.f32.mrb[0].mxu0
        %937 = vdwg.mxu0
        %v938 = vmul.f32 %v848, 0.25
        %v939 = vmul.f32 %v851, 0.25
        %v940 = vpack.c.bf16 %v939, %v938
        %v941 = vpack.c.bf16 %v851, %v848
        %v942 = vpack.c.bf16 %v935, %v932
        %944 = vrot.lane.b32.xlu0 %v941, 64
        %v945 = vpop.permute.xlu0 %944
        %vm946 = vcmask 130048
        %v948 = vsel %vm946, %v940, 0
        %v951 = vsel %vm946, %v945, 0
        %953 = vmatprep.subr.bf16.mxu0 0
        %954 = vmatpush1.bf16.xpose.msra.mxu0 %v951
        %955 = vmatprep.subr.bf16.mxu0 0
        %956 = vmatpush1.bf16.xpose.msra.mxu0 0
        %957 = vmatprep.subr.bf16.mxu0 0
        %958 = vmatpush1.bf16.xpose.msra.mxu0 0
        %959 = vmatprep.subr.bf16.mxu0 0
        %960 = vmatpush1.bf16.xpose.msra.mxu0 0
        %961 = vmatprep.subr.bf16.mxu0 0
        %962 = vmatpush1.bf16.xpose.msra.mxu0 0
        %963 = vmatprep.subr.bf16.mxu0 0
        %964 = vmatpush1.bf16.xpose.msra.mxu0 0
        %965 = vmatprep.subr.bf16.mxu0 0
        %966 = vmatpush1.bf16.xpose.msra.mxu0 0
        %967 = vmatprep.subr.bf16.mxu0 0
        %968 = vmatpush1.bf16.xpose.msra.mxu0 0
        %969 = vmatprep.subr.bf16.mxu0 0
        %970 = vmatpush1.bf16.xpose.msra.mxu0 0
        %971 = vmatprep.subr.bf16.mxu0 0
        %972 = vmatpush1.bf16.xpose.msra.mxu0 0
        %973 = vmatprep.subr.bf16.mxu0 0
        %974 = vmatpush1.bf16.xpose.msra.mxu0 0
        %975 = vmatprep.subr.bf16.mxu0 0
        %976 = vmatpush1.bf16.xpose.msra.mxu0 0
        %977 = vmatprep.subr.bf16.mxu0 0
        %978 = vmatpush1.bf16.xpose.msra.mxu0 0
        %979 = vmatprep.subr.bf16.mxu0 0
        %980 = vmatpush1.bf16.xpose.msra.mxu0 0
        %981 = vmatprep.subr.bf16.mxu0 0
        %982 = vmatpush1.bf16.xpose.msra.mxu0 0
        %983 = vmatprep.subr.bf16.mxu0 0
        %984 = vmatpush1.bf16.xpose.msra.mxu0 0
        %985 = vmatprep.mubr.bf16.mxu0 0
        %986 = vmatmul.mubr.bf16.gmra.mrb[0].mxu0 %v948
        %v987 = vpop.f32.mrb[0].mxu0
        %v988 = vadd.f32 0.0, %v987
        %v989 = vpop.f32.mrb[0].mxu0
        %v990 = vpop.f32.mrb[0].mxu0
        %v991 = vadd.f32 0.0, %v990
        %v992 = vpop.f32.mrb[0].mxu0
        %993 = vdwg.mxu0
        %v994 = vsel %vm946, %v988, -inf
        %995 = vmax.xlane.f32.xlu0 %v994
        %v996 = vpop.xlane.xlu0 %995
        %v997 = vsel %vm946, %v991, -inf
        %998 = vmax.xlane.f32.xlu0 %v997
        %v999 = vpop.xlane.xlu0 %998
        %v1000 = vsub.f32 %v988, %v996
        %v1001 = vsub.f32 %v991, %v999
        %v1002 = vmul.f32 %v1000, 1.442695
        %v1003 = vpow.pop %v1002
        %v1004 = vmul.f32 %v1001, 1.442695
        %v1005 = vpow.pop %v1004
        %v1006 = vsel %vm946, %v1003, 0.0
        %1007 = vadd.xlane.f32.xlu0 %v1006
        %v1008 = vpop.xlane.xlu0 %1007
        %v1009 = vsel %vm946, %v1005, 0.0
        %1010 = vadd.xlane.f32.xlu0 %v1009
        %v1011 = vpop.xlane.xlu0 %1010
        %v1012 = vrcp.pop %v1008
        %v1013 = vmul.f32 %v1003, %v1012
        %v1014 = vrcp.pop %v1011
        %v1015 = vmul.f32 %v1005, %v1014
        %v1016 = vpack.c.bf16 %v1015, %v1013
        %v1018 = vsel %vm946, %v1016, 0
        %1020 = vmatprep.subr.bf16.mxu0 0
        %1021 = vmatpush1.bf16.msra.mxu0 %v942
        %1022 = vmatprep.subr.bf16.mxu0 0
        %1023 = vmatpush1.bf16.msra.mxu0 0
        %1024 = vmatprep.subr.bf16.mxu0 0
        %1025 = vmatpush1.bf16.msra.mxu0 0
        %1026 = vmatprep.subr.bf16.mxu0 0
        %1027 = vmatpush1.bf16.msra.mxu0 0
        %1028 = vmatprep.subr.bf16.mxu0 0
        %1029 = vmatpush1.bf16.msra.mxu0 0
        %1030 = vmatprep.subr.bf16.mxu0 0
        %1031 = vmatpush1.bf16.msra.mxu0 0
        %1032 = vmatprep.subr.bf16.mxu0 0
        %1033 = vmatpush1.bf16.msra.mxu0 0
        %1034 = vmatprep.subr.bf16.mxu0 0
        %1035 = vmatpush1.bf16.msra.mxu0 0
        %1036 = vmatprep.subr.bf16.mxu0 0
        %1037 = vmatpush1.bf16.msra.mxu0 0
        %1038 = vmatprep.subr.bf16.mxu0 0
        %1039 = vmatpush1.bf16.msra.mxu0 0
        %1040 = vmatprep.subr.bf16.mxu0 0
        %1041 = vmatpush1.bf16.msra.mxu0 0
        %1042 = vmatprep.subr.bf16.mxu0 0
        %1043 = vmatpush1.bf16.msra.mxu0 0
        %1044 = vmatprep.subr.bf16.mxu0 0
        %1045 = vmatpush1.bf16.msra.mxu0 0
        %1046 = vmatprep.subr.bf16.mxu0 0
        %1047 = vmatpush1.bf16.msra.mxu0 0
        %1048 = vmatprep.subr.bf16.mxu0 0
        %1049 = vmatpush1.bf16.msra.mxu0 0
        %1050 = vmatprep.subr.bf16.mxu0 0
        %1051 = vmatpush1.bf16.msra.mxu0 0
        %1052 = vmatprep.mubr.bf16.mxu0 0
        %1053 = vmatmul.mubr.bf16.gmra.mrb[0].mxu0 %v1018
        %v1054 = vpop.f32.mrb[0].mxu0
        %v1055 = vadd.f32 0.0, %v1054
        %v1056 = vpop.f32.mrb[0].mxu0
        %v1057 = vpop.f32.mrb[0].mxu0
        %v1058 = vadd.f32 0.0, %v1057
        %v1059 = vpop.f32.mrb[0].mxu0
        %1060 = vdwg.mxu0
        %1062 = vrot.lane.b32.xlu0 %v940, 112
        %v1063 = vpop.permute.xlu0 %1062
        %1064 = vrot.lane.b32.xlu0 %v941, 48
        %v1065 = vpop.permute.xlu0 %1064
        %v1067 = vsel %vm946, %v1063, 0
        %v1070 = vsel %vm946, %v1065, 0
        %1072 = vmatprep.subr.bf16.mxu0 0
        %1073 = vmatpush1.bf16.xpose.msra.mxu0 %v1070
        %1074 = vmatprep.subr.bf16.mxu0 0
        %1075 = vmatpush1.bf16.xpose.msra.mxu0 0
        %1076 = vmatprep.subr.bf16.mxu0 0
        %1077 = vmatpush1.bf16.xpose.msra.mxu0 0
        %1078 = vmatprep.subr.bf16.mxu0 0
        %1079 = vmatpush1.bf16.xpose.msra.mxu0 0
        %1080 = vmatprep.subr.bf16.mxu0 0
        %1081 = vmatpush1.bf16.xpose.msra.mxu0 0
        %1082 = vmatprep.subr.bf16.mxu0 0
        %1083 = vmatpush1.bf16.xpose.msra.mxu0 0
        %1084 = vmatprep.subr.bf16.mxu0 0
        %1085 = vmatpush1.bf16.xpose.msra.mxu0 0
        %1086 = vmatprep.subr.bf16.mxu0 0
        %1087 = vmatpush1.bf16.xpose.msra.mxu0 0
        %1088 = vmatprep.subr.bf16.mxu0 0
        %1089 = vmatpush1.bf16.xpose.msra.mxu0 0
        %1090 = vmatprep.subr.bf16.mxu0 0
        %1091 = vmatpush1.bf16.xpose.msra.mxu0 0
        %1092 = vmatprep.subr.bf16.mxu0 0
        %1093 = vmatpush1.bf16.xpose.msra.mxu0 0
        %1094 = vmatprep.subr.bf16.mxu0 0
        %1095 = vmatpush1.bf16.xpose.msra.mxu0 0
        %1096 = vmatprep.subr.bf16.mxu0 0
        %1097 = vmatpush1.bf16.xpose.msra.mxu0 0
        %1098 = vmatprep.subr.bf16.mxu0 0
        %1099 = vmatpush1.bf16.xpose.msra.mxu0 0
        %1100 = vmatprep.subr.bf16.mxu0 0
        %1101 = vmatpush1.bf16.xpose.msra.mxu0 0
        %1102 = vmatprep.subr.bf16.mxu0 0
        %1103 = vmatpush1.bf16.xpose.msra.mxu0 0
        %1104 = vmatprep.mubr.bf16.mxu0 0
        %1105 = vmatmul.mubr.bf16.gmra.mrb[0].mxu0 %v1067
        %v1106 = vpop.f32.mrb[0].mxu0
        %v1107 = vadd.f32 0.0, %v1106
        %v1108 = vpop.f32.mrb[0].mxu0
        %v1109 = vpop.f32.mrb[0].mxu0
        %v1110 = vadd.f32 0.0, %v1109
        %v1111 = vpop.f32.mrb[0].mxu0
        %1112 = vdwg.mxu0
        %v1113 = vsel %vm946, %v1107, -inf
        %1114 = vmax.xlane.f32.xlu0 %v1113
        %v1115 = vpop.xlane.xlu0 %1114
        %v1116 = vsel %vm946, %v1110, -inf
        %1117 = vmax.xlane.f32.xlu0 %v1116
        %v1118 = vpop.xlane.xlu0 %1117
        %v1119 = vsub.f32 %v1107, %v1115
        %v1120 = vsub.f32 %v1110, %v1118
        %v1121 = vmul.f32 %v1119, 1.442695
        %v1122 = vpow.pop %v1121
        %v1123 = vmul.f32 %v1120, 1.442695
        %v1124 = vpow.pop %v1123
        %v1125 = vsel %vm946, %v1122, 0.0
        %1126 = vadd.xlane.f32.xlu0 %v1125
        %v1127 = vpop.xlane.xlu0 %1126
        %v1128 = vsel %vm946, %v1124, 0.0
        %1129 = vadd.xlane.f32.xlu0 %v1128
        %v1130 = vpop.xlane.xlu0 %1129
        %v1131 = vrcp.pop %v1127
        %v1132 = vmul.f32 %v1122, %v1131
        %v1133 = vrcp.pop %v1130
        %v1134 = vmul.f32 %v1124, %v1133
        %v1135 = vpack.c.bf16 %v1134, %v1132
        %1137 = vrot.lane.b32.xlu0 %v942, 112
        %v1138 = vpop.permute.xlu0 %1137
        %v1141 = vsel %vm946, %v1135, 0
        %1143 = vmatprep.subr.bf16.mxu0 0
        %1144 = vmatpush1.bf16.msra.mxu0 %v1138
        %1145 = vmatprep.subr.bf16.mxu0 0
        %1146 = vmatpush1.bf16.msra.mxu0 0
        %1147 = vmatprep.subr.bf16.mxu0 0
        %1148 = vmatpush1.bf16.msra.mxu0 0
        %1149 = vmatprep.subr.bf16.mxu0 0
        %1150 = vmatpush1.bf16.msra.mxu0 0
        %1151 = vmatprep.subr.bf16.mxu0 0
        %1152 = vmatpush1.bf16.msra.mxu0 0
        %1153 = vmatprep.subr.bf16.mxu0 0
        %1154 = vmatpush1.bf16.msra.mxu0 0
        %1155 = vmatprep.subr.bf16.mxu0 0
        %1156 = vmatpush1.bf16.msra.mxu0 0
        %1157 = vmatprep.subr.bf16.mxu0 0
        %1158 = vmatpush1.bf16.msra.mxu0 0
        %1159 = vmatprep.subr.bf16.mxu0 0
        %1160 = vmatpush1.bf16.msra.mxu0 0
        %1161 = vmatprep.subr.bf16.mxu0 0
        %1162 = vmatpush1.bf16.msra.mxu0 0
        %1163 = vmatprep.subr.bf16.mxu0 0
        %1164 = vmatpush1.bf16.msra.mxu0 0
        %1165 = vmatprep.subr.bf16.mxu0 0
        %1166 = vmatpush1.bf16.msra.mxu0 0
        %1167 = vmatprep.subr.bf16.mxu0 0
        %1168 = vmatpush1.bf16.msra.mxu0 0
        %1169 = vmatprep.subr.bf16.mxu0 0
        %1170 = vmatpush1.bf16.msra.mxu0 0
        %1171 = vmatprep.subr.bf16.mxu0 0
        %1172 = vmatpush1.bf16.msra.mxu0 0
        %1173 = vmatprep.subr.bf16.mxu0 0
        %1174 = vmatpush1.bf16.msra.mxu0 0
        %1175 = vmatprep.mubr.bf16.mxu0 0
        %1176 = vmatmul.mubr.bf16.gmra.mrb[0].mxu0 %v1141
        %v1177 = vpop.f32.mrb[0].mxu0
        %v1178 = vadd.f32 0.0, %v1177
        %v1179 = vpop.f32.mrb[0].mxu0
        %v1180 = vpop.f32.mrb[0].mxu0
        %v1181 = vadd.f32 0.0, %v1180
        %v1182 = vpop.f32.mrb[0].mxu0
        %1183 = vdwg.mxu0
        %1184 = vrot.lane.b32.xlu0 %v940, 96
        %v1185 = vpop.permute.xlu0 %1184
        %1186 = vrot.lane.b32.xlu0 %v941, 32
        %v1187 = vpop.permute.xlu0 %1186
        %v1189 = vsel %vm946, %v1185, 0
        %v1192 = vsel %vm946, %v1187, 0
        %1194 = vmatprep.subr.bf16.mxu0 0
        %1195 = vmatpush1.bf16.xpose.msra.mxu0 %v1192
        %1196 = vmatprep.subr.bf16.mxu0 0
        %1197 = vmatpush1.bf16.xpose.msra.mxu0 0
        %1198 = vmatprep.subr.bf16.mxu0 0
        %1199 = vmatpush1.bf16.xpose.msra.mxu0 0
        %1200 = vmatprep.subr.bf16.mxu0 0
        %1201 = vmatpush1.bf16.xpose.msra.mxu0 0
        %1202 = vmatprep.subr.bf16.mxu0 0
        %1203 = vmatpush1.bf16.xpose.msra.mxu0 0
        %1204 = vmatprep.subr.bf16.mxu0 0
        %1205 = vmatpush1.bf16.xpose.msra.mxu0 0
        %1206 = vmatprep.subr.bf16.mxu0 0
        %1207 = vmatpush1.bf16.xpose.msra.mxu0 0
        %1208 = vmatprep.subr.bf16.mxu0 0
        %1209 = vmatpush1.bf16.xpose.msra.mxu0 0
        %1210 = vmatprep.subr.bf16.mxu0 0
        %1211 = vmatpush1.bf16.xpose.msra.mxu0 0
        %1212 = vmatprep.subr.bf16.mxu0 0
        %1213 = vmatpush1.bf16.xpose.msra.mxu0 0
        %1214 = vmatprep.subr.bf16.mxu0 0
        %1215 = vmatpush1.bf16.xpose.msra.mxu0 0
        %1216 = vmatprep.subr.bf16.mxu0 0
        %1217 = vmatpush1.bf16.xpose.msra.mxu0 0
        %1218 = vmatprep.subr.bf16.mxu0 0
        %1219 = vmatpush1.bf16.xpose.msra.mxu0 0
        %1220 = vmatprep.subr.bf16.mxu0 0
        %1221 = vmatpush1.bf16.xpose.msra.mxu0 0
        %1222 = vmatprep.subr.bf16.mxu0 0
        %1223 = vmatpush1.bf16.xpose.msra.mxu0 0
        %1224 = vmatprep.subr.bf16.mxu0 0
        %1225 = vmatpush1.bf16.xpose.msra.mxu0 0
        %1226 = vmatprep.mubr.bf16.mxu0 0
        %1227 = vmatmul.mubr.bf16.gmra.mrb[0].mxu0 %v1189
        %v1228 = vpop.f32.mrb[0].mxu0
        %v1229 = vadd.f32 0.0, %v1228
        %v1230 = vpop.f32.mrb[0].mxu0
        %v1231 = vpop.f32.mrb[0].mxu0
        %v1232 = vadd.f32 0.0, %v1231
        %v1233 = vpop.f32.mrb[0].mxu0
        %1234 = vdwg.mxu0
        %v1235 = vsel %vm946, %v1229, -inf
        %1236 = vmax.xlane.f32.xlu0 %v1235
        %v1237 = vpop.xlane.xlu0 %1236
        %v1238 = vsel %vm946, %v1232, -inf
        %1239 = vmax.xlane.f32.xlu0 %v1238
        %v1240 = vpop.xlane.xlu0 %1239
        %v1241 = vsub.f32 %v1229, %v1237
        %v1242 = vsub.f32 %v1232, %v1240
        %v1243 = vmul.f32 %v1241, 1.442695
        %v1244 = vpow.pop %v1243
        %v1245 = vmul.f32 %v1242, 1.442695
        %v1246 = vpow.pop %v1245
        %v1247 = vsel %vm946, %v1244, 0.0
        %1248 = vadd.xlane.f32.xlu0 %v1247
        %v1249 = vpop.xlane.xlu0 %1248
        %v1250 = vsel %vm946, %v1246, 0.0
        %1251 = vadd.xlane.f32.xlu0 %v1250
        %v1252 = vpop.xlane.xlu0 %1251
        %v1253 = vrcp.pop %v1249
        %v1254 = vmul.f32 %v1244, %v1253
        %v1255 = vrcp.pop %v1252
        %v1256 = vmul.f32 %v1246, %v1255
        %v1257 = vpack.c.bf16 %v1256, %v1254
        %1258 = vrot.lane.b32.xlu0 %v942, 96
        %v1259 = vpop.permute.xlu0 %1258
        %v1262 = vsel %vm946, %v1257, 0
        %1264 = vmatprep.subr.bf16.mxu0 0
        %1265 = vmatpush1.bf16.msra.mxu0 %v1259
        %1266 = vmatprep.subr.bf16.mxu0 0
        %1267 = vmatpush1.bf16.msra.mxu0 0
        %1268 = vmatprep.subr.bf16.mxu0 0
        %1269 = vmatpush1.bf16.msra.mxu0 0
        %1270 = vmatprep.subr.bf16.mxu0 0
        %1271 = vmatpush1.bf16.msra.mxu0 0
        %1272 = vmatprep.subr.bf16.mxu0 0
        %1273 = vmatpush1.bf16.msra.mxu0 0
        %1274 = vmatprep.subr.bf16.mxu0 0
        %1275 = vmatpush1.bf16.msra.mxu0 0
        %1276 = vmatprep.subr.bf16.mxu0 0
        %1277 = vmatpush1.bf16.msra.mxu0 0
        %1278 = vmatprep.subr.bf16.mxu0 0
        %1279 = vmatpush1.bf16.msra.mxu0 0
        %1280 = vmatprep.subr.bf16.mxu0 0
        %1281 = vmatpush1.bf16.msra.mxu0 0
        %1282 = vmatprep.subr.bf16.mxu0 0
        %1283 = vmatpush1.bf16.msra.mxu0 0
        %1284 = vmatprep.subr.bf16.mxu0 0
        %1285 = vmatpush1.bf16.msra.mxu0 0
        %1286 = vmatprep.subr.bf16.mxu0 0
        %1287 = vmatpush1.bf16.msra.mxu0 0
        %1288 = vmatprep.subr.bf16.mxu0 0
        %1289 = vmatpush1.bf16.msra.mxu0 0
        %1290 = vmatprep.subr.bf16.mxu0 0
        %1291 = vmatpush1.bf16.msra.mxu0 0
        %1292 = vmatprep.subr.bf16.mxu0 0
        %1293 = vmatpush1.bf16.msra.mxu0 0
        %1294 = vmatprep.subr.bf16.mxu0 0
        %1295 = vmatpush1.bf16.msra.mxu0 0
        %1296 = vmatprep.mubr.bf16.mxu0 0
        %1297 = vmatmul.mubr.bf16.gmra.mrb[0].mxu0 %v1262
        %v1298 = vpop.f32.mrb[0].mxu0
        %v1299 = vadd.f32 0.0, %v1298
        %v1300 = vpop.f32.mrb[0].mxu0
        %v1301 = vpop.f32.mrb[0].mxu0
        %v1302 = vadd.f32 0.0, %v1301
        %v1303 = vpop.f32.mrb[0].mxu0
        %1304 = vdwg.mxu0
        %1305 = vrot.lane.b32.xlu0 %v940, 80
        %v1306 = vpop.permute.xlu0 %1305
        %1307 = vrot.lane.b32.xlu0 %v941, 16
        %v1308 = vpop.permute.xlu0 %1307
        %v1310 = vsel %vm946, %v1306, 0
        %v1313 = vsel %vm946, %v1308, 0
        %1315 = vmatprep.subr.bf16.mxu0 0
        %1316 = vmatpush1.bf16.xpose.msra.mxu0 %v1313
        %1317 = vmatprep.subr.bf16.mxu0 0
        %1318 = vmatpush1.bf16.xpose.msra.mxu0 0
        %1319 = vmatprep.subr.bf16.mxu0 0
        %1320 = vmatpush1.bf16.xpose.msra.mxu0 0
        %1321 = vmatprep.subr.bf16.mxu0 0
        %1322 = vmatpush1.bf16.xpose.msra.mxu0 0
        %1323 = vmatprep.subr.bf16.mxu0 0
        %1324 = vmatpush1.bf16.xpose.msra.mxu0 0
        %1325 = vmatprep.subr.bf16.mxu0 0
        %1326 = vmatpush1.bf16.xpose.msra.mxu0 0
        %1327 = vmatprep.subr.bf16.mxu0 0
        %1328 = vmatpush1.bf16.xpose.msra.mxu0 0
        %1329 = vmatprep.subr.bf16.mxu0 0
        %1330 = vmatpush1.bf16.xpose.msra.mxu0 0
        %1331 = vmatprep.subr.bf16.mxu0 0
        %1332 = vmatpush1.bf16.xpose.msra.mxu0 0
        %1333 = vmatprep.subr.bf16.mxu0 0
        %1334 = vmatpush1.bf16.xpose.msra.mxu0 0
        %1335 = vmatprep.subr.bf16.mxu0 0
        %1336 = vmatpush1.bf16.xpose.msra.mxu0 0
        %1337 = vmatprep.subr.bf16.mxu0 0
        %1338 = vmatpush1.bf16.xpose.msra.mxu0 0
        %1339 = vmatprep.subr.bf16.mxu0 0
        %1340 = vmatpush1.bf16.xpose.msra.mxu0 0
        %1341 = vmatprep.subr.bf16.mxu0 0
        %1342 = vmatpush1.bf16.xpose.msra.mxu0 0
        %1343 = vmatprep.subr.bf16.mxu0 0
        %1344 = vmatpush1.bf16.xpose.msra.mxu0 0
        %1345 = vmatprep.subr.bf16.mxu0 0
        %1346 = vmatpush1.bf16.xpose.msra.mxu0 0
        %1347 = vmatprep.mubr.bf16.mxu0 0
        %1348 = vmatmul.mubr.bf16.gmra.mrb[0].mxu0 %v1310
        %v1349 = vpop.f32.mrb[0].mxu0
        %v1350 = vadd.f32 0.0, %v1349
        %v1351 = vpop.f32.mrb[0].mxu0
        %v1352 = vpop.f32.mrb[0].mxu0
        %v1353 = vadd.f32 0.0, %v1352
        %v1354 = vpop.f32.mrb[0].mxu0
        %1355 = vdwg.mxu0
        %v1356 = vsel %vm946, %v1350, -inf
        %1357 = vmax.xlane.f32.xlu0 %v1356
        %v1358 = vpop.xlane.xlu0 %1357
        %v1359 = vsel %vm946, %v1353, -inf
        %1360 = vmax.xlane.f32.xlu0 %v1359
        %v1361 = vpop.xlane.xlu0 %1360
        %v1362 = vsub.f32 %v1350, %v1358
        %v1363 = vsub.f32 %v1353, %v1361
        %v1364 = vmul.f32 %v1362, 1.442695
        %v1365 = vpow.pop %v1364
        %v1366 = vmul.f32 %v1363, 1.442695
        %v1367 = vpow.pop %v1366
        %v1368 = vsel %vm946, %v1365, 0.0
        %1369 = vadd.xlane.f32.xlu0 %v1368
        %v1370 = vpop.xlane.xlu0 %1369
        %v1371 = vsel %vm946, %v1367, 0.0
        %1372 = vadd.xlane.f32.xlu0 %v1371
        %v1373 = vpop.xlane.xlu0 %1372
        %v1374 = vrcp.pop %v1370
        %v1375 = vmul.f32 %v1365, %v1374
        %v1376 = vrcp.pop %v1373
        %v1377 = vmul.f32 %v1367, %v1376
        %v1378 = vpack.c.bf16 %v1377, %v1375
        %1379 = vrot.lane.b32.xlu0 %v942, 80
        %v1380 = vpop.permute.xlu0 %1379
        %v1383 = vsel %vm946, %v1378, 0
        %1385 = vmatprep.subr.bf16.mxu0 0
        %1386 = vmatpush1.bf16.msra.mxu0 %v1380
        %1387 = vmatprep.subr.bf16.mxu0 0
        %1388 = vmatpush1.bf16.msra.mxu0 0
        %1389 = vmatprep.subr.bf16.mxu0 0
        %1390 = vmatpush1.bf16.msra.mxu0 0
        %1391 = vmatprep.subr.bf16.mxu0 0
        %1392 = vmatpush1.bf16.msra.mxu0 0
        %1393 = vmatprep.subr.bf16.mxu0 0
        %1394 = vmatpush1.bf16.msra.mxu0 0
        %1395 = vmatprep.subr.bf16.mxu0 0
        %1396 = vmatpush1.bf16.msra.mxu0 0
        %1397 = vmatprep.subr.bf16.mxu0 0
        %1398 = vmatpush1.bf16.msra.mxu0 0
        %1399 = vmatprep.subr.bf16.mxu0 0
        %1400 = vmatpush1.bf16.msra.mxu0 0
        %1401 = vmatprep.subr.bf16.mxu0 0
        %1402 = vmatpush1.bf16.msra.mxu0 0
        %1403 = vmatprep.subr.bf16.mxu0 0
        %1404 = vmatpush1.bf16.msra.mxu0 0
        %1405 = vmatprep.subr.bf16.mxu0 0
        %1406 = vmatpush1.bf16.msra.mxu0 0
        %1407 = vmatprep.subr.bf16.mxu0 0
        %1408 = vmatpush1.bf16.msra.mxu0 0
        %1409 = vmatprep.subr.bf16.mxu0 0
        %1410 = vmatpush1.bf16.msra.mxu0 0
        %1411 = vmatprep.subr.bf16.mxu0 0
        %1412 = vmatpush1.bf16.msra.mxu0 0
        %1413 = vmatprep.subr.bf16.mxu0 0
        %1414 = vmatpush1.bf16.msra.mxu0 0
        %1415 = vmatprep.subr.bf16.mxu0 0
        %1416 = vmatpush1.bf16.msra.mxu0 0
        %1417 = vmatprep.mubr.bf16.mxu0 0
        %1418 = vmatmul.mubr.bf16.gmra.mrb[0].mxu0 %v1383
        %v1419 = vpop.f32.mrb[0].mxu0
        %v1420 = vadd.f32 0.0, %v1419
        %v1421 = vpop.f32.mrb[0].mxu0
        %v1422 = vpop.f32.mrb[0].mxu0
        %v1423 = vadd.f32 0.0, %v1422
        %v1424 = vpop.f32.mrb[0].mxu0
        %1425 = vdwg.mxu0
        %1428 = vrot.lane.b32.xlu0 %v1178, 16
        %v1429 = vpop.permute.xlu0 %1428
        %1430 = vrot.lane.b32.xlu0 %v1181, 16
        %v1431 = vpop.permute.xlu0 %1430
        %1436 = vrot.lane.b32.xlu0 %v1299, 32
        %v1437 = vpop.permute.xlu0 %1436
        %1438 = vrot.lane.b32.xlu0 %v1302, 32
        %v1439 = vpop.permute.xlu0 %1438
        %1444 = vrot.lane.b32.xlu0 %v1420, 48
        %v1445 = vpop.permute.xlu0 %1444
        %1446 = vrot.lane.b32.xlu0 %v1423, 48
        %v1447 = vpop.permute.xlu0 %1446
        %v1450 = vsel %vm946, %v1055, %v1429
        %v1451 = vsel %vm946, %v1058, %v1431
        %v1452 = vsel %vm723, %v1450, %v1437
        %v1453 = vsel %vm723, %v1451, %v1439
        %vm1454 = vcmask 392192
        %v1455 = vsel %vm1454, %v1452, %v1445
        %v1456 = vsel %vm1454, %v1453, %v1447
        %v1457 = vld [vmem:[%s10] sm:$0xf]
        %v1458 = vld [vmem:[%s10 + $0x4] sm:$0xf]
        %v1459 = vld [vmem:[%s10 + $0x8] sm:$0xf]
        %v1460 = vld [vmem:[%s10 + $0xc] sm:$0xf]
        %v1461 = vld [vmem:[%s10 + $0x10] sm:$0xf]
        %v1462 = vld [vmem:[%s10 + $0x14] sm:$0xf]
        %v1463 = vld [vmem:[%s10 + $0x18] sm:$0xf]
        %v1464 = vld [vmem:[%s10 + $0x1c] sm:$0xf]
        %v1465 = vpack.c.bf16 %v1456, %v1455
        %v1466 = vld [vmem:[%s11] sm:$0x1]
        %v1468 = vlaneseq
        %v1469 = vshrl.u32 %v1468, 7
        %v1470 = vsub.s32 0, %v1469
        %v1471 = vrot.slane %v1466, %v1470
        %v1481 = vunpack.c.l.b16 %v1457
        %v1482 = vunpack.c.l.b16 %v1458
        %v1483 = vunpack.c.l.b16 %v1459
        %v1484 = vunpack.c.l.b16 %v1460
        %v1485 = vunpack.c.l.b16 %v1461
        %v1486 = vunpack.c.l.b16 %v1462
        %v1487 = vunpack.c.l.b16 %v1463
        %v1488 = vunpack.c.l.b16 %v1464
        %v1489 = vpack.c.b16 %v1482, %v1481
        %v1490 = vpack.c.b16 %v1484, %v1483
        %v1491 = vpack.c.b16 %v1486, %v1485
        %v1492 = vpack.c.b16 %v1488, %v1487
        %v1498 = vsel %vm655, %v1465, 0
        %1500 = vmatprep.subr.bf16.mxu0 0
        %1501 = vmatpush1.bf16.msra.mxu0 %v1489
        %1502 = vmatprep.subr.bf16.mxu0 0
        %1503 = vmatpush1.bf16.msra.mxu0 %v1490
        %1504 = vmatprep.subr.bf16.mxu0 0
        %1505 = vmatpush1.bf16.msra.mxu0 %v1491
        %1506 = vmatprep.subr.bf16.mxu0 0
        %1507 = vmatpush1.bf16.msra.mxu0 %v1492
        %1508 = vmatprep.subr.bf16.mxu0 0
        %1509 = vmatpush1.bf16.msra.mxu0 0
        %1510 = vmatprep.subr.bf16.mxu0 0
        %1511 = vmatpush1.bf16.msra.mxu0 0
        %1512 = vmatprep.subr.bf16.mxu0 0
        %1513 = vmatpush1.bf16.msra.mxu0 0
        %1514 = vmatprep.subr.bf16.mxu0 0
        %1515 = vmatpush1.bf16.msra.mxu0 0
        %1516 = vmatprep.subr.bf16.mxu0 0
        %1517 = vmatpush1.bf16.msra.mxu0 0
        %1518 = vmatprep.subr.bf16.mxu0 0
        %1519 = vmatpush1.bf16.msra.mxu0 0
        %1520 = vmatprep.subr.bf16.mxu0 0
        %1521 = vmatpush1.bf16.msra.mxu0 0
        %1522 = vmatprep.subr.bf16.mxu0 0
        %1523 = vmatpush1.bf16.msra.mxu0 0
        %1524 = vmatprep.subr.bf16.mxu0 0
        %1525 = vmatpush1.bf16.msra.mxu0 0
        %1526 = vmatprep.subr.bf16.mxu0 0
        %1527 = vmatpush1.bf16.msra.mxu0 0
        %1528 = vmatprep.subr.bf16.mxu0 0
        %1529 = vmatpush1.bf16.msra.mxu0 0
        %1530 = vmatprep.subr.bf16.mxu0 0
        %1531 = vmatpush1.bf16.msra.mxu0 0
        %1532 = vmatprep.mubr.bf16.mxu0 0
        %1533 = vmatmul.mubr.bf16.gmra.mrb[0].mxu0 %v1498
        %v1534 = vpop.f32.mrb[0].mxu0
        %v1535 = vadd.f32 %v1471, %v1534
        %v1536 = vpop.f32.mrb[0].mxu0
        %v1537 = vpop.f32.mrb[0].mxu0
        %v1538 = vadd.f32 %v1471, %v1537
        %v1539 = vpop.f32.mrb[0].mxu0
        %1540 = vdwg.mxu0
        %v1541 = vld [vmem:[%s12] sm:$0x1]
        %v1543 = vlaneseq
        %v1544 = vshrl.u32 %v1543, 7
        %v1545 = vsub.s32 0, %v1544
        %v1546 = vrot.slane %v1541, %v1545
        %v1548 = vmul.f32 %v1546, %v1535
        %v1549 = vmul.f32 %v1546, %v1538
        %v1550 = vadd.f32 %v649, %v1548
        %v1551 = vadd.f32 %v650, %v1549
        %v1552 = vld [vmem:[%s13] sm:$0x1]
        %v1553 = vld [vmem:[%s14] sm:$0x1]
        %v1554 = vsel %vm655, %v1550, 0.0
        %1555 = vadd.xlane.f32.xlu0 %v1554
        %v1556 = vpop.xlane.xlu0 %1555
        %v1557 = vsel %vm655, %v1551, 0.0
        %1558 = vadd.xlane.f32.xlu0 %v1557
        %v1559 = vpop.xlane.xlu0 %1558
        %v1560 = vmul.f32 %v1556, %v662
        %v1561 = vmul.f32 %v1559, %v662
        %v1562 = vsub.f32 %v1550, %v1560
        %v1563 = vsub.f32 %v1551, %v1561
        %v1564 = vmul.f32 %v1562, %v1562
        %v1565 = vmul.f32 %v1563, %v1563
        %v1566 = vsel %vm655, %v1564, 0.0
        %1567 = vadd.xlane.f32.xlu0 %v1566
        %v1568 = vpop.xlane.xlu0 %1567
        %v1569 = vsel %vm655, %v1565, 0.0
        %1570 = vadd.xlane.f32.xlu0 %v1569
        %v1571 = vpop.xlane.xlu0 %1570
        %v1572 = vmul.f32 %v1568, %v662
        %v1573 = vmul.f32 %v1571, %v662
        %v1574 = vadd.f32 %v1572, 1e-05
        %v1575 = vadd.f32 %v1573, 1e-05
        %v1576 = vrsqrt.pop %v1574
        %v1577 = vrsqrt.pop %v1575
        %v1578 = vmul.f32 %v1562, %v1576
        %v1579 = vmul.f32 %v1563, %v1577
        %v1581 = vlaneseq
        %v1582 = vshrl.u32 %v1581, 7
        %v1583 = vsub.s32 0, %v1582
        %v1584 = vrot.slane %v1552, %v1583
        %v1586 = vmul.f32 %v1578, %v1584
        %v1587 = vmul.f32 %v1579, %v1584
        %v1589 = vlaneseq
        %v1590 = vshrl.u32 %v1589, 7
        %v1591 = vsub.s32 0, %v1590
        %v1592 = vrot.slane %v1553, %v1591
        %v1594 = vadd.f32 %v1586, %v1592
        %v1595 = vadd.f32 %v1587, %v1592
        %v1596 = vpack.c.bf16 %v1595, %v1594
        %v1597 = vld [vmem:[%s15] sm:$0xff]
        %v1598 = vld [vmem:[%s15 + $0x8] sm:$0xff]
        %v1599 = vld [vmem:[%s15 + $0x60] sm:$0xff]
        %v1600 = vld [vmem:[%s15 + $0x68] sm:$0xff]
        %v1601 = vld [vmem:[%s15 + $0xc0] sm:$0xff]
        %v1602 = vld [vmem:[%s15 + $0xc8] sm:$0xff]
        %v1603 = vld [vmem:[%s15 + $0x120] sm:$0xff]
        %v1604 = vld [vmem:[%s15 + $0x128] sm:$0xff]
        %v1605 = vld [vmem:[%s15 + $0x180] sm:$0xff]
        %v1606 = vld [vmem:[%s15 + $0x188] sm:$0xff]
        %v1607 = vld [vmem:[%s15 + $0x1e0] sm:$0xff]
        %v1608 = vld [vmem:[%s15 + $0x1e8] sm:$0xff]
        %v1609 = vld [vmem:[%s15 + $0x240] sm:$0xff]
        %v1610 = vld [vmem:[%s15 + $0x248] sm:$0xff]
        %v1611 = vld [vmem:[%s15 + $0x2a0] sm:$0xff]
        %v1612 = vld [vmem:[%s15 + $0x2a8] sm:$0xff]
        %v1613 = vld [vmem:[%s16] sm:$0xf]
        %v1615 = vlaneseq
        %v1616 = vshrl.u32 %v1615, 7
        %v1617 = vsub.s32 0, %v1616
        %v1618 = vrot.slane %v1613, %v1617
        %v1619 = vlaneseq
        %v1620 = vshrl.u32 %v1619, 7
        %v1621 = vsub.s32 1, %v1620
        %v1622 = vrot.slane %v1613, %v1621
        %v1623 = vlaneseq
        %v1624 = vshrl.u32 %v1623, 7
        %v1625 = vsub.s32 2, %v1624
        %v1626 = vrot.slane %v1613, %v1625
        %v1627 = vlaneseq
        %v1628 = vshrl.u32 %v1627, 7
        %v1629 = vsub.s32 3, %v1628
        %v1630 = vrot.slane %v1613, %v1629
        %v1651 = vunpack.c.l.b16 %v1597
        %v1652 = vunpack.c.h.b16 %v1597
        %v1653 = vunpack.c.l.b16 %v1598
        %v1654 = vunpack.c.h.b16 %v1598
        %v1655 = vunpack.c.l.b16 %v1599
        %v1656 = vunpack.c.h.b16 %v1599
        %v1657 = vunpack.c.l.b16 %v1600
        %v1658 = vunpack.c.h.b16 %v1600
        %v1659 = vunpack.c.l.b16 %v1601
        %v1660 = vunpack.c.h.b16 %v1601
        %v1661 = vunpack.c.l.b16 %v1602
        %v1662 = vunpack.c.h.b16 %v1602
        %v1663 = vunpack.c.l.b16 %v1603
        %v1664 = vunpack.c.h.b16 %v1603
        %v1665 = vunpack.c.l.b16 %v1604
        %v1666 = vunpack.c.h.b16 %v1604
        %v1667 = vunpack.c.l.b16 %v1605
        %v1668 = vunpack.c.h.b16 %v1605
        %v1669 = vunpack.c.l.b16 %v1606
        %v1670 = vunpack.c.h.b16 %v1606
        %v1671 = vunpack.c.l.b16 %v1607
        %v1672 = vunpack.c.h.b16 %v1607
        %v1673 = vunpack.c.l.b16 %v1608
        %v1674 = vunpack.c.h.b16 %v1608
        %v1675 = vunpack.c.l.b16 %v1609
        %v1676 = vunpack.c.h.b16 %v1609
        %v1677 = vunpack.c.l.b16 %v1610
        %v1678 = vunpack.c.h.b16 %v1610
        %v1679 = vunpack.c.l.b16 %v1611
        %v1680 = vunpack.c.h.b16 %v1611
        %v1681 = vunpack.c.l.b16 %v1612
        %v1682 = vunpack.c.h.b16 %v1612
        %v1683 = vpack.c.b16 %v1655, %v1651
        %v1684 = vpack.c.b16 %v1656, %v1652
        %v1685 = vpack.c.b16 %v1657, %v1653
        %v1686 = vpack.c.b16 %v1658, %v1654
        %v1687 = vpack.c.b16 %v1663, %v1659
        %v1688 = vpack.c.b16 %v1664, %v1660
        %v1689 = vpack.c.b16 %v1665, %v1661
        %v1690 = vpack.c.b16 %v1666, %v1662
        %v1691 = vpack.c.b16 %v1671, %v1667
        %v1692 = vpack.c.b16 %v1672, %v1668
        %v1693 = vpack.c.b16 %v1673, %v1669
        %v1694 = vpack.c.b16 %v1674, %v1670
        %v1695 = vpack.c.b16 %v1679, %v1675
        %v1696 = vpack.c.b16 %v1680, %v1676
        %v1697 = vpack.c.b16 %v1681, %v1677
        %v1698 = vpack.c.b16 %v1682, %v1678
        %v1716 = vsel %vm655, %v1596, 0
        %1718 = vmatprep.subr.bf16.mxu0 %v1684
        %1719 = vmatpush1.bf16.msra.mxu0 %v1683
        %1720 = vmatprep.subr.bf16.mxu0 %v1688
        %1721 = vmatpush1.bf16.msra.mxu0 %v1687
        %1722 = vmatprep.subr.bf16.mxu0 %v1692
        %1723 = vmatpush1.bf16.msra.mxu0 %v1691
        %1724 = vmatprep.subr.bf16.mxu0 %v1696
        %1725 = vmatpush1.bf16.msra.mxu0 %v1695
        %1726 = vmatprep.subr.bf16.mxu0 0
        %1727 = vmatpush1.bf16.msra.mxu0 0
        %1728 = vmatprep.subr.bf16.mxu0 0
        %1729 = vmatpush1.bf16.msra.mxu0 0
        %1730 = vmatprep.subr.bf16.mxu0 0
        %1731 = vmatpush1.bf16.msra.mxu0 0
        %1732 = vmatprep.subr.bf16.mxu0 0
        %1733 = vmatpush1.bf16.msra.mxu0 0
        %1734 = vmatprep.subr.bf16.mxu0 0
        %1735 = vmatpush1.bf16.msra.mxu0 0
        %1736 = vmatprep.subr.bf16.mxu0 0
        %1737 = vmatpush1.bf16.msra.mxu0 0
        %1738 = vmatprep.subr.bf16.mxu0 0
        %1739 = vmatpush1.bf16.msra.mxu0 0
        %1740 = vmatprep.subr.bf16.mxu0 0
        %1741 = vmatpush1.bf16.msra.mxu0 0
        %1742 = vmatprep.subr.bf16.mxu0 0
        %1743 = vmatpush1.bf16.msra.mxu0 0
        %1744 = vmatprep.subr.bf16.mxu0 0
        %1745 = vmatpush1.bf16.msra.mxu0 0
        %1746 = vmatprep.subr.bf16.mxu0 0
        %1747 = vmatpush1.bf16.msra.mxu0 0
        %1748 = vmatprep.subr.bf16.mxu0 0
        %1749 = vmatpush1.bf16.msra.mxu0 0
        %1750 = vmatprep.mubr.bf16.mxu0 0
        %1751 = vmatmul.mubr.bf16.gmra.mrb[0].mxu0 %v1716
        %v1752 = vpop.f32.mrb[0].mxu0
        %v1753 = vadd.f32 %v1618, %v1752
        %v1754 = vpop.f32.mrb[0].mxu0
        %v1755 = vadd.f32 %v1622, %v1754
        %v1756 = vpop.f32.mrb[0].mxu0
        %v1757 = vadd.f32 %v1618, %v1756
        %v1758 = vpop.f32.mrb[0].mxu0
        %v1759 = vadd.f32 %v1622, %v1758
        %1760 = vdwg.mxu0
        %1761 = vmatprep.subr.bf16.mxu0 %v1686
        %1762 = vmatpush1.bf16.msra.mxu0 %v1685
        %1763 = vmatprep.subr.bf16.mxu0 %v1690
        %1764 = vmatpush1.bf16.msra.mxu0 %v1689
        %1765 = vmatprep.subr.bf16.mxu0 %v1694
        %1766 = vmatpush1.bf16.msra.mxu0 %v1693
        %1767 = vmatprep.subr.bf16.mxu0 %v1698
        %1768 = vmatpush1.bf16.msra.mxu0 %v1697
        %1769 = vmatprep.subr.bf16.mxu0 0
        %1770 = vmatpush1.bf16.msra.mxu0 0
        %1771 = vmatprep.subr.bf16.mxu0 0
        %1772 = vmatpush1.bf16.msra.mxu0 0
        %1773 = vmatprep.subr.bf16.mxu0 0
        %1774 = vmatpush1.bf16.msra.mxu0 0
        %1775 = vmatprep.subr.bf16.mxu0 0
        %1776 = vmatpush1.bf16.msra.mxu0 0
        %1777 = vmatprep.subr.bf16.mxu0 0
        %1778 = vmatpush1.bf16.msra.mxu0 0
        %1779 = vmatprep.subr.bf16.mxu0 0
        %1780 = vmatpush1.bf16.msra.mxu0 0
        %1781 = vmatprep.subr.bf16.mxu0 0
        %1782 = vmatpush1.bf16.msra.mxu0 0
        %1783 = vmatprep.subr.bf16.mxu0 0
        %1784 = vmatpush1.bf16.msra.mxu0 0
        %1785 = vmatprep.subr.bf16.mxu0 0
        %1786 = vmatpush1.bf16.msra.mxu0 0
        %1787 = vmatprep.subr.bf16.mxu0 0
        %1788 = vmatpush1.bf16.msra.mxu0 0
        %1789 = vmatprep.subr.bf16.mxu0 0
        %1790 = vmatpush1.bf16.msra.mxu0 0
        %1791 = vmatprep.subr.bf16.mxu0 0
        %1792 = vmatpush1.bf16.msra.mxu0 0
        %1793 = vmatprep.mubr.bf16.mxu0 0
        %1794 = vmatmul.mubr.bf16.gmra.mrb[0].mxu0 %v1716
        %v1795 = vpop.f32.mrb[0].mxu0
        %v1796 = vadd.f32 %v1626, %v1795
        %v1797 = vpop.f32.mrb[0].mxu0
        %v1798 = vadd.f32 %v1630, %v1797
        %v1799 = vpop.f32.mrb[0].mxu0
        %v1800 = vadd.f32 %v1626, %v1799
        %v1801 = vpop.f32.mrb[0].mxu0
        %v1802 = vadd.f32 %v1630, %v1801
        %1803 = vdwg.mxu0
        %v1804 = vmul.f32 %v1753, 0.5
        %v1805 = vmul.f32 %v1755, 0.5
        %v1806 = vmul.f32 %v1796, 0.5
        %v1807 = vmul.f32 %v1798, 0.5
        %v1808 = vmul.f32 %v1757, 0.5
        %v1809 = vmul.f32 %v1759, 0.5
        %v1810 = vmul.f32 %v1800, 0.5
        %v1811 = vmul.f32 %v1802, 0.5
        %v1812 = vmul.f32 %v1753, 0.70710677
        %v1813 = vmul.f32 %v1755, 0.70710677
        %v1814 = vmul.f32 %v1796, 0.70710677
        %v1815 = vmul.f32 %v1798, 0.70710677
        %v1816 = vmul.f32 %v1757, 0.70710677
        %v1817 = vmul.f32 %v1759, 0.70710677
        %v1818 = vmul.f32 %v1800, 0.70710677
        %v1819 = vmul.f32 %v1802, 0.70710677
        %v1820 = verf.f32.pop %v1812
        %v1821 = verf.f32.pop %v1813
        %v1822 = verf.f32.pop %v1814
        %v1823 = verf.f32.pop %v1815
        %v1824 = verf.f32.pop %v1816
        %v1825 = verf.f32.pop %v1817
        %v1826 = verf.f32.pop %v1818
        %v1827 = verf.f32.pop %v1819
        %v1828 = vadd.f32 %v1820, 1.0
        %v1829 = vadd.f32 %v1821, 1.0
        %v1830 = vadd.f32 %v1822, 1.0
        %v1831 = vadd.f32 %v1823, 1.0
        %v1832 = vadd.f32 %v1824, 1.0
        %v1833 = vadd.f32 %v1825, 1.0
        %v1834 = vadd.f32 %v1826, 1.0
        %v1835 = vadd.f32 %v1827, 1.0
        %v1836 = vmul.f32 %v1804, %v1828
        %v1837 = vmul.f32 %v1805, %v1829
        %v1838 = vmul.f32 %v1806, %v1830
        %v1839 = vmul.f32 %v1807, %v1831
        %v1840 = vmul.f32 %v1808, %v1832
        %v1841 = vmul.f32 %v1809, %v1833
        %v1842 = vmul.f32 %v1810, %v1834
        %v1843 = vmul.f32 %v1811, %v1835
        %v1844 = vld [vmem:[%s17] sm:$0xf]
        %v1845 = vld [vmem:[%s17 + $0x4] sm:$0xf]
        %v1846 = vld [vmem:[%s17 + $0x8] sm:$0xf]
        %v1847 = vld [vmem:[%s17 + $0xc] sm:$0xf]
        %v1848 = vld [vmem:[%s17 + $0x10] sm:$0xf]
        %v1849 = vld [vmem:[%s17 + $0x14] sm:$0xf]
        %v1850 = vld [vmem:[%s17 + $0x18] sm:$0xf]
        %v1851 = vld [vmem:[%s17 + $0x1c] sm:$0xf]
        %v1852 = vld [vmem:[%s17 + $0x20] sm:$0xf]
        %v1853 = vld [vmem:[%s17 + $0x24] sm:$0xf]
        %v1854 = vld [vmem:[%s17 + $0x28] sm:$0xf]
        %v1855 = vld [vmem:[%s17 + $0x2c] sm:$0xf]
        %v1856 = vld [vmem:[%s17 + $0x30] sm:$0xf]
        %v1857 = vld [vmem:[%s17 + $0x34] sm:$0xf]
        %v1858 = vld [vmem:[%s17 + $0x38] sm:$0xf]
        %v1859 = vld [vmem:[%s17 + $0x3c] sm:$0xf]
        %v1860 = vld [vmem:[%s17 + $0x40] sm:$0xf]
        %v1861 = vld [vmem:[%s17 + $0x44] sm:$0xf]
        %v1862 = vld [vmem:[%s17 + $0x48] sm:$0xf]
        %v1863 = vld [vmem:[%s17 + $0x4c] sm:$0xf]
        %v1864 = vld [vmem:[%s17 + $0x50] sm:$0xf]
        %v1865 = vld [vmem:[%s17 + $0x54] sm:$0xf]
        %v1866 = vld [vmem:[%s17 + $0x58] sm:$0xf]
        %v1867 = vld [vmem:[%s17 + $0x5c] sm:$0xf]
        %v1868 = vld [vmem:[%s17 + $0x60] sm:$0xf]
        %v1869 = vld [vmem:[%s17 + $0x64] sm:$0xf]
        %v1870 = vld [vmem:[%s17 + $0x68] sm:$0xf]
        %v1871 = vld [vmem:[%s17 + $0x6c] sm:$0xf]
        %v1872 = vld [vmem:[%s17 + $0x70] sm:$0xf]
        %v1873 = vld [vmem:[%s17 + $0x74] sm:$0xf]
        %v1874 = vld [vmem:[%s17 + $0x78] sm:$0xf]
        %v1875 = vld [vmem:[%s17 + $0x7c] sm:$0xf]
        %v1876 = vld [vmem:[%s17 + $0x80] sm:$0xf]
        %v1877 = vld [vmem:[%s17 + $0x84] sm:$0xf]
        %v1878 = vld [vmem:[%s17 + $0x88] sm:$0xf]
        %v1879 = vld [vmem:[%s17 + $0x8c] sm:$0xf]
        %v1880 = vld [vmem:[%s17 + $0x90] sm:$0xf]
        %v1881 = vld [vmem:[%s17 + $0x94] sm:$0xf]
        %v1882 = vld [vmem:[%s17 + $0x98] sm:$0xf]
        %v1883 = vld [vmem:[%s17 + $0x9c] sm:$0xf]
        %v1884 = vld [vmem:[%s17 + $0xa0] sm:$0xf]
        %v1885 = vld [vmem:[%s17 + $0xa4] sm:$0xf]
        %v1886 = vld [vmem:[%s17 + $0xa8] sm:$0xf]
        %v1887 = vld [vmem:[%s17 + $0xac] sm:$0xf]
        %v1888 = vld [vmem:[%s17 + $0xb0] sm:$0xf]
        %v1889 = vld [vmem:[%s17 + $0xb4] sm:$0xf]
        %v1890 = vld [vmem:[%s17 + $0xb8] sm:$0xf]
        %v1891 = vld [vmem:[%s17 + $0xbc] sm:$0xf]
        %v1892 = vld [vmem:[%s17 + $0xc0] sm:$0xf]
        %v1893 = vld [vmem:[%s17 + $0xc4] sm:$0xf]
        %v1894 = vld [vmem:[%s17 + $0xc8] sm:$0xf]
        %v1895 = vld [vmem:[%s17 + $0xcc] sm:$0xf]
        %v1896 = vld [vmem:[%s17 + $0xd0] sm:$0xf]
        %v1897 = vld [vmem:[%s17 + $0xd4] sm:$0xf]
        %v1898 = vld [vmem:[%s17 + $0xd8] sm:$0xf]
        %v1899 = vld [vmem:[%s17 + $0xdc] sm:$0xf]
        %v1900 = vld [vmem:[%s17 + $0xe0] sm:$0xf]
        %v1901 = vld [vmem:[%s17 + $0xe4] sm:$0xf]
        %v1902 = vld [vmem:[%s17 + $0xe8] sm:$0xf]
        %v1903 = vld [vmem:[%s17 + $0xec] sm:$0xf]
        %v1904 = vld [vmem:[%s17 + $0xf0] sm:$0xf]
        %v1905 = vld [vmem:[%s17 + $0xf4] sm:$0xf]
        %v1906 = vld [vmem:[%s17 + $0xf8] sm:$0xf]
        %v1907 = vld [vmem:[%s17 + $0xfc] sm:$0xf]
        %v1908 = vpack.c.bf16 %v1840, %v1836
        %v1909 = vpack.c.bf16 %v1841, %v1837
        %v1910 = vpack.c.bf16 %v1842, %v1838
        %v1911 = vpack.c.bf16 %v1843, %v1839
        %v1912 = vld [vmem:[%s15 + $0x10] sm:$0xff]
        %v1913 = vld [vmem:[%s15 + $0x18] sm:$0xff]
        %v1914 = vld [vmem:[%s15 + $0x70] sm:$0xff]
        %v1915 = vld [vmem:[%s15 + $0x78] sm:$0xff]
        %v1916 = vld [vmem:[%s15 + $0xd0] sm:$0xff]
        %v1917 = vld [vmem:[%s15 + $0xd8] sm:$0xff]
        %v1918 = vld [vmem:[%s15 + $0x130] sm:$0xff]
        %v1919 = vld [vmem:[%s15 + $0x138] sm:$0xff]
        %v1920 = vld [vmem:[%s15 + $0x190] sm:$0xff]
        %v1921 = vld [vmem:[%s15 + $0x198] sm:$0xff]
        %v1922 = vld [vmem:[%s15 + $0x1f0] sm:$0xff]
        %v1923 = vld [vmem:[%s15 + $0x1f8] sm:$0xff]
        %v1924 = vld [vmem:[%s15 + $0x250] sm:$0xff]
        %v1925 = vld [vmem:[%s15 + $0x258] sm:$0xff]
        %v1926 = vld [vmem:[%s15 + $0x2b0] sm:$0xff]
        %v1927 = vld [vmem:[%s15 + $0x2b8] sm:$0xff]
        %v1928 = vld [vmem:[%s16 + $0x4] sm:$0xf]
        %v1930 = vlaneseq
        %v1931 = vshrl.u32 %v1930, 7
        %v1932 = vsub.s32 0, %v1931
        %v1933 = vrot.slane %v1928, %v1932
        %v1934 = vlaneseq
        %v1935 = vshrl.u32 %v1934, 7
        %v1936 = vsub.s32 1, %v1935
        %v1937 = vrot.slane %v1928, %v1936
        %v1938 = vlaneseq
        %v1939 = vshrl.u32 %v1938, 7
        %v1940 = vsub.s32 2, %v1939
        %v1941 = vrot.slane %v1928, %v1940
        %v1942 = vlaneseq
        %v1943 = vshrl.u32 %v1942, 7
        %v1944 = vsub.s32 3, %v1943
        %v1945 = vrot.slane %v1928, %v1944
        %v1966 = vunpack.c.l.b16 %v1912
        %v1967 = vunpack.c.h.b16 %v1912
        %v1968 = vunpack.c.l.b16 %v1913
        %v1969 = vunpack.c.h.b16 %v1913
        %v1970 = vunpack.c.l.b16 %v1914
        %v1971 = vunpack.c.h.b16 %v1914
        %v1972 = vunpack.c.l.b16 %v1915
        %v1973 = vunpack.c.h.b16 %v1915
        %v1974 = vunpack.c.l.b16 %v1916
        %v1975 = vunpack.c.h.b16 %v1916
        %v1976 = vunpack.c.l.b16 %v1917
        %v1977 = vunpack.c.h.b16 %v1917
        %v1978 = vunpack.c.l.b16 %v1918
        %v1979 = vunpack.c.h.b16 %v1918
        %v1980 = vunpack.c.l.b16 %v1919
        %v1981 = vunpack.c.h.b16 %v1919
        %v1982 = vunpack.c.l.b16 %v1920
        %v1983 = vunpack.c.h.b16 %v1920
        %v1984 = vunpack.c.l.b16 %v1921
        %v1985 = vunpack.c.h.b16 %v1921
        %v1986 = vunpack.c.l.b16 %v1922
        %v1987 = vunpack.c.h.b16 %v1922
        %v1988 = vunpack.c.l.b16 %v1923
        %v1989 = vunpack.c.h.b16 %v1923
        %v1990 = vunpack.c.l.b16 %v1924
        %v1991 = vunpack.c.h.b16 %v1924
        %v1992 = vunpack.c.l.b16 %v1925
        %v1993 = vunpack.c.h.b16 %v1925
        %v1994 = vunpack.c.l.b16 %v1926
        %v1995 = vunpack.c.h.b16 %v1926
        %v1996 = vunpack.c.l.b16 %v1927
        %v1997 = vunpack.c.h.b16 %v1927
        %v1998 = vpack.c.b16 %v1970, %v1966
        %v1999 = vpack.c.b16 %v1971, %v1967
        %v2000 = vpack.c.b16 %v1972, %v1968
        %v2001 = vpack.c.b16 %v1973, %v1969
        %v2002 = vpack.c.b16 %v1978, %v1974
        %v2003 = vpack.c.b16 %v1979, %v1975
        %v2004 = vpack.c.b16 %v1980, %v1976
        %v2005 = vpack.c.b16 %v1981, %v1977
        %v2006 = vpack.c.b16 %v1986, %v1982
        %v2007 = vpack.c.b16 %v1987, %v1983
        %v2008 = vpack.c.b16 %v1988, %v1984
        %v2009 = vpack.c.b16 %v1989, %v1985
        %v2010 = vpack.c.b16 %v1994, %v1990
        %v2011 = vpack.c.b16 %v1995, %v1991
        %v2012 = vpack.c.b16 %v1996, %v1992
        %v2013 = vpack.c.b16 %v1997, %v1993
        %2030 = vmatprep.subr.bf16.mxu0 %v1999
        %2031 = vmatpush1.bf16.msra.mxu0 %v1998
        %2032 = vmatprep.subr.bf16.mxu0 %v2003
        %2033 = vmatpush1.bf16.msra.mxu0 %v2002
        %2034 = vmatprep.subr.bf16.mxu0 %v2007
        %2035 = vmatpush1.bf16.msra.mxu0 %v2006
        %2036 = vmatprep.subr.bf16.mxu0 %v2011
        %2037 = vmatpush1.bf16.msra.mxu0 %v2010
        %2038 = vmatprep.subr.bf16.mxu0 0
        %2039 = vmatpush1.bf16.msra.mxu0 0
        %2040 = vmatprep.subr.bf16.mxu0 0
        %2041 = vmatpush1.bf16.msra.mxu0 0
        %2042 = vmatprep.subr.bf16.mxu0 0
        %2043 = vmatpush1.bf16.msra.mxu0 0
        %2044 = vmatprep.subr.bf16.mxu0 0
        %2045 = vmatpush1.bf16.msra.mxu0 0
        %2046 = vmatprep.subr.bf16.mxu0 0
        %2047 = vmatpush1.bf16.msra.mxu0 0
        %2048 = vmatprep.subr.bf16.mxu0 0
        %2049 = vmatpush1.bf16.msra.mxu0 0
        %2050 = vmatprep.subr.bf16.mxu0 0
        %2051 = vmatpush1.bf16.msra.mxu0 0
        %2052 = vmatprep.subr.bf16.mxu0 0
        %2053 = vmatpush1.bf16.msra.mxu0 0
        %2054 = vmatprep.subr.bf16.mxu0 0
        %2055 = vmatpush1.bf16.msra.mxu0 0
        %2056 = vmatprep.subr.bf16.mxu0 0
        %2057 = vmatpush1.bf16.msra.mxu0 0
        %2058 = vmatprep.subr.bf16.mxu0 0
        %2059 = vmatpush1.bf16.msra.mxu0 0
        %2060 = vmatprep.subr.bf16.mxu0 0
        %2061 = vmatpush1.bf16.msra.mxu0 0
        %2062 = vmatprep.mubr.bf16.mxu0 0
        %2063 = vmatmul.mubr.bf16.gmra.mrb[0].mxu0 %v1716
        %v2064 = vpop.f32.mrb[0].mxu0
        %v2065 = vadd.f32 %v1933, %v2064
        %v2066 = vpop.f32.mrb[0].mxu0
        %v2067 = vadd.f32 %v1937, %v2066
        %v2068 = vpop.f32.mrb[0].mxu0
        %v2069 = vadd.f32 %v1933, %v2068
        %v2070 = vpop.f32.mrb[0].mxu0
        %v2071 = vadd.f32 %v1937, %v2070
        %2072 = vdwg.mxu0
        %2073 = vmatprep.subr.bf16.mxu0 %v2001
        %2074 = vmatpush1.bf16.msra.mxu0 %v2000
        %2075 = vmatprep.subr.bf16.mxu0 %v2005
        %2076 = vmatpush1.bf16.msra.mxu0 %v2004
        %2077 = vmatprep.subr.bf16.mxu0 %v2009
        %2078 = vmatpush1.bf16.msra.mxu0 %v2008
        %2079 = vmatprep.subr.bf16.mxu0 %v2013
        %2080 = vmatpush1.bf16.msra.mxu0 %v2012
        %2081 = vmatprep.subr.bf16.mxu0 0
        %2082 = vmatpush1.bf16.msra.mxu0 0
        %2083 = vmatprep.subr.bf16.mxu0 0
        %2084 = vmatpush1.bf16.msra.mxu0 0
        %2085 = vmatprep.subr.bf16.mxu0 0
        %2086 = vmatpush1.bf16.msra.mxu0 0
        %2087 = vmatprep.subr.bf16.mxu0 0
        %2088 = vmatpush1.bf16.msra.mxu0 0
        %2089 = vmatprep.subr.bf16.mxu0 0
        %2090 = vmatpush1.bf16.msra.mxu0 0
        %2091 = vmatprep.subr.bf16.mxu0 0
        %2092 = vmatpush1.bf16.msra.mxu0 0
        %2093 = vmatprep.subr.bf16.mxu0 0
        %2094 = vmatpush1.bf16.msra.mxu0 0
        %2095 = vmatprep.subr.bf16.mxu0 0
        %2096 = vmatpush1.bf16.msra.mxu0 0
        %2097 = vmatprep.subr.bf16.mxu0 0
        %2098 = vmatpush1.bf16.msra.mxu0 0
        %2099 = vmatprep.subr.bf16.mxu0 0
        %2100 = vmatpush1.bf16.msra.mxu0 0
        %2101 = vmatprep.subr.bf16.mxu0 0
        %2102 = vmatpush1.bf16.msra.mxu0 0
        %2103 = vmatprep.subr.bf16.mxu0 0
        %2104 = vmatpush1.bf16.msra.mxu0 0
        %2105 = vmatprep.mubr.bf16.mxu0 0
        %2106 = vmatmul.mubr.bf16.gmra.mrb[0].mxu0 %v1716
        %v2107 = vpop.f32.mrb[0].mxu0
        %v2108 = vadd.f32 %v1941, %v2107
        %v2109 = vpop.f32.mrb[0].mxu0
        %v2110 = vadd.f32 %v1945, %v2109
        %v2111 = vpop.f32.mrb[0].mxu0
        %v2112 = vadd.f32 %v1941, %v2111
        %v2113 = vpop.f32.mrb[0].mxu0
        %v2114 = vadd.f32 %v1945, %v2113
        %2115 = vdwg.mxu0
        %v2116 = vmul.f32 %v2065, 0.5
        %v2117 = vmul.f32 %v2067, 0.5
        %v2118 = vmul.f32 %v2108, 0.5
        %v2119 = vmul.f32 %v2110, 0.5
        %v2120 = vmul.f32 %v2069, 0.5
        %v2121 = vmul.f32 %v2071, 0.5
        %v2122 = vmul.f32 %v2112, 0.5
        %v2123 = vmul.f32 %v2114, 0.5
        %v2124 = vmul.f32 %v2065, 0.70710677
        %v2125 = vmul.f32 %v2067, 0.70710677
        %v2126 = vmul.f32 %v2108, 0.70710677
        %v2127 = vmul.f32 %v2110, 0.70710677
        %v2128 = vmul.f32 %v2069, 0.70710677
        %v2129 = vmul.f32 %v2071, 0.70710677
        %v2130 = vmul.f32 %v2112, 0.70710677
        %v2131 = vmul.f32 %v2114, 0.70710677
        %v2132 = verf.f32.pop %v2124
        %v2133 = verf.f32.pop %v2125
        %v2134 = verf.f32.pop %v2126
        %v2135 = verf.f32.pop %v2127
        %v2136 = verf.f32.pop %v2128
        %v2137 = verf.f32.pop %v2129
        %v2138 = verf.f32.pop %v2130
        %v2139 = verf.f32.pop %v2131
        %v2140 = vadd.f32 %v2132, 1.0
        %v2141 = vadd.f32 %v2133, 1.0
        %v2142 = vadd.f32 %v2134, 1.0
        %v2143 = vadd.f32 %v2135, 1.0
        %v2144 = vadd.f32 %v2136, 1.0
        %v2145 = vadd.f32 %v2137, 1.0
        %v2146 = vadd.f32 %v2138, 1.0
        %v2147 = vadd.f32 %v2139, 1.0
        %v2148 = vmul.f32 %v2116, %v2140
        %v2149 = vmul.f32 %v2117, %v2141
        %v2150 = vmul.f32 %v2118, %v2142
        %v2151 = vmul.f32 %v2119, %v2143
        %v2152 = vmul.f32 %v2120, %v2144
        %v2153 = vmul.f32 %v2121, %v2145
        %v2154 = vmul.f32 %v2122, %v2146
        %v2155 = vmul.f32 %v2123, %v2147
        %v2156 = vld [vmem:[%s17 + $0x100] sm:$0xf]
        %v2157 = vld [vmem:[%s17 + $0x104] sm:$0xf]
        %v2158 = vld [vmem:[%s17 + $0x108] sm:$0xf]
        %v2159 = vld [vmem:[%s17 + $0x10c] sm:$0xf]
        %v2160 = vld [vmem:[%s17 + $0x110] sm:$0xf]
        %v2161 = vld [vmem:[%s17 + $0x114] sm:$0xf]
        %v2162 = vld [vmem:[%s17 + $0x118] sm:$0xf]
        %v2163 = vld [vmem:[%s17 + $0x11c] sm:$0xf]
        %v2164 = vld [vmem:[%s17 + $0x120] sm:$0xf]
        %v2165 = vld [vmem:[%s17 + $0x124] sm:$0xf]
        %v2166 = vld [vmem:[%s17 + $0x128] sm:$0xf]
        %v2167 = vld [vmem:[%s17 + $0x12c] sm:$0xf]
        %v2168 = vld [vmem:[%s17 + $0x130] sm:$0xf]
        %v2169 = vld [vmem:[%s17 + $0x134] sm:$0xf]
        %v2170 = vld [vmem:[%s17 + $0x138] sm:$0xf]
        %v2171 = vld [vmem:[%s17 + $0x13c] sm:$0xf]
        %v2172 = vld [vmem:[%s17 + $0x140] sm:$0xf]
        %v2173 = vld [vmem:[%s17 + $0x144] sm:$0xf]
        %v2174 = vld [vmem:[%s17 + $0x148] sm:$0xf]
        %v2175 = vld [vmem:[%s17 + $0x14c] sm:$0xf]
        %v2176 = vld [vmem:[%s17 + $0x150] sm:$0xf]
        %v2177 = vld [vmem:[%s17 + $0x154] sm:$0xf]
        %v2178 = vld [vmem:[%s17 + $0x158] sm:$0xf]
        %v2179 = vld [vmem:[%s17 + $0x15c] sm:$0xf]
        %v2180 = vld [vmem:[%s17 + $0x160] sm:$0xf]
        %v2181 = vld [vmem:[%s17 + $0x164] sm:$0xf]
        %v2182 = vld [vmem:[%s17 + $0x168] sm:$0xf]
        %v2183 = vld [vmem:[%s17 + $0x16c] sm:$0xf]
        %v2184 = vld [vmem:[%s17 + $0x170] sm:$0xf]
        %v2185 = vld [vmem:[%s17 + $0x174] sm:$0xf]
        %v2186 = vld [vmem:[%s17 + $0x178] sm:$0xf]
        %v2187 = vld [vmem:[%s17 + $0x17c] sm:$0xf]
        %v2188 = vld [vmem:[%s17 + $0x180] sm:$0xf]
        %v2189 = vld [vmem:[%s17 + $0x184] sm:$0xf]
        %v2190 = vld [vmem:[%s17 + $0x188] sm:$0xf]
        %v2191 = vld [vmem:[%s17 + $0x18c] sm:$0xf]
        %v2192 = vld [vmem:[%s17 + $0x190] sm:$0xf]
        %v2193 = vld [vmem:[%s17 + $0x194] sm:$0xf]
        %v2194 = vld [vmem:[%s17 + $0x198] sm:$0xf]
        %v2195 = vld [vmem:[%s17 + $0x19c] sm:$0xf]
        %v2196 = vld [vmem:[%s17 + $0x1a0] sm:$0xf]
        %v2197 = vld [vmem:[%s17 + $0x1a4] sm:$0xf]
        %v2198 = vld [vmem:[%s17 + $0x1a8] sm:$0xf]
        %v2199 = vld [vmem:[%s17 + $0x1ac] sm:$0xf]
        %v2200 = vld [vmem:[%s17 + $0x1b0] sm:$0xf]
        %v2201 = vld [vmem:[%s17 + $0x1b4] sm:$0xf]
        %v2202 = vld [vmem:[%s17 + $0x1b8] sm:$0xf]
        %v2203 = vld [vmem:[%s17 + $0x1bc] sm:$0xf]
        %v2204 = vld [vmem:[%s17 + $0x1c0] sm:$0xf]
        %v2205 = vld [vmem:[%s17 + $0x1c4] sm:$0xf]
        %v2206 = vld [vmem:[%s17 + $0x1c8] sm:$0xf]
        %v2207 = vld [vmem:[%s17 + $0x1cc] sm:$0xf]
        %v2208 = vld [vmem:[%s17 + $0x1d0] sm:$0xf]
        %v2209 = vld [vmem:[%s17 + $0x1d4] sm:$0xf]
        %v2210 = vld [vmem:[%s17 + $0x1d8] sm:$0xf]
        %v2211 = vld [vmem:[%s17 + $0x1dc] sm:$0xf]
        %v2212 = vld [vmem:[%s17 + $0x1e0] sm:$0xf]
        %v2213 = vld [vmem:[%s17 + $0x1e4] sm:$0xf]
        %v2214 = vld [vmem:[%s17 + $0x1e8] sm:$0xf]
        %v2215 = vld [vmem:[%s17 + $0x1ec] sm:$0xf]
        %v2216 = vld [vmem:[%s17 + $0x1f0] sm:$0xf]
        %v2217 = vld [vmem:[%s17 + $0x1f4] sm:$0xf]
        %v2218 = vld [vmem:[%s17 + $0x1f8] sm:$0xf]
        %v2219 = vld [vmem:[%s17 + $0x1fc] sm:$0xf]
        %v2220 = vpack.c.bf16 %v2152, %v2148
        %v2221 = vpack.c.bf16 %v2153, %v2149
        %v2222 = vpack.c.bf16 %v2154, %v2150
        %v2223 = vpack.c.bf16 %v2155, %v2151
        %v2288 = vunpack.c.l.b16 %v2156
        %v2289 = vunpack.c.l.b16 %v2157
        %v2290 = vunpack.c.l.b16 %v2158
        %v2291 = vunpack.c.l.b16 %v2159
        %v2292 = vunpack.c.l.b16 %v2160
        %v2293 = vunpack.c.l.b16 %v2161
        %v2294 = vunpack.c.l.b16 %v2162
        %v2295 = vunpack.c.l.b16 %v2163
        %v2296 = vunpack.c.l.b16 %v2164
        %v2297 = vunpack.c.l.b16 %v2165
        %v2298 = vunpack.c.l.b16 %v2166
        %v2299 = vunpack.c.l.b16 %v2167
        %v2300 = vunpack.c.l.b16 %v2168
        %v2301 = vunpack.c.l.b16 %v2169
        %v2302 = vunpack.c.l.b16 %v2170
        %v2303 = vunpack.c.l.b16 %v2171
        %v2304 = vunpack.c.l.b16 %v2172
        %v2305 = vunpack.c.l.b16 %v2173
        %v2306 = vunpack.c.l.b16 %v2174
        %v2307 = vunpack.c.l.b16 %v2175
        %v2308 = vunpack.c.l.b16 %v2176
        %v2309 = vunpack.c.l.b16 %v2177
        %v2310 = vunpack.c.l.b16 %v2178
        %v2311 = vunpack.c.l.b16 %v2179
        %v2312 = vunpack.c.l.b16 %v2180
        %v2313 = vunpack.c.l.b16 %v2181
        %v2314 = vunpack.c.l.b16 %v2182
        %v2315 = vunpack.c.l.b16 %v2183
        %v2316 = vunpack.c.l.b16 %v2184
        %v2317 = vunpack.c.l.b16 %v2185
        %v2318 = vunpack.c.l.b16 %v2186
        %v2319 = vunpack.c.l.b16 %v2187
        %v2320 = vunpack.c.l.b16 %v2188
        %v2321 = vunpack.c.l.b16 %v2189
        %v2322 = vunpack.c.l.b16 %v2190
        %v2323 = vunpack.c.l.b16 %v2191
        %v2324 = vunpack.c.l.b16 %v2192
        %v2325 = vunpack.c.l.b16 %v2193
        %v2326 = vunpack.c.l.b16 %v2194
        %v2327 = vunpack.c.l.b16 %v2195
        %v2328 = vunpack.c.l.b16 %v2196
        %v2329 = vunpack.c.l.b16 %v2197
        %v2330 = vunpack.c.l.b16 %v2198
        %v2331 = vunpack.c.l.b16 %v2199
        %v2332 = vunpack.c.l.b16 %v2200
        %v2333 = vunpack.c.l.b16 %v2201
        %v2334 = vunpack.c.l.b16 %v2202
        %v2335 = vunpack.c.l.b16 %v2203
        %v2336 = vunpack.c.l.b16 %v2204
        %v2337 = vunpack.c.l.b16 %v2205
        %v2338 = vunpack.c.l.b16 %v2206
        %v2339 = vunpack.c.l.b16 %v2207
        %v2340 = vunpack.c.l.b16 %v2208
        %v2341 = vunpack.c.l.b16 %v2209
        %v2342 = vunpack.c.l.b16 %v2210
        %v2343 = vunpack.c.l.b16 %v2211
        %v2344 = vunpack.c.l.b16 %v2212
        %v2345 = vunpack.c.l.b16 %v2213
        %v2346 = vunpack.c.l.b16 %v2214
        %v2347 = vunpack.c.l.b16 %v2215
        %v2348 = vunpack.c.l.b16 %v2216
        %v2349 = vunpack.c.l.b16 %v2217
        %v2350 = vunpack.c.l.b16 %v2218
        %v2351 = vunpack.c.l.b16 %v2219
        %v2352 = vpack.c.b16 %v2289, %v2288
        %v2353 = vpack.c.b16 %v2291, %v2290
        %v2354 = vpack.c.b16 %v2293, %v2292
        %v2355 = vpack.c.b16 %v2295, %v2294
        %v2356 = vpack.c.b16 %v2297, %v2296
        %v2357 = vpack.c.b16 %v2299, %v2298
        %v2358 = vpack.c.b16 %v2301, %v2300
        %v2359 = vpack.c.b16 %v2303, %v2302
        %v2360 = vpack.c.b16 %v2305, %v2304
        %v2361 = vpack.c.b16 %v2307, %v2306
        %v2362 = vpack.c.b16 %v2309, %v2308
        %v2363 = vpack.c.b16 %v2311, %v2310
        %v2364 = vpack.c.b16 %v2313, %v2312
        %v2365 = vpack.c.b16 %v2315, %v2314
        %v2366 = vpack.c.b16 %v2317, %v2316
        %v2367 = vpack.c.b16 %v2319, %v2318
        %v2368 = vpack.c.b16 %v2321, %v2320
        %v2369 = vpack.c.b16 %v2323, %v2322
        %v2370 = vpack.c.b16 %v2325, %v2324
        %v2371 = vpack.c.b16 %v2327, %v2326
        %v2372 = vpack.c.b16 %v2329, %v2328
        %v2373 = vpack.c.b16 %v2331, %v2330
        %v2374 = vpack.c.b16 %v2333, %v2332
        %v2375 = vpack.c.b16 %v2335, %v2334
        %v2376 = vpack.c.b16 %v2337, %v2336
        %v2377 = vpack.c.b16 %v2339, %v2338
        %v2378 = vpack.c.b16 %v2341, %v2340
        %v2379 = vpack.c.b16 %v2343, %v2342
        %v2380 = vpack.c.b16 %v2345, %v2344
        %v2381 = vpack.c.b16 %v2347, %v2346
        %v2382 = vpack.c.b16 %v2349, %v2348
        %v2383 = vpack.c.b16 %v2351, %v2350
        %2416 = vmatprep.subr.bf16.mxu0 0
        %2417 = vmatpush1.bf16.msra.mxu0 %v2352
        %2418 = vmatprep.subr.bf16.mxu0 0
        %2419 = vmatpush1.bf16.msra.mxu0 %v2353
        %2420 = vmatprep.subr.bf16.mxu0 0
        %2421 = vmatpush1.bf16.msra.mxu0 %v2354
        %2422 = vmatprep.subr.bf16.mxu0 0
        %2423 = vmatpush1.bf16.msra.mxu0 %v2355
        %2424 = vmatprep.subr.bf16.mxu0 0
        %2425 = vmatpush1.bf16.msra.mxu0 %v2356
        %2426 = vmatprep.subr.bf16.mxu0 0
        %2427 = vmatpush1.bf16.msra.mxu0 %v2357
        %2428 = vmatprep.subr.bf16.mxu0 0
        %2429 = vmatpush1.bf16.msra.mxu0 %v2358
        %2430 = vmatprep.subr.bf16.mxu0 0
        %2431 = vmatpush1.bf16.msra.mxu0 %v2359
        %2432 = vmatprep.subr.bf16.mxu0 0
        %2433 = vmatpush1.bf16.msra.mxu0 %v2360
        %2434 = vmatprep.subr.bf16.mxu0 0
        %2435 = vmatpush1.bf16.msra.mxu0 %v2361
        %2436 = vmatprep.subr.bf16.mxu0 0
        %2437 = vmatpush1.bf16.msra.mxu0 %v2362
        %2438 = vmatprep.subr.bf16.mxu0 0
        %2439 = vmatpush1.bf16.msra.mxu0 %v2363
        %2440 = vmatprep.subr.bf16.mxu0 0
        %2441 = vmatpush1.bf16.msra.mxu0 %v2364
        %2442 = vmatprep.subr.bf16.mxu0 0
        %2443 = vmatpush1.bf16.msra.mxu0 %v2365
        %2444 = vmatprep.subr.bf16.mxu0 0
        %2445 = vmatpush1.bf16.msra.mxu0 %v2366
        %2446 = vmatprep.subr.bf16.mxu0 0
        %2447 = vmatpush1.bf16.msra.mxu0 %v2367
        %2448 = vmatprep.mubr.bf16.mxu0 %v2221
        %2449 = vmatmul.mubr.bf16.gmra.mrb[0].mxu0 %v2220
        %v2450 = vpop.f32.mrb[0].mxu0
        %v2451 = vadd.f32 0.0, %v2450
        %v2452 = vpop.f32.mrb[0].mxu0
        %v2453 = vpop.f32.mrb[0].mxu0
        %v2454 = vadd.f32 0.0, %v2453
        %v2455 = vpop.f32.mrb[0].mxu0
        %2456 = vdwg.mxu0
        %2457 = vmatprep.subr.bf16.mxu0 0
        %2458 = vmatpush1.bf16.msra.mxu0 %v2368
        %2459 = vmatprep.subr.bf16.mxu0 0
        %2460 = vmatpush1.bf16.msra.mxu0 %v2369
        %2461 = vmatprep.subr.bf16.mxu0 0
        %2462 = vmatpush1.bf16.msra.mxu0 %v2370
        %2463 = vmatprep.subr.bf16.mxu0 0
        %2464 = vmatpush1.bf16.msra.mxu0 %v2371
        %2465 = vmatprep.subr.bf16.mxu0 0
        %2466 = vmatpush1.bf16.msra.mxu0 %v2372
        %2467 = vmatprep.subr.bf16.mxu0 0
        %2468 = vmatpush1.bf16.msra.mxu0 %v2373
        %2469 = vmatprep.subr.bf16.mxu0 0
        %2470 = vmatpush1.bf16.msra.mxu0 %v2374
        %2471 = vmatprep.subr.bf16.mxu0 0
        %2472 = vmatpush1.bf16.msra.mxu0 %v2375
        %2473 = vmatprep.subr.bf16.mxu0 0
        %2474 = vmatpush1.bf16.msra.mxu0 %v2376
        %2475 = vmatprep.subr.bf16.mxu0 0
        %2476 = vmatpush1.bf16.msra.mxu0 %v2377
        %2477 = vmatprep.subr.bf16.mxu0 0
        %2478 = vmatpush1.bf16.msra.mxu0 %v2378
        %2479 = vmatprep.subr.bf16.mxu0 0
        %2480 = vmatpush1.bf16.msra.mxu0 %v2379
        %2481 = vmatprep.subr.bf16.mxu0 0
        %2482 = vmatpush1.bf16.msra.mxu0 %v2380
        %2483 = vmatprep.subr.bf16.mxu0 0
        %2484 = vmatpush1.bf16.msra.mxu0 %v2381
        %2485 = vmatprep.subr.bf16.mxu0 0
        %2486 = vmatpush1.bf16.msra.mxu0 %v2382
        %2487 = vmatprep.subr.bf16.mxu0 0
        %2488 = vmatpush1.bf16.msra.mxu0 %v2383
        %2489 = vmatprep.mubr.bf16.mxu0 %v2223
        %2490 = vmatmul.mubr.bf16.gmra.mrb[0].mxu0 %v2222
        %v2491 = vpop.f32.mrb[0].mxu0
        %v2492 = vadd.f32 %v2451, %v2491
        %v2493 = vpop.f32.mrb[0].mxu0
        %v2494 = vpop.f32.mrb[0].mxu0
        %v2495 = vadd.f32 %v2454, %v2494
        %v2496 = vpop.f32.mrb[0].mxu0
        %2497 = vdwg.mxu0
        %v2562 = vunpack.c.l.b16 %v1844
        %v2563 = vunpack.c.l.b16 %v1845
        %v2564 = vunpack.c.l.b16 %v1846
        %v2565 = vunpack.c.l.b16 %v1847
        %v2566 = vunpack.c.l.b16 %v1848
        %v2567 = vunpack.c.l.b16 %v1849
        %v2568 = vunpack.c.l.b16 %v1850
        %v2569 = vunpack.c.l.b16 %v1851
        %v2570 = vunpack.c.l.b16 %v1852
        %v2571 = vunpack.c.l.b16 %v1853
        %v2572 = vunpack.c.l.b16 %v1854
        %v2573 = vunpack.c.l.b16 %v1855
        %v2574 = vunpack.c.l.b16 %v1856
        %v2575 = vunpack.c.l.b16 %v1857
        %v2576 = vunpack.c.l.b16 %v1858
        %v2577 = vunpack.c.l.b16 %v1859
        %v2578 = vunpack.c.l.b16 %v1860
        %v2579 = vunpack.c.l.b16 %v1861
        %v2580 = vunpack.c.l.b16 %v1862
        %v2581 = vunpack.c.l.b16 %v1863
        %v2582 = vunpack.c.l.b16 %v1864
        %v2583 = vunpack.c.l.b16 %v1865
        %v2584 = vunpack.c.l.b16 %v1866
        %v2585 = vunpack.c.l.b16 %v1867
        %v2586 = vunpack.c.l.b16 %v1868
        %v2587 = vunpack.c.l.b16 %v1869
        %v2588 = vunpack.c.l.b16 %v1870
        %v2589 = vunpack.c.l.b16 %v1871
        %v2590 = vunpack.c.l.b16 %v1872
        %v2591 = vunpack.c.l.b16 %v1873
        %v2592 = vunpack.c.l.b16 %v1874
        %v2593 = vunpack.c.l.b16 %v1875
        %v2594 = vunpack.c.l.b16 %v1876
        %v2595 = vunpack.c.l.b16 %v1877
        %v2596 = vunpack.c.l.b16 %v1878
        %v2597 = vunpack.c.l.b16 %v1879
        %v2598 = vunpack.c.l.b16 %v1880
        %v2599 = vunpack.c.l.b16 %v1881
        %v2600 = vunpack.c.l.b16 %v1882
        %v2601 = vunpack.c.l.b16 %v1883
        %v2602 = vunpack.c.l.b16 %v1884
        %v2603 = vunpack.c.l.b16 %v1885
        %v2604 = vunpack.c.l.b16 %v1886
        %v2605 = vunpack.c.l.b16 %v1887
        %v2606 = vunpack.c.l.b16 %v1888
        %v2607 = vunpack.c.l.b16 %v1889
        %v2608 = vunpack.c.l.b16 %v1890
        %v2609 = vunpack.c.l.b16 %v1891
        %v2610 = vunpack.c.l.b16 %v1892
        %v2611 = vunpack.c.l.b16 %v1893
        %v2612 = vunpack.c.l.b16 %v1894
        %v2613 = vunpack.c.l.b16 %v1895
        %v2614 = vunpack.c.l.b16 %v1896
        %v2615 = vunpack.c.l.b16 %v1897
        %v2616 = vunpack.c.l.b16 %v1898
        %v2617 = vunpack.c.l.b16 %v1899
        %v2618 = vunpack.c.l.b16 %v1900
        %v2619 = vunpack.c.l.b16 %v1901
        %v2620 = vunpack.c.l.b16 %v1902
        %v2621 = vunpack.c.l.b16 %v1903
        %v2622 = vunpack.c.l.b16 %v1904
        %v2623 = vunpack.c.l.b16 %v1905
        %v2624 = vunpack.c.l.b16 %v1906
        %v2625 = vunpack.c.l.b16 %v1907
        %v2626 = vpack.c.b16 %v2563, %v2562
        %v2627 = vpack.c.b16 %v2565, %v2564
        %v2628 = vpack.c.b16 %v2567, %v2566
        %v2629 = vpack.c.b16 %v2569, %v2568
        %v2630 = vpack.c.b16 %v2571, %v2570
        %v2631 = vpack.c.b16 %v2573, %v2572
        %v2632 = vpack.c.b16 %v2575, %v2574
        %v2633 = vpack.c.b16 %v2577, %v2576
        %v2634 = vpack.c.b16 %v2579, %v2578
        %v2635 = vpack.c.b16 %v2581, %v2580
        %v2636 = vpack.c.b16 %v2583, %v2582
        %v2637 = vpack.c.b16 %v2585, %v2584
        %v2638 = vpack.c.b16 %v2587, %v2586
        %v2639 = vpack.c.b16 %v2589, %v2588
        %v2640 = vpack.c.b16 %v2591, %v2590
        %v2641 = vpack.c.b16 %v2593, %v2592
        %v2642 = vpack.c.b16 %v2595, %v2594
        %v2643 = vpack.c.b16 %v2597, %v2596
        %v2644 = vpack.c.b16 %v2599, %v2598
        %v2645 = vpack.c.b16 %v2601, %v2600
        %v2646 = vpack.c.b16 %v2603, %v2602
        %v2647 = vpack.c.b16 %v2605, %v2604
        %v2648 = vpack.c.b16 %v2607, %v2606
        %v2649 = vpack.c.b16 %v2609, %v2608
        %v2650 = vpack.c.b16 %v2611, %v2610
        %v2651 = vpack.c.b16 %v2613, %v2612
        %v2652 = vpack.c.b16 %v2615, %v2614
        %v2653 = vpack.c.b16 %v2617, %v2616
        %v2654 = vpack.c.b16 %v2619, %v2618
        %v2655 = vpack.c.b16 %v2621, %v2620
        %v2656 = vpack.c.b16 %v2623, %v2622
        %v2657 = vpack.c.b16 %v2625, %v2624
        %2690 = vmatprep.subr.bf16.mxu0 0
        %2691 = vmatpush1.bf16.msra.mxu0 %v2626
        %2692 = vmatprep.subr.bf16.mxu0 0
        %2693 = vmatpush1.bf16.msra.mxu0 %v2627
        %2694 = vmatprep.subr.bf16.mxu0 0
        %2695 = vmatpush1.bf16.msra.mxu0 %v2628
        %2696 = vmatprep.subr.bf16.mxu0 0
        %2697 = vmatpush1.bf16.msra.mxu0 %v2629
        %2698 = vmatprep.subr.bf16.mxu0 0
        %2699 = vmatpush1.bf16.msra.mxu0 %v2630
        %2700 = vmatprep.subr.bf16.mxu0 0
        %2701 = vmatpush1.bf16.msra.mxu0 %v2631
        %2702 = vmatprep.subr.bf16.mxu0 0
        %2703 = vmatpush1.bf16.msra.mxu0 %v2632
        %2704 = vmatprep.subr.bf16.mxu0 0
        %2705 = vmatpush1.bf16.msra.mxu0 %v2633
        %2706 = vmatprep.subr.bf16.mxu0 0
        %2707 = vmatpush1.bf16.msra.mxu0 %v2634
        %2708 = vmatprep.subr.bf16.mxu0 0
        %2709 = vmatpush1.bf16.msra.mxu0 %v2635
        %2710 = vmatprep.subr.bf16.mxu0 0
        %2711 = vmatpush1.bf16.msra.mxu0 %v2636
        %2712 = vmatprep.subr.bf16.mxu0 0
        %2713 = vmatpush1.bf16.msra.mxu0 %v2637
        %2714 = vmatprep.subr.bf16.mxu0 0
        %2715 = vmatpush1.bf16.msra.mxu0 %v2638
        %2716 = vmatprep.subr.bf16.mxu0 0
        %2717 = vmatpush1.bf16.msra.mxu0 %v2639
        %2718 = vmatprep.subr.bf16.mxu0 0
        %2719 = vmatpush1.bf16.msra.mxu0 %v2640
        %2720 = vmatprep.subr.bf16.mxu0 0
        %2721 = vmatpush1.bf16.msra.mxu0 %v2641
        %2722 = vmatprep.mubr.bf16.mxu0 %v1909
        %2723 = vmatmul.mubr.bf16.gmra.mrb[0].mxu0 %v1908
        %v2724 = vpop.f32.mrb[0].mxu0
        %v2725 = vadd.f32 %v2492, %v2724
        %v2726 = vpop.f32.mrb[0].mxu0
        %v2727 = vpop.f32.mrb[0].mxu0
        %v2728 = vadd.f32 %v2495, %v2727
        %v2729 = vpop.f32.mrb[0].mxu0
        %2730 = vdwg.mxu0
        %2731 = vmatprep.subr.bf16.mxu0 0
        %2732 = vmatpush1.bf16.msra.mxu0 %v2642
        %2733 = vmatprep.subr.bf16.mxu0 0
        %2734 = vmatpush1.bf16.msra.mxu0 %v2643
        %2735 = vmatprep.subr.bf16.mxu0 0
        %2736 = vmatpush1.bf16.msra.mxu0 %v2644
        %2737 = vmatprep.subr.bf16.mxu0 0
        %2738 = vmatpush1.bf16.msra.mxu0 %v2645
        %2739 = vmatprep.subr.bf16.mxu0 0
        %2740 = vmatpush1.bf16.msra.mxu0 %v2646
        %2741 = vmatprep.subr.bf16.mxu0 0
        %2742 = vmatpush1.bf16.msra.mxu0 %v2647
        %2743 = vmatprep.subr.bf16.mxu0 0
        %2744 = vmatpush1.bf16.msra.mxu0 %v2648
        %2745 = vmatprep.subr.bf16.mxu0 0
        %2746 = vmatpush1.bf16.msra.mxu0 %v2649
        %2747 = vmatprep.subr.bf16.mxu0 0
        %2748 = vmatpush1.bf16.msra.mxu0 %v2650
        %2749 = vmatprep.subr.bf16.mxu0 0
        %2750 = vmatpush1.bf16.msra.mxu0 %v2651
        %2751 = vmatprep.subr.bf16.mxu0 0
        %2752 = vmatpush1.bf16.msra.mxu0 %v2652
        %2753 = vmatprep.subr.bf16.mxu0 0
        %2754 = vmatpush1.bf16.msra.mxu0 %v2653
        %2755 = vmatprep.subr.bf16.mxu0 0
        %2756 = vmatpush1.bf16.msra.mxu0 %v2654
        %2757 = vmatprep.subr.bf16.mxu0 0
        %2758 = vmatpush1.bf16.msra.mxu0 %v2655
        %2759 = vmatprep.subr.bf16.mxu0 0
        %2760 = vmatpush1.bf16.msra.mxu0 %v2656
        %2761 = vmatprep.subr.bf16.mxu0 0
        %2762 = vmatpush1.bf16.msra.mxu0 %v2657
        %2763 = vmatprep.mubr.bf16.mxu0 %v1911
        %2764 = vmatmul.mubr.bf16.gmra.mrb[0].mxu0 %v1910
        %v2765 = vpop.f32.mrb[0].mxu0
        %v2766 = vadd.f32 %v2725, %v2765
        %v2767 = vpop.f32.mrb[0].mxu0
        %v2768 = vpop.f32.mrb[0].mxu0
        %v2769 = vadd.f32 %v2728, %v2768
        %v2770 = vpop.f32.mrb[0].mxu0
        %2771 = vdwg.mxu0
        %v2772 = vld [vmem:[%s15 + $0x20] sm:$0xff]
        %v2773 = vld [vmem:[%s15 + $0x28] sm:$0xff]
        %v2774 = vld [vmem:[%s15 + $0x80] sm:$0xff]
        %v2775 = vld [vmem:[%s15 + $0x88] sm:$0xff]
        %v2776 = vld [vmem:[%s15 + $0xe0] sm:$0xff]
        %v2777 = vld [vmem:[%s15 + $0xe8] sm:$0xff]
        %v2778 = vld [vmem:[%s15 + $0x140] sm:$0xff]
        %v2779 = vld [vmem:[%s15 + $0x148] sm:$0xff]
        %v2780 = vld [vmem:[%s15 + $0x1a0] sm:$0xff]
        %v2781 = vld [vmem:[%s15 + $0x1a8] sm:$0xff]
        %v2782 = vld [vmem:[%s15 + $0x200] sm:$0xff]
        %v2783 = vld [vmem:[%s15 + $0x208] sm:$0xff]
        %v2784 = vld [vmem:[%s15 + $0x260] sm:$0xff]
        %v2785 = vld [vmem:[%s15 + $0x268] sm:$0xff]
        %v2786 = vld [vmem:[%s15 + $0x2c0] sm:$0xff]
        %v2787 = vld [vmem:[%s15 + $0x2c8] sm:$0xff]
        %v2788 = vld [vmem:[%s16 + $0x8] sm:$0xf]
        %v2790 = vlaneseq
        %v2791 = vshrl.u32 %v2790, 7
        %v2792 = vsub.s32 0, %v2791
        %v2793 = vrot.slane %v2788, %v2792
        %v2794 = vlaneseq
        %v2795 = vshrl.u32 %v2794, 7
        %v2796 = vsub.s32 1, %v2795
        %v2797 = vrot.slane %v2788, %v2796
        %v2798 = vlaneseq
        %v2799 = vshrl.u32 %v2798, 7
        %v2800 = vsub.s32 2, %v2799
        %v2801 = vrot.slane %v2788, %v2800
        %v2802 = vlaneseq
        %v2803 = vshrl.u32 %v2802, 7
        %v2804 = vsub.s32 3, %v2803
        %v2805 = vrot.slane %v2788, %v2804
        %v2826 = vunpack.c.l.b16 %v2772
        %v2827 = vunpack.c.h.b16 %v2772
        %v2828 = vunpack.c.l.b16 %v2773
        %v2829 = vunpack.c.h.b16 %v2773
        %v2830 = vunpack.c.l.b16 %v2774
        %v2831 = vunpack.c.h.b16 %v2774
        %v2832 = vunpack.c.l.b16 %v2775
        %v2833 = vunpack.c.h.b16 %v2775
        %v2834 = vunpack.c.l.b16 %v2776
        %v2835 = vunpack.c.h.b16 %v2776
        %v2836 = vunpack.c.l.b16 %v2777
        %v2837 = vunpack.c.h.b16 %v2777
        %v2838 = vunpack.c.l.b16 %v2778
        %v2839 = vunpack.c.h.b16 %v2778
        %v2840 = vunpack.c.l.b16 %v2779
        %v2841 = vunpack.c.h.b16 %v2779
        %v2842 = vunpack.c.l.b16 %v2780
        %v2843 = vunpack.c.h.b16 %v2780
        %v2844 = vunpack.c.l.b16 %v2781
        %v2845 = vunpack.c.h.b16 %v2781
        %v2846 = vunpack.c.l.b16 %v2782
        %v2847 = vunpack.c.h.b16 %v2782
        %v2848 = vunpack.c.l.b16 %v2783
        %v2849 = vunpack.c.h.b16 %v2783
        %v2850 = vunpack.c.l.b16 %v2784
        %v2851 = vunpack.c.h.b16 %v2784
        %v2852 = vunpack.c.l.b16 %v2785
        %v2853 = vunpack.c.h.b16 %v2785
        %v2854 = vunpack.c.l.b16 %v2786
        %v2855 = vunpack.c.h.b16 %v2786
        %v2856 = vunpack.c.l.b16 %v2787
        %v2857 = vunpack.c.h.b16 %v2787
        %v2858 = vpack.c.b16 %v2830, %v2826
        %v2859 = vpack.c.b16 %v2831, %v2827
        %v2860 = vpack.c.b16 %v2832, %v2828
        %v2861 = vpack.c.b16 %v2833, %v2829
        %v2862 = vpack.c.b16 %v2838, %v2834
        %v2863 = vpack.c.b16 %v2839, %v2835
        %v2864 = vpack.c.b16 %v2840, %v2836
        %v2865 = vpack.c.b16 %v2841, %v2837
        %v2866 = vpack.c.b16 %v2846, %v2842
        %v2867 = vpack.c.b16 %v2847, %v2843
        %v2868 = vpack.c.b16 %v2848, %v2844
        %v2869 = vpack.c.b16 %v2849, %v2845
        %v2870 = vpack.c.b16 %v2854, %v2850
        %v2871 = vpack.c.b16 %v2855, %v2851
        %v2872 = vpack.c.b16 %v2856, %v2852
        %v2873 = vpack.c.b16 %v2857, %v2853
        %2890 = vmatprep.subr.bf16.mxu0 %v2859
        %2891 = vmatpush1.bf16.msra.mxu0 %v2858
        %2892 = vmatprep.subr.bf16.mxu0 %v2863
        %2893 = vmatpush1.bf16.msra.mxu0 %v2862
        %2894 = vmatprep.subr.bf16.mxu0 %v2867
        %2895 = vmatpush1.bf16.msra.mxu0 %v2866
        %2896 = vmatprep.subr.bf16.mxu0 %v2871
        %2897 = vmatpush1.bf16.msra.mxu0 %v2870
        %2898 = vmatprep.subr.bf16.mxu0 0
        %2899 = vmatpush1.bf16.msra.mxu0 0
        %2900 = vmatprep.subr.bf16.mxu0 0
        %2901 = vmatpush1.bf16.msra.mxu0 0
        %2902 = vmatprep.subr.bf16.mxu0 0
        %2903 = vmatpush1.bf16.msra.mxu0 0
        %2904 = vmatprep.subr.bf16.mxu0 0
        %2905 = vmatpush1.bf16.msra.mxu0 0
        %2906 = vmatprep.subr.bf16.mxu0 0
        %2907 = vmatpush1.bf16.msra.mxu0 0
        %2908 = vmatprep.subr.bf16.mxu0 0
        %2909 = vmatpush1.bf16.msra.mxu0 0
        %2910 = vmatprep.subr.bf16.mxu0 0
        %2911 = vmatpush1.bf16.msra.mxu0 0
        %2912 = vmatprep.subr.bf16.mxu0 0
        %2913 = vmatpush1.bf16.msra.mxu0 0
        %2914 = vmatprep.subr.bf16.mxu0 0
        %2915 = vmatpush1.bf16.msra.mxu0 0
        %2916 = vmatprep.subr.bf16.mxu0 0
        %2917 = vmatpush1.bf16.msra.mxu0 0
        %2918 = vmatprep.subr.bf16.mxu0 0
        %2919 = vmatpush1.bf16.msra.mxu0 0
        %2920 = vmatprep.subr.bf16.mxu0 0
        %2921 = vmatpush1.bf16.msra.mxu0 0
        %2922 = vmatprep.mubr.bf16.mxu0 0
        %2923 = vmatmul.mubr.bf16.gmra.mrb[0].mxu0 %v1716
        %v2924 = vpop.f32.mrb[0].mxu0
        %v2925 = vadd.f32 %v2793, %v2924
        %v2926 = vpop.f32.mrb[0].mxu0
        %v2927 = vadd.f32 %v2797, %v2926
        %v2928 = vpop.f32.mrb[0].mxu0
        %v2929 = vadd.f32 %v2793, %v2928
        %v2930 = vpop.f32.mrb[0].mxu0
        %v2931 = vadd.f32 %v2797, %v2930
        %2932 = vdwg.mxu0
        %2933 = vmatprep.subr.bf16.mxu0 %v2861
        %2934 = vmatpush1.bf16.msra.mxu0 %v2860
        %2935 = vmatprep.subr.bf16.mxu0 %v2865
        %2936 = vmatpush1.bf16.msra.mxu0 %v2864
        %2937 = vmatprep.subr.bf16.mxu0 %v2869
        %2938 = vmatpush1.bf16.msra.mxu0 %v2868
        %2939 = vmatprep.subr.bf16.mxu0 %v2873
        %2940 = vmatpush1.bf16.msra.mxu0 %v2872
        %2941 = vmatprep.subr.bf16.mxu0 0
        %2942 = vmatpush1.bf16.msra.mxu0 0
        %2943 = vmatprep.subr.bf16.mxu0 0
        %2944 = vmatpush1.bf16.msra.mxu0 0
        %2945 = vmatprep.subr.bf16.mxu0 0
        %2946 = vmatpush1.bf16.msra.mxu0 0
        %2947 = vmatprep.subr.bf16.mxu0 0
        %2948 = vmatpush1.bf16.msra.mxu0 0
        %2949 = vmatprep.subr.bf16.mxu0 0
        %2950 = vmatpush1.bf16.msra.mxu0 0
        %2951 = vmatprep.subr.bf16.mxu0 0
        %2952 = vmatpush1.bf16.msra.mxu0 0
        %2953 = vmatprep.subr.bf16.mxu0 0
        %2954 = vmatpush1.bf16.msra.mxu0 0
        %2955 = vmatprep.subr.bf16.mxu0 0
        %2956 = vmatpush1.bf16.msra.mxu0 0
        %2957 = vmatprep.subr.bf16.mxu0 0
        %2958 = vmatpush1.bf16.msra.mxu0 0
        %2959 = vmatprep.subr.bf16.mxu0 0
        %2960 = vmatpush1.bf16.msra.mxu0 0
        %2961 = vmatprep.subr.bf16.mxu0 0
        %2962 = vmatpush1.bf16.msra.mxu0 0
        %2963 = vmatprep.subr.bf16.mxu0 0
        %2964 = vmatpush1.bf16.msra.mxu0 0
        %2965 = vmatprep.mubr.bf16.mxu0 0
        %2966 = vmatmul.mubr.bf16.gmra.mrb[0].mxu0 %v1716
        %v2967 = vpop.f32.mrb[0].mxu0
        %v2968 = vadd.f32 %v2801, %v2967
        %v2969 = vpop.f32.mrb[0].mxu0
        %v2970 = vadd.f32 %v2805, %v2969
        %v2971 = vpop.f32.mrb[0].mxu0
        %v2972 = vadd.f32 %v2801, %v2971
        %v2973 = vpop.f32.mrb[0].mxu0
        %v2974 = vadd.f32 %v2805, %v2973
        %2975 = vdwg.mxu0
        %v2976 = vmul.f32 %v2925, 0.5
        %v2977 = vmul.f32 %v2927, 0.5
        %v2978 = vmul.f32 %v2968, 0.5
        %v2979 = vmul.f32 %v2970, 0.5
        %v2980 = vmul.f32 %v2929, 0.5
        %v2981 = vmul.f32 %v2931, 0.5
        %v2982 = vmul.f32 %v2972, 0.5
        %v2983 = vmul.f32 %v2974, 0.5
        %v2984 = vmul.f32 %v2925, 0.70710677
        %v2985 = vmul.f32 %v2927, 0.70710677
        %v2986 = vmul.f32 %v2968, 0.70710677
        %v2987 = vmul.f32 %v2970, 0.70710677
        %v2988 = vmul.f32 %v2929, 0.70710677
        %v2989 = vmul.f32 %v2931, 0.70710677
        %v2990 = vmul.f32 %v2972, 0.70710677
        %v2991 = vmul.f32 %v2974, 0.70710677
        %v2992 = verf.f32.pop %v2984
        %v2993 = verf.f32.pop %v2985
        %v2994 = verf.f32.pop %v2986
        %v2995 = verf.f32.pop %v2987
        %v2996 = verf.f32.pop %v2988
        %v2997 = verf.f32.pop %v2989
        %v2998 = verf.f32.pop %v2990
        %v2999 = verf.f32.pop %v2991
        %v3000 = vadd.f32 %v2992, 1.0
        %v3001 = vadd.f32 %v2993, 1.0
        %v3002 = vadd.f32 %v2994, 1.0
        %v3003 = vadd.f32 %v2995, 1.0
        %v3004 = vadd.f32 %v2996, 1.0
        %v3005 = vadd.f32 %v2997, 1.0
        %v3006 = vadd.f32 %v2998, 1.0
        %v3007 = vadd.f32 %v2999, 1.0
        %v3008 = vmul.f32 %v2976, %v3000
        %v3009 = vmul.f32 %v2977, %v3001
        %v3010 = vmul.f32 %v2978, %v3002
        %v3011 = vmul.f32 %v2979, %v3003
        %v3012 = vmul.f32 %v2980, %v3004
        %v3013 = vmul.f32 %v2981, %v3005
        %v3014 = vmul.f32 %v2982, %v3006
        %v3015 = vmul.f32 %v2983, %v3007
        %v3016 = vld [vmem:[%s17 + $0x200] sm:$0xf]
        %v3017 = vld [vmem:[%s17 + $0x204] sm:$0xf]
        %v3018 = vld [vmem:[%s17 + $0x208] sm:$0xf]
        %v3019 = vld [vmem:[%s17 + $0x20c] sm:$0xf]
        %v3020 = vld [vmem:[%s17 + $0x210] sm:$0xf]
        %v3021 = vld [vmem:[%s17 + $0x214] sm:$0xf]
        %v3022 = vld [vmem:[%s17 + $0x218] sm:$0xf]
        %v3023 = vld [vmem:[%s17 + $0x21c] sm:$0xf]
        %v3024 = vld [vmem:[%s17 + $0x220] sm:$0xf]
        %v3025 = vld [vmem:[%s17 + $0x224] sm:$0xf]
        %v3026 = vld [vmem:[%s17 + $0x228] sm:$0xf]
        %v3027 = vld [vmem:[%s17 + $0x22c] sm:$0xf]
        %v3028 = vld [vmem:[%s17 + $0x230] sm:$0xf]
        %v3029 = vld [vmem:[%s17 + $0x234] sm:$0xf]
        %v3030 = vld [vmem:[%s17 + $0x238] sm:$0xf]
        %v3031 = vld [vmem:[%s17 + $0x23c] sm:$0xf]
        %v3032 = vld [vmem:[%s17 + $0x240] sm:$0xf]
        %v3033 = vld [vmem:[%s17 + $0x244] sm:$0xf]
        %v3034 = vld [vmem:[%s17 + $0x248] sm:$0xf]
        %v3035 = vld [vmem:[%s17 + $0x24c] sm:$0xf]
        %v3036 = vld [vmem:[%s17 + $0x250] sm:$0xf]
        %v3037 = vld [vmem:[%s17 + $0x254] sm:$0xf]
        %v3038 = vld [vmem:[%s17 + $0x258] sm:$0xf]
        %v3039 = vld [vmem:[%s17 + $0x25c] sm:$0xf]
        %v3040 = vld [vmem:[%s17 + $0x260] sm:$0xf]
        %v3041 = vld [vmem:[%s17 + $0x264] sm:$0xf]
        %v3042 = vld [vmem:[%s17 + $0x268] sm:$0xf]
        %v3043 = vld [vmem:[%s17 + $0x26c] sm:$0xf]
        %v3044 = vld [vmem:[%s17 + $0x270] sm:$0xf]
        %v3045 = vld [vmem:[%s17 + $0x274] sm:$0xf]
        %v3046 = vld [vmem:[%s17 + $0x278] sm:$0xf]
        %v3047 = vld [vmem:[%s17 + $0x27c] sm:$0xf]
        %v3048 = vld [vmem:[%s17 + $0x280] sm:$0xf]
        %v3049 = vld [vmem:[%s17 + $0x284] sm:$0xf]
        %v3050 = vld [vmem:[%s17 + $0x288] sm:$0xf]
        %v3051 = vld [vmem:[%s17 + $0x28c] sm:$0xf]
        %v3052 = vld [vmem:[%s17 + $0x290] sm:$0xf]
        %v3053 = vld [vmem:[%s17 + $0x294] sm:$0xf]
        %v3054 = vld [vmem:[%s17 + $0x298] sm:$0xf]
        %v3055 = vld [vmem:[%s17 + $0x29c] sm:$0xf]
        %v3056 = vld [vmem:[%s17 + $0x2a0] sm:$0xf]
        %v3057 = vld [vmem:[%s17 + $0x2a4] sm:$0xf]
        %v3058 = vld [vmem:[%s17 + $0x2a8] sm:$0xf]
        %v3059 = vld [vmem:[%s17 + $0x2ac] sm:$0xf]
        %v3060 = vld [vmem:[%s17 + $0x2b0] sm:$0xf]
        %v3061 = vld [vmem:[%s17 + $0x2b4] sm:$0xf]
        %v3062 = vld [vmem:[%s17 + $0x2b8] sm:$0xf]
        %v3063 = vld [vmem:[%s17 + $0x2bc] sm:$0xf]
        %v3064 = vld [vmem:[%s17 + $0x2c0] sm:$0xf]
        %v3065 = vld [vmem:[%s17 + $0x2c4] sm:$0xf]
        %v3066 = vld [vmem:[%s17 + $0x2c8] sm:$0xf]
        %v3067 = vld [vmem:[%s17 + $0x2cc] sm:$0xf]
        %v3068 = vld [vmem:[%s17 + $0x2d0] sm:$0xf]
        %v3069 = vld [vmem:[%s17 + $0x2d4] sm:$0xf]
        %v3070 = vld [vmem:[%s17 + $0x2d8] sm:$0xf]
        %v3071 = vld [vmem:[%s17 + $0x2dc] sm:$0xf]
        %v3072 = vld [vmem:[%s17 + $0x2e0] sm:$0xf]
        %v3073 = vld [vmem:[%s17 + $0x2e4] sm:$0xf]
        %v3074 = vld [vmem:[%s17 + $0x2e8] sm:$0xf]
        %v3075 = vld [vmem:[%s17 + $0x2ec] sm:$0xf]
        %v3076 = vld [vmem:[%s17 + $0x2f0] sm:$0xf]
        %v3077 = vld [vmem:[%s17 + $0x2f4] sm:$0xf]
        %v3078 = vld [vmem:[%s17 + $0x2f8] sm:$0xf]
        %v3079 = vld [vmem:[%s17 + $0x2fc] sm:$0xf]
        %v3080 = vpack.c.bf16 %v3012, %v3008
        %v3081 = vpack.c.bf16 %v3013, %v3009
        %v3082 = vpack.c.bf16 %v3014, %v3010
        %v3083 = vpack.c.bf16 %v3015, %v3011
        %v3148 = vunpack.c.l.b16 %v3016
        %v3149 = vunpack.c.l.b16 %v3017
        %v3150 = vunpack.c.l.b16 %v3018
        %v3151 = vunpack.c.l.b16 %v3019
        %v3152 = vunpack.c.l.b16 %v3020
        %v3153 = vunpack.c.l.b16 %v3021
        %v3154 = vunpack.c.l.b16 %v3022
        %v3155 = vunpack.c.l.b16 %v3023
        %v3156 = vunpack.c.l.b16 %v3024
        %v3157 = vunpack.c.l.b16 %v3025
        %v3158 = vunpack.c.l.b16 %v3026
        %v3159 = vunpack.c.l.b16 %v3027
        %v3160 = vunpack.c.l.b16 %v3028
        %v3161 = vunpack.c.l.b16 %v3029
        %v3162 = vunpack.c.l.b16 %v3030
        %v3163 = vunpack.c.l.b16 %v3031
        %v3164 = vunpack.c.l.b16 %v3032
        %v3165 = vunpack.c.l.b16 %v3033
        %v3166 = vunpack.c.l.b16 %v3034
        %v3167 = vunpack.c.l.b16 %v3035
        %v3168 = vunpack.c.l.b16 %v3036
        %v3169 = vunpack.c.l.b16 %v3037
        %v3170 = vunpack.c.l.b16 %v3038
        %v3171 = vunpack.c.l.b16 %v3039
        %v3172 = vunpack.c.l.b16 %v3040
        %v3173 = vunpack.c.l.b16 %v3041
        %v3174 = vunpack.c.l.b16 %v3042
        %v3175 = vunpack.c.l.b16 %v3043
        %v3176 = vunpack.c.l.b16 %v3044
        %v3177 = vunpack.c.l.b16 %v3045
        %v3178 = vunpack.c.l.b16 %v3046
        %v3179 = vunpack.c.l.b16 %v3047
        %v3180 = vunpack.c.l.b16 %v3048
        %v3181 = vunpack.c.l.b16 %v3049
        %v3182 = vunpack.c.l.b16 %v3050
        %v3183 = vunpack.c.l.b16 %v3051
        %v3184 = vunpack.c.l.b16 %v3052
        %v3185 = vunpack.c.l.b16 %v3053
        %v3186 = vunpack.c.l.b16 %v3054
        %v3187 = vunpack.c.l.b16 %v3055
        %v3188 = vunpack.c.l.b16 %v3056
        %v3189 = vunpack.c.l.b16 %v3057
        %v3190 = vunpack.c.l.b16 %v3058
        %v3191 = vunpack.c.l.b16 %v3059
        %v3192 = vunpack.c.l.b16 %v3060
        %v3193 = vunpack.c.l.b16 %v3061
        %v3194 = vunpack.c.l.b16 %v3062
        %v3195 = vunpack.c.l.b16 %v3063
        %v3196 = vunpack.c.l.b16 %v3064
        %v3197 = vunpack.c.l.b16 %v3065
        %v3198 = vunpack.c.l.b16 %v3066
        %v3199 = vunpack.c.l.b16 %v3067
        %v3200 = vunpack.c.l.b16 %v3068
        %v3201 = vunpack.c.l.b16 %v3069
        %v3202 = vunpack.c.l.b16 %v3070
        %v3203 = vunpack.c.l.b16 %v3071
        %v3204 = vunpack.c.l.b16 %v3072
        %v3205 = vunpack.c.l.b16 %v3073
        %v3206 = vunpack.c.l.b16 %v3074
        %v3207 = vunpack.c.l.b16 %v3075
        %v3208 = vunpack.c.l.b16 %v3076
        %v3209 = vunpack.c.l.b16 %v3077
        %v3210 = vunpack.c.l.b16 %v3078
        %v3211 = vunpack.c.l.b16 %v3079
        %v3212 = vpack.c.b16 %v3149, %v3148
        %v3213 = vpack.c.b16 %v3151, %v3150
        %v3214 = vpack.c.b16 %v3153, %v3152
        %v3215 = vpack.c.b16 %v3155, %v3154
        %v3216 = vpack.c.b16 %v3157, %v3156
        %v3217 = vpack.c.b16 %v3159, %v3158
        %v3218 = vpack.c.b16 %v3161, %v3160
        %v3219 = vpack.c.b16 %v3163, %v3162
        %v3220 = vpack.c.b16 %v3165, %v3164
        %v3221 = vpack.c.b16 %v3167, %v3166
        %v3222 = vpack.c.b16 %v3169, %v3168
        %v3223 = vpack.c.b16 %v3171, %v3170
        %v3224 = vpack.c.b16 %v3173, %v3172
        %v3225 = vpack.c.b16 %v3175, %v3174
        %v3226 = vpack.c.b16 %v3177, %v3176
        %v3227 = vpack.c.b16 %v3179, %v3178
        %v3228 = vpack.c.b16 %v3181, %v3180
        %v3229 = vpack.c.b16 %v3183, %v3182
        %v3230 = vpack.c.b16 %v3185, %v3184
        %v3231 = vpack.c.b16 %v3187, %v3186
        %v3232 = vpack.c.b16 %v3189, %v3188
        %v3233 = vpack.c.b16 %v3191, %v3190
        %v3234 = vpack.c.b16 %v3193, %v3192
        %v3235 = vpack.c.b16 %v3195, %v3194
        %v3236 = vpack.c.b16 %v3197, %v3196
        %v3237 = vpack.c.b16 %v3199, %v3198
        %v3238 = vpack.c.b16 %v3201, %v3200
        %v3239 = vpack.c.b16 %v3203, %v3202
        %v3240 = vpack.c.b16 %v3205, %v3204
        %v3241 = vpack.c.b16 %v3207, %v3206
        %v3242 = vpack.c.b16 %v3209, %v3208
        %v3243 = vpack.c.b16 %v3211, %v3210
        %3276 = vmatprep.subr.bf16.mxu0 0
        %3277 = vmatpush1.bf16.msra.mxu0 %v3212
        %3278 = vmatprep.subr.bf16.mxu0 0
        %3279 = vmatpush1.bf16.msra.mxu0 %v3213
        %3280 = vmatprep.subr.bf16.mxu0 0
        %3281 = vmatpush1.bf16.msra.mxu0 %v3214
        %3282 = vmatprep.subr.bf16.mxu0 0
        %3283 = vmatpush1.bf16.msra.mxu0 %v3215
        %3284 = vmatprep.subr.bf16.mxu0 0
        %3285 = vmatpush1.bf16.msra.mxu0 %v3216
        %3286 = vmatprep.subr.bf16.mxu0 0
        %3287 = vmatpush1.bf16.msra.mxu0 %v3217
        %3288 = vmatprep.subr.bf16.mxu0 0
        %3289 = vmatpush1.bf16.msra.mxu0 %v3218
        %3290 = vmatprep.subr.bf16.mxu0 0
        %3291 = vmatpush1.bf16.msra.mxu0 %v3219
        %3292 = vmatprep.subr.bf16.mxu0 0
        %3293 = vmatpush1.bf16.msra.mxu0 %v3220
        %3294 = vmatprep.subr.bf16.mxu0 0
        %3295 = vmatpush1.bf16.msra.mxu0 %v3221
        %3296 = vmatprep.subr.bf16.mxu0 0
        %3297 = vmatpush1.bf16.msra.mxu0 %v3222
        %3298 = vmatprep.subr.bf16.mxu0 0
        %3299 = vmatpush1.bf16.msra.mxu0 %v3223
        %3300 = vmatprep.subr.bf16.mxu0 0
        %3301 = vmatpush1.bf16.msra.mxu0 %v3224
        %3302 = vmatprep.subr.bf16.mxu0 0
        %3303 = vmatpush1.bf16.msra.mxu0 %v3225
        %3304 = vmatprep.subr.bf16.mxu0 0
        %3305 = vmatpush1.bf16.msra.mxu0 %v3226
        %3306 = vmatprep.subr.bf16.mxu0 0
        %3307 = vmatpush1.bf16.msra.mxu0 %v3227
        %3308 = vmatprep.mubr.bf16.mxu0 %v3081
        %3309 = vmatmul.mubr.bf16.gmra.mrb[0].mxu0 %v3080
        %v3310 = vpop.f32.mrb[0].mxu0
        %v3311 = vadd.f32 0.0, %v3310
        %v3312 = vpop.f32.mrb[0].mxu0
        %v3313 = vpop.f32.mrb[0].mxu0
        %v3314 = vadd.f32 0.0, %v3313
        %v3315 = vpop.f32.mrb[0].mxu0
        %3316 = vdwg.mxu0
        %3317 = vmatprep.subr.bf16.mxu0 0
        %3318 = vmatpush1.bf16.msra.mxu0 %v3228
        %3319 = vmatprep.subr.bf16.mxu0 0
        %3320 = vmatpush1.bf16.msra.mxu0 %v3229
        %3321 = vmatprep.subr.bf16.mxu0 0
        %3322 = vmatpush1.bf16.msra.mxu0 %v3230
        %3323 = vmatprep.subr.bf16.mxu0 0
        %3324 = vmatpush1.bf16.msra.mxu0 %v3231
        %3325 = vmatprep.subr.bf16.mxu0 0
        %3326 = vmatpush1.bf16.msra.mxu0 %v3232
        %3327 = vmatprep.subr.bf16.mxu0 0
        %3328 = vmatpush1.bf16.msra.mxu0 %v3233
        %3329 = vmatprep.subr.bf16.mxu0 0
        %3330 = vmatpush1.bf16.msra.mxu0 %v3234
        %3331 = vmatprep.subr.bf16.mxu0 0
        %3332 = vmatpush1.bf16.msra.mxu0 %v3235
        %3333 = vmatprep.subr.bf16.mxu0 0
        %3334 = vmatpush1.bf16.msra.mxu0 %v3236
        %3335 = vmatprep.subr.bf16.mxu0 0
        %3336 = vmatpush1.bf16.msra.mxu0 %v3237
        %3337 = vmatprep.subr.bf16.mxu0 0
        %3338 = vmatpush1.bf16.msra.mxu0 %v3238
        %3339 = vmatprep.subr.bf16.mxu0 0
        %3340 = vmatpush1.bf16.msra.mxu0 %v3239
        %3341 = vmatprep.subr.bf16.mxu0 0
        %3342 = vmatpush1.bf16.msra.mxu0 %v3240
        %3343 = vmatprep.subr.bf16.mxu0 0
        %3344 = vmatpush1.bf16.msra.mxu0 %v3241
        %3345 = vmatprep.subr.bf16.mxu0 0
        %3346 = vmatpush1.bf16.msra.mxu0 %v3242
        %3347 = vmatprep.subr.bf16.mxu0 0
        %3348 = vmatpush1.bf16.msra.mxu0 %v3243
        %3349 = vmatprep.mubr.bf16.mxu0 %v3083
        %3350 = vmatmul.mubr.bf16.gmra.mrb[0].mxu0 %v3082
        %v3351 = vpop.f32.mrb[0].mxu0
        %v3352 = vadd.f32 %v3311, %v3351
        %v3353 = vpop.f32.mrb[0].mxu0
        %v3354 = vpop.f32.mrb[0].mxu0
        %v3355 = vadd.f32 %v3314, %v3354
        %v3356 = vpop.f32.mrb[0].mxu0
        %3357 = vdwg.mxu0
        %v3358 = vadd.f32 %v2766, %v3352
        %v3359 = vadd.f32 %v2769, %v3355
        %v3360 = vld [vmem:[%s15 + $0x30] sm:$0xff]
        %v3361 = vld [vmem:[%s15 + $0x38] sm:$0xff]
        %v3362 = vld [vmem:[%s15 + $0x90] sm:$0xff]
        %v3363 = vld [vmem:[%s15 + $0x98] sm:$0xff]
        %v3364 = vld [vmem:[%s15 + $0xf0] sm:$0xff]
        %v3365 = vld [vmem:[%s15 + $0xf8] sm:$0xff]
        %v3366 = vld [vmem:[%s15 + $0x150] sm:$0xff]
        %v3367 = vld [vmem:[%s15 + $0x158] sm:$0xff]
        %v3368 = vld [vmem:[%s15 + $0x1b0] sm:$0xff]
        %v3369 = vld [vmem:[%s15 + $0x1b8] sm:$0xff]
        %v3370 = vld [vmem:[%s15 + $0x210] sm:$0xff]
        %v3371 = vld [vmem:[%s15 + $0x218] sm:$0xff]
        %v3372 = vld [vmem:[%s15 + $0x270] sm:$0xff]
        %v3373 = vld [vmem:[%s15 + $0x278] sm:$0xff]
        %v3374 = vld [vmem:[%s15 + $0x2d0] sm:$0xff]
        %v3375 = vld [vmem:[%s15 + $0x2d8] sm:$0xff]
        %v3376 = vld [vmem:[%s16 + $0xc] sm:$0xf]
        %v3378 = vlaneseq
        %v3379 = vshrl.u32 %v3378, 7
        %v3380 = vsub.s32 0, %v3379
        %v3381 = vrot.slane %v3376, %v3380
        %v3382 = vlaneseq
        %v3383 = vshrl.u32 %v3382, 7
        %v3384 = vsub.s32 1, %v3383
        %v3385 = vrot.slane %v3376, %v3384
        %v3386 = vlaneseq
        %v3387 = vshrl.u32 %v3386, 7
        %v3388 = vsub.s32 2, %v3387
        %v3389 = vrot.slane %v3376, %v3388
        %v3390 = vlaneseq
        %v3391 = vshrl.u32 %v3390, 7
        %v3392 = vsub.s32 3, %v3391
        %v3393 = vrot.slane %v3376, %v3392
        %v3414 = vunpack.c.l.b16 %v3360
        %v3415 = vunpack.c.h.b16 %v3360
        %v3416 = vunpack.c.l.b16 %v3361
        %v3417 = vunpack.c.h.b16 %v3361
        %v3418 = vunpack.c.l.b16 %v3362
        %v3419 = vunpack.c.h.b16 %v3362
        %v3420 = vunpack.c.l.b16 %v3363
        %v3421 = vunpack.c.h.b16 %v3363
        %v3422 = vunpack.c.l.b16 %v3364
        %v3423 = vunpack.c.h.b16 %v3364
        %v3424 = vunpack.c.l.b16 %v3365
        %v3425 = vunpack.c.h.b16 %v3365
        %v3426 = vunpack.c.l.b16 %v3366
        %v3427 = vunpack.c.h.b16 %v3366
        %v3428 = vunpack.c.l.b16 %v3367
        %v3429 = vunpack.c.h.b16 %v3367
        %v3430 = vunpack.c.l.b16 %v3368
        %v3431 = vunpack.c.h.b16 %v3368
        %v3432 = vunpack.c.l.b16 %v3369
        %v3433 = vunpack.c.h.b16 %v3369
        %v3434 = vunpack.c.l.b16 %v3370
        %v3435 = vunpack.c.h.b16 %v3370
        %v3436 = vunpack.c.l.b16 %v3371
        %v3437 = vunpack.c.h.b16 %v3371
        %v3438 = vunpack.c.l.b16 %v3372
        %v3439 = vunpack.c.h.b16 %v3372
        %v3440 = vunpack.c.l.b16 %v3373
        %v3441 = vunpack.c.h.b16 %v3373
        %v3442 = vunpack.c.l.b16 %v3374
        %v3443 = vunpack.c.h.b16 %v3374
        %v3444 = vunpack.c.l.b16 %v3375
        %v3445 = vunpack.c.h.b16 %v3375
        %v3446 = vpack.c.b16 %v3418, %v3414
        %v3447 = vpack.c.b16 %v3419, %v3415
        %v3448 = vpack.c.b16 %v3420, %v3416
        %v3449 = vpack.c.b16 %v3421, %v3417
        %v3450 = vpack.c.b16 %v3426, %v3422
        %v3451 = vpack.c.b16 %v3427, %v3423
        %v3452 = vpack.c.b16 %v3428, %v3424
        %v3453 = vpack.c.b16 %v3429, %v3425
        %v3454 = vpack.c.b16 %v3434, %v3430
        %v3455 = vpack.c.b16 %v3435, %v3431
        %v3456 = vpack.c.b16 %v3436, %v3432
        %v3457 = vpack.c.b16 %v3437, %v3433
        %v3458 = vpack.c.b16 %v3442, %v3438
        %v3459 = vpack.c.b16 %v3443, %v3439
        %v3460 = vpack.c.b16 %v3444, %v3440
        %v3461 = vpack.c.b16 %v3445, %v3441
        %3478 = vmatprep.subr.bf16.mxu0 %v3447
        %3479 = vmatpush1.bf16.msra.mxu0 %v3446
        %3480 = vmatprep.subr.bf16.mxu0 %v3451
        %3481 = vmatpush1.bf16.msra.mxu0 %v3450
        %3482 = vmatprep.subr.bf16.mxu0 %v3455
        %3483 = vmatpush1.bf16.msra.mxu0 %v3454
        %3484 = vmatprep.subr.bf16.mxu0 %v3459
        %3485 = vmatpush1.bf16.msra.mxu0 %v3458
        %3486 = vmatprep.subr.bf16.mxu0 0
        %3487 = vmatpush1.bf16.msra.mxu0 0
        %3488 = vmatprep.subr.bf16.mxu0 0
        %3489 = vmatpush1.bf16.msra.mxu0 0
        %3490 = vmatprep.subr.bf16.mxu0 0
        %3491 = vmatpush1.bf16.msra.mxu0 0
        %3492 = vmatprep.subr.bf16.mxu0 0
        %3493 = vmatpush1.bf16.msra.mxu0 0
        %3494 = vmatprep.subr.bf16.mxu0 0
        %3495 = vmatpush1.bf16.msra.mxu0 0
        %3496 = vmatprep.subr.bf16.mxu0 0
        %3497 = vmatpush1.bf16.msra.mxu0 0
        %3498 = vmatprep.subr.bf16.mxu0 0
        %3499 = vmatpush1.bf16.msra.mxu0 0
        %3500 = vmatprep.subr.bf16.mxu0 0
        %3501 = vmatpush1.bf16.msra.mxu0 0
        %3502 = vmatprep.subr.bf16.mxu0 0
        %3503 = vmatpush1.bf16.msra.mxu0 0
        %3504 = vmatprep.subr.bf16.mxu0 0
        %3505 = vmatpush1.bf16.msra.mxu0 0
        %3506 = vmatprep.subr.bf16.mxu0 0
        %3507 = vmatpush1.bf16.msra.mxu0 0
        %3508 = vmatprep.subr.bf16.mxu0 0
        %3509 = vmatpush1.bf16.msra.mxu0 0
        %3510 = vmatprep.mubr.bf16.mxu0 0
        %3511 = vmatmul.mubr.bf16.gmra.mrb[0].mxu0 %v1716
        %v3512 = vpop.f32.mrb[0].mxu0
        %v3513 = vadd.f32 %v3381, %v3512
        %v3514 = vpop.f32.mrb[0].mxu0
        %v3515 = vadd.f32 %v3385, %v3514
        %v3516 = vpop.f32.mrb[0].mxu0
        %v3517 = vadd.f32 %v3381, %v3516
        %v3518 = vpop.f32.mrb[0].mxu0
        %v3519 = vadd.f32 %v3385, %v3518
        %3520 = vdwg.mxu0
        %3521 = vmatprep.subr.bf16.mxu0 %v3449
        %3522 = vmatpush1.bf16.msra.mxu0 %v3448
        %3523 = vmatprep.subr.bf16.mxu0 %v3453
        %3524 = vmatpush1.bf16.msra.mxu0 %v3452
        %3525 = vmatprep.subr.bf16.mxu0 %v3457
        %3526 = vmatpush1.bf16.msra.mxu0 %v3456
        %3527 = vmatprep.subr.bf16.mxu0 %v3461
        %3528 = vmatpush1.bf16.msra.mxu0 %v3460
        %3529 = vmatprep.subr.bf16.mxu0 0
        %3530 = vmatpush1.bf16.msra.mxu0 0
        %3531 = vmatprep.subr.bf16.mxu0 0
        %3532 = vmatpush1.bf16.msra.mxu0 0
        %3533 = vmatprep.subr.bf16.mxu0 0
        %3534 = vmatpush1.bf16.msra.mxu0 0
        %3535 = vmatprep.subr.bf16.mxu0 0
        %3536 = vmatpush1.bf16.msra.mxu0 0
        %3537 = vmatprep.subr.bf16.mxu0 0
        %3538 = vmatpush1.bf16.msra.mxu0 0
        %3539 = vmatprep.subr.bf16.mxu0 0
        %3540 = vmatpush1.bf16.msra.mxu0 0
        %3541 = vmatprep.subr.bf16.mxu0 0
        %3542 = vmatpush1.bf16.msra.mxu0 0
        %3543 = vmatprep.subr.bf16.mxu0 0
        %3544 = vmatpush1.bf16.msra.mxu0 0
        %3545 = vmatprep.subr.bf16.mxu0 0
        %3546 = vmatpush1.bf16.msra.mxu0 0
        %3547 = vmatprep.subr.bf16.mxu0 0
        %3548 = vmatpush1.bf16.msra.mxu0 0
        %3549 = vmatprep.subr.bf16.mxu0 0
        %3550 = vmatpush1.bf16.msra.mxu0 0
        %3551 = vmatprep.subr.bf16.mxu0 0
        %3552 = vmatpush1.bf16.msra.mxu0 0
        %3553 = vmatprep.mubr.bf16.mxu0 0
        %3554 = vmatmul.mubr.bf16.gmra.mrb[0].mxu0 %v1716
        %v3555 = vpop.f32.mrb[0].mxu0
        %v3556 = vadd.f32 %v3389, %v3555
        %v3557 = vpop.f32.mrb[0].mxu0
        %v3558 = vadd.f32 %v3393, %v3557
        %v3559 = vpop.f32.mrb[0].mxu0
        %v3560 = vadd.f32 %v3389, %v3559
        %v3561 = vpop.f32.mrb[0].mxu0
        %v3562 = vadd.f32 %v3393, %v3561
        %3563 = vdwg.mxu0
        %v3564 = vmul.f32 %v3513, 0.5
        %v3565 = vmul.f32 %v3515, 0.5
        %v3566 = vmul.f32 %v3556, 0.5
        %v3567 = vmul.f32 %v3558, 0.5
        %v3568 = vmul.f32 %v3517, 0.5
        %v3569 = vmul.f32 %v3519, 0.5
        %v3570 = vmul.f32 %v3560, 0.5
        %v3571 = vmul.f32 %v3562, 0.5
        %v3572 = vmul.f32 %v3513, 0.70710677
        %v3573 = vmul.f32 %v3515, 0.70710677
        %v3574 = vmul.f32 %v3556, 0.70710677
        %v3575 = vmul.f32 %v3558, 0.70710677
        %v3576 = vmul.f32 %v3517, 0.70710677
        %v3577 = vmul.f32 %v3519, 0.70710677
        %v3578 = vmul.f32 %v3560, 0.70710677
        %v3579 = vmul.f32 %v3562, 0.70710677
        %v3580 = verf.f32.pop %v3572
        %v3581 = verf.f32.pop %v3573
        %v3582 = verf.f32.pop %v3574
        %v3583 = verf.f32.pop %v3575
        %v3584 = verf.f32.pop %v3576
        %v3585 = verf.f32.pop %v3577
        %v3586 = verf.f32.pop %v3578
        %v3587 = verf.f32.pop %v3579
        %v3588 = vadd.f32 %v3580, 1.0
        %v3589 = vadd.f32 %v3581, 1.0
        %v3590 = vadd.f32 %v3582, 1.0
        %v3591 = vadd.f32 %v3583, 1.0
        %v3592 = vadd.f32 %v3584, 1.0
        %v3593 = vadd.f32 %v3585, 1.0
        %v3594 = vadd.f32 %v3586, 1.0
        %v3595 = vadd.f32 %v3587, 1.0
        %v3596 = vmul.f32 %v3564, %v3588
        %v3597 = vmul.f32 %v3565, %v3589
        %v3598 = vmul.f32 %v3566, %v3590
        %v3599 = vmul.f32 %v3567, %v3591
        %v3600 = vmul.f32 %v3568, %v3592
        %v3601 = vmul.f32 %v3569, %v3593
        %v3602 = vmul.f32 %v3570, %v3594
        %v3603 = vmul.f32 %v3571, %v3595
        %v3604 = vld [vmem:[%s17 + $0x300] sm:$0xf]
        %v3605 = vld [vmem:[%s17 + $0x304] sm:$0xf]
        %v3606 = vld [vmem:[%s17 + $0x308] sm:$0xf]
        %v3607 = vld [vmem:[%s17 + $0x30c] sm:$0xf]
        %v3608 = vld [vmem:[%s17 + $0x310] sm:$0xf]
        %v3609 = vld [vmem:[%s17 + $0x314] sm:$0xf]
        %v3610 = vld [vmem:[%s17 + $0x318] sm:$0xf]
        %v3611 = vld [vmem:[%s17 + $0x31c] sm:$0xf]
        %v3612 = vld [vmem:[%s17 + $0x320] sm:$0xf]
        %v3613 = vld [vmem:[%s17 + $0x324] sm:$0xf]
        %v3614 = vld [vmem:[%s17 + $0x328] sm:$0xf]
        %v3615 = vld [vmem:[%s17 + $0x32c] sm:$0xf]
        %v3616 = vld [vmem:[%s17 + $0x330] sm:$0xf]
        %v3617 = vld [vmem:[%s17 + $0x334] sm:$0xf]
        %v3618 = vld [vmem:[%s17 + $0x338] sm:$0xf]
        %v3619 = vld [vmem:[%s17 + $0x33c] sm:$0xf]
        %v3620 = vld [vmem:[%s17 + $0x340] sm:$0xf]
        %v3621 = vld [vmem:[%s17 + $0x344] sm:$0xf]
        %v3622 = vld [vmem:[%s17 + $0x348] sm:$0xf]
        %v3623 = vld [vmem:[%s17 + $0x34c] sm:$0xf]
        %v3624 = vld [vmem:[%s17 + $0x350] sm:$0xf]
        %v3625 = vld [vmem:[%s17 + $0x354] sm:$0xf]
        %v3626 = vld [vmem:[%s17 + $0x358] sm:$0xf]
        %v3627 = vld [vmem:[%s17 + $0x35c] sm:$0xf]
        %v3628 = vld [vmem:[%s17 + $0x360] sm:$0xf]
        %v3629 = vld [vmem:[%s17 + $0x364] sm:$0xf]
        %v3630 = vld [vmem:[%s17 + $0x368] sm:$0xf]
        %v3631 = vld [vmem:[%s17 + $0x36c] sm:$0xf]
        %v3632 = vld [vmem:[%s17 + $0x370] sm:$0xf]
        %v3633 = vld [vmem:[%s17 + $0x374] sm:$0xf]
        %v3634 = vld [vmem:[%s17 + $0x378] sm:$0xf]
        %v3635 = vld [vmem:[%s17 + $0x37c] sm:$0xf]
        %v3636 = vld [vmem:[%s17 + $0x380] sm:$0xf]
        %v3637 = vld [vmem:[%s17 + $0x384] sm:$0xf]
        %v3638 = vld [vmem:[%s17 + $0x388] sm:$0xf]
        %v3639 = vld [vmem:[%s17 + $0x38c] sm:$0xf]
        %v3640 = vld [vmem:[%s17 + $0x390] sm:$0xf]
        %v3641 = vld [vmem:[%s17 + $0x394] sm:$0xf]
        %v3642 = vld [vmem:[%s17 + $0x398] sm:$0xf]
        %v3643 = vld [vmem:[%s17 + $0x39c] sm:$0xf]
        %v3644 = vld [vmem:[%s17 + $0x3a0] sm:$0xf]
        %v3645 = vld [vmem:[%s17 + $0x3a4] sm:$0xf]
        %v3646 = vld [vmem:[%s17 + $0x3a8] sm:$0xf]
        %v3647 = vld [vmem:[%s17 + $0x3ac] sm:$0xf]
        %v3648 = vld [vmem:[%s17 + $0x3b0] sm:$0xf]
        %v3649 = vld [vmem:[%s17 + $0x3b4] sm:$0xf]
        %v3650 = vld [vmem:[%s17 + $0x3b8] sm:$0xf]
        %v3651 = vld [vmem:[%s17 + $0x3bc] sm:$0xf]
        %v3652 = vld [vmem:[%s17 + $0x3c0] sm:$0xf]
        %v3653 = vld [vmem:[%s17 + $0x3c4] sm:$0xf]
        %v3654 = vld [vmem:[%s17 + $0x3c8] sm:$0xf]
        %v3655 = vld [vmem:[%s17 + $0x3cc] sm:$0xf]
        %v3656 = vld [vmem:[%s17 + $0x3d0] sm:$0xf]
        %v3657 = vld [vmem:[%s17 + $0x3d4] sm:$0xf]
        %v3658 = vld [vmem:[%s17 + $0x3d8] sm:$0xf]
        %v3659 = vld [vmem:[%s17 + $0x3dc] sm:$0xf]
        %v3660 = vld [vmem:[%s17 + $0x3e0] sm:$0xf]
        %v3661 = vld [vmem:[%s17 + $0x3e4] sm:$0xf]
        %v3662 = vld [vmem:[%s17 + $0x3e8] sm:$0xf]
        %v3663 = vld [vmem:[%s17 + $0x3ec] sm:$0xf]
        %v3664 = vld [vmem:[%s17 + $0x3f0] sm:$0xf]
        %v3665 = vld [vmem:[%s17 + $0x3f4] sm:$0xf]
        %v3666 = vld [vmem:[%s17 + $0x3f8] sm:$0xf]
        %v3667 = vld [vmem:[%s17 + $0x3fc] sm:$0xf]
        %v3668 = vpack.c.bf16 %v3600, %v3596
        %v3669 = vpack.c.bf16 %v3601, %v3597
        %v3670 = vpack.c.bf16 %v3602, %v3598
        %v3671 = vpack.c.bf16 %v3603, %v3599
        %v3736 = vunpack.c.l.b16 %v3604
        %v3737 = vunpack.c.l.b16 %v3605
        %v3738 = vunpack.c.l.b16 %v3606
        %v3739 = vunpack.c.l.b16 %v3607
        %v3740 = vunpack.c.l.b16 %v3608
        %v3741 = vunpack.c.l.b16 %v3609
        %v3742 = vunpack.c.l.b16 %v3610
        %v3743 = vunpack.c.l.b16 %v3611
        %v3744 = vunpack.c.l.b16 %v3612
        %v3745 = vunpack.c.l.b16 %v3613
        %v3746 = vunpack.c.l.b16 %v3614
        %v3747 = vunpack.c.l.b16 %v3615
        %v3748 = vunpack.c.l.b16 %v3616
        %v3749 = vunpack.c.l.b16 %v3617
        %v3750 = vunpack.c.l.b16 %v3618
        %v3751 = vunpack.c.l.b16 %v3619
        %v3752 = vunpack.c.l.b16 %v3620
        %v3753 = vunpack.c.l.b16 %v3621
        %v3754 = vunpack.c.l.b16 %v3622
        %v3755 = vunpack.c.l.b16 %v3623
        %v3756 = vunpack.c.l.b16 %v3624
        %v3757 = vunpack.c.l.b16 %v3625
        %v3758 = vunpack.c.l.b16 %v3626
        %v3759 = vunpack.c.l.b16 %v3627
        %v3760 = vunpack.c.l.b16 %v3628
        %v3761 = vunpack.c.l.b16 %v3629
        %v3762 = vunpack.c.l.b16 %v3630
        %v3763 = vunpack.c.l.b16 %v3631
        %v3764 = vunpack.c.l.b16 %v3632
        %v3765 = vunpack.c.l.b16 %v3633
        %v3766 = vunpack.c.l.b16 %v3634
        %v3767 = vunpack.c.l.b16 %v3635
        %v3768 = vunpack.c.l.b16 %v3636
        %v3769 = vunpack.c.l.b16 %v3637
        %v3770 = vunpack.c.l.b16 %v3638
        %v3771 = vunpack.c.l.b16 %v3639
        %v3772 = vunpack.c.l.b16 %v3640
        %v3773 = vunpack.c.l.b16 %v3641
        %v3774 = vunpack.c.l.b16 %v3642
        %v3775 = vunpack.c.l.b16 %v3643
        %v3776 = vunpack.c.l.b16 %v3644
        %v3777 = vunpack.c.l.b16 %v3645
        %v3778 = vunpack.c.l.b16 %v3646
        %v3779 = vunpack.c.l.b16 %v3647
        %v3780 = vunpack.c.l.b16 %v3648
        %v3781 = vunpack.c.l.b16 %v3649
        %v3782 = vunpack.c.l.b16 %v3650
        %v3783 = vunpack.c.l.b16 %v3651
        %v3784 = vunpack.c.l.b16 %v3652
        %v3785 = vunpack.c.l.b16 %v3653
        %v3786 = vunpack.c.l.b16 %v3654
        %v3787 = vunpack.c.l.b16 %v3655
        %v3788 = vunpack.c.l.b16 %v3656
        %v3789 = vunpack.c.l.b16 %v3657
        %v3790 = vunpack.c.l.b16 %v3658
        %v3791 = vunpack.c.l.b16 %v3659
        %v3792 = vunpack.c.l.b16 %v3660
        %v3793 = vunpack.c.l.b16 %v3661
        %v3794 = vunpack.c.l.b16 %v3662
        %v3795 = vunpack.c.l.b16 %v3663
        %v3796 = vunpack.c.l.b16 %v3664
        %v3797 = vunpack.c.l.b16 %v3665
        %v3798 = vunpack.c.l.b16 %v3666
        %v3799 = vunpack.c.l.b16 %v3667
        %v3800 = vpack.c.b16 %v3737, %v3736
        %v3801 = vpack.c.b16 %v3739, %v3738
        %v3802 = vpack.c.b16 %v3741, %v3740
        %v3803 = vpack.c.b16 %v3743, %v3742
        %v3804 = vpack.c.b16 %v3745, %v3744
        %v3805 = vpack.c.b16 %v3747, %v3746
        %v3806 = vpack.c.b16 %v3749, %v3748
        %v3807 = vpack.c.b16 %v3751, %v3750
        %v3808 = vpack.c.b16 %v3753, %v3752
        %v3809 = vpack.c.b16 %v3755, %v3754
        %v3810 = vpack.c.b16 %v3757, %v3756
        %v3811 = vpack.c.b16 %v3759, %v3758
        %v3812 = vpack.c.b16 %v3761, %v3760
        %v3813 = vpack.c.b16 %v3763, %v3762
        %v3814 = vpack.c.b16 %v3765, %v3764
        %v3815 = vpack.c.b16 %v3767, %v3766
        %v3816 = vpack.c.b16 %v3769, %v3768
        %v3817 = vpack.c.b16 %v3771, %v3770
        %v3818 = vpack.c.b16 %v3773, %v3772
        %v3819 = vpack.c.b16 %v3775, %v3774
        %v3820 = vpack.c.b16 %v3777, %v3776
        %v3821 = vpack.c.b16 %v3779, %v3778
        %v3822 = vpack.c.b16 %v3781, %v3780
        %v3823 = vpack.c.b16 %v3783, %v3782
        %v3824 = vpack.c.b16 %v3785, %v3784
        %v3825 = vpack.c.b16 %v3787, %v3786
        %v3826 = vpack.c.b16 %v3789, %v3788
        %v3827 = vpack.c.b16 %v3791, %v3790
        %v3828 = vpack.c.b16 %v3793, %v3792
        %v3829 = vpack.c.b16 %v3795, %v3794
        %v3830 = vpack.c.b16 %v3797, %v3796
        %v3831 = vpack.c.b16 %v3799, %v3798
        %3864 = vmatprep.subr.bf16.mxu0 0
        %3865 = vmatpush1.bf16.msra.mxu0 %v3800
        %3866 = vmatprep.subr.bf16.mxu0 0
        %3867 = vmatpush1.bf16.msra.mxu0 %v3801
        %3868 = vmatprep.subr.bf16.mxu0 0
        %3869 = vmatpush1.bf16.msra.mxu0 %v3802
        %3870 = vmatprep.subr.bf16.mxu0 0
        %3871 = vmatpush1.bf16.msra.mxu0 %v3803
        %3872 = vmatprep.subr.bf16.mxu0 0
        %3873 = vmatpush1.bf16.msra.mxu0 %v3804
        %3874 = vmatprep.subr.bf16.mxu0 0
        %3875 = vmatpush1.bf16.msra.mxu0 %v3805
        %3876 = vmatprep.subr.bf16.mxu0 0
        %3877 = vmatpush1.bf16.msra.mxu0 %v3806
        %3878 = vmatprep.subr.bf16.mxu0 0
        %3879 = vmatpush1.bf16.msra.mxu0 %v3807
        %3880 = vmatprep.subr.bf16.mxu0 0
        %3881 = vmatpush1.bf16.msra.mxu0 %v3808
        %3882 = vmatprep.subr.bf16.mxu0 0
        %3883 = vmatpush1.bf16.msra.mxu0 %v3809
        %3884 = vmatprep.subr.bf16.mxu0 0
        %3885 = vmatpush1.bf16.msra.mxu0 %v3810
        %3886 = vmatprep.subr.bf16.mxu0 0
        %3887 = vmatpush1.bf16.msra.mxu0 %v3811
        %3888 = vmatprep.subr.bf16.mxu0 0
        %3889 = vmatpush1.bf16.msra.mxu0 %v3812
        %3890 = vmatprep.subr.bf16.mxu0 0
        %3891 = vmatpush1.bf16.msra.mxu0 %v3813
        %3892 = vmatprep.subr.bf16.mxu0 0
        %3893 = vmatpush1.bf16.msra.mxu0 %v3814
        %3894 = vmatprep.subr.bf16.mxu0 0
        %3895 = vmatpush1.bf16.msra.mxu0 %v3815
        %3896 = vmatprep.mubr.bf16.mxu0 %v3669
        %3897 = vmatmul.mubr.bf16.gmra.mrb[0].mxu0 %v3668
        %v3898 = vpop.f32.mrb[0].mxu0
        %v3899 = vadd.f32 0.0, %v3898
        %v3900 = vpop.f32.mrb[0].mxu0
        %v3901 = vpop.f32.mrb[0].mxu0
        %v3902 = vadd.f32 0.0, %v3901
        %v3903 = vpop.f32.mrb[0].mxu0
        %3904 = vdwg.mxu0
        %3905 = vmatprep.subr.bf16.mxu0 0
        %3906 = vmatpush1.bf16.msra.mxu0 %v3816
        %3907 = vmatprep.subr.bf16.mxu0 0
        %3908 = vmatpush1.bf16.msra.mxu0 %v3817
        %3909 = vmatprep.subr.bf16.mxu0 0
        %3910 = vmatpush1.bf16.msra.mxu0 %v3818
        %3911 = vmatprep.subr.bf16.mxu0 0
        %3912 = vmatpush1.bf16.msra.mxu0 %v3819
        %3913 = vmatprep.subr.bf16.mxu0 0
        %3914 = vmatpush1.bf16.msra.mxu0 %v3820
        %3915 = vmatprep.subr.bf16.mxu0 0
        %3916 = vmatpush1.bf16.msra.mxu0 %v3821
        %3917 = vmatprep.subr.bf16.mxu0 0
        %3918 = vmatpush1.bf16.msra.mxu0 %v3822
        %3919 = vmatprep.subr.bf16.mxu0 0
        %3920 = vmatpush1.bf16.msra.mxu0 %v3823
        %3921 = vmatprep.subr.bf16.mxu0 0
        %3922 = vmatpush1.bf16.msra.mxu0 %v3824
        %3923 = vmatprep.subr.bf16.mxu0 0
        %3924 = vmatpush1.bf16.msra.mxu0 %v3825
        %3925 = vmatprep.subr.bf16.mxu0 0
        %3926 = vmatpush1.bf16.msra.mxu0 %v3826
        %3927 = vmatprep.subr.bf16.mxu0 0
        %3928 = vmatpush1.bf16.msra.mxu0 %v3827
        %3929 = vmatprep.subr.bf16.mxu0 0
        %3930 = vmatpush1.bf16.msra.mxu0 %v3828
        %3931 = vmatprep.subr.bf16.mxu0 0
        %3932 = vmatpush1.bf16.msra.mxu0 %v3829
        %3933 = vmatprep.subr.bf16.mxu0 0
        %3934 = vmatpush1.bf16.msra.mxu0 %v3830
        %3935 = vmatprep.subr.bf16.mxu0 0
        %3936 = vmatpush1.bf16.msra.mxu0 %v3831
        %3937 = vmatprep.mubr.bf16.mxu0 %v3671
        %3938 = vmatmul.mubr.bf16.gmra.mrb[0].mxu0 %v3670
        %v3939 = vpop.f32.mrb[0].mxu0
        %v3940 = vadd.f32 %v3899, %v3939
        %v3941 = vpop.f32.mrb[0].mxu0
        %v3942 = vpop.f32.mrb[0].mxu0
        %v3943 = vadd.f32 %v3902, %v3942
        %v3944 = vpop.f32.mrb[0].mxu0
        %3945 = vdwg.mxu0
        %v3946 = vadd.f32 %v3358, %v3940
        %v3947 = vadd.f32 %v3359, %v3943
        %v3948 = vld [vmem:[%s15 + $0x40] sm:$0xff]
        %v3949 = vld [vmem:[%s15 + $0x48] sm:$0xff]
        %v3950 = vld [vmem:[%s15 + $0xa0] sm:$0xff]
        %v3951 = vld [vmem:[%s15 + $0xa8] sm:$0xff]
        %v3952 = vld [vmem:[%s15 + $0x100] sm:$0xff]
        %v3953 = vld [vmem:[%s15 + $0x108] sm:$0xff]
        %v3954 = vld [vmem:[%s15 + $0x160] sm:$0xff]
        %v3955 = vld [vmem:[%s15 + $0x168] sm:$0xff]
        %v3956 = vld [vmem:[%s15 + $0x1c0] sm:$0xff]
        %v3957 = vld [vmem:[%s15 + $0x1c8] sm:$0xff]
        %v3958 = vld [vmem:[%s15 + $0x220] sm:$0xff]
        %v3959 = vld [vmem:[%s15 + $0x228] sm:$0xff]
        %v3960 = vld [vmem:[%s15 + $0x280] sm:$0xff]
        %v3961 = vld [vmem:[%s15 + $0x288] sm:$0xff]
        %v3962 = vld [vmem:[%s15 + $0x2e0] sm:$0xff]
        %v3963 = vld [vmem:[%s15 + $0x2e8] sm:$0xff]
        %v3964 = vld [vmem:[%s16 + $0x10] sm:$0xf]
        %v3966 = vlaneseq
        %v3967 = vshrl.u32 %v3966, 7
        %v3968 = vsub.s32 0, %v3967
        %v3969 = vrot.slane %v3964, %v3968
        %v3970 = vlaneseq
        %v3971 = vshrl.u32 %v3970, 7
        %v3972 = vsub.s32 1, %v3971
        %v3973 = vrot.slane %v3964, %v3972
        %v3974 = vlaneseq
        %v3975 = vshrl.u32 %v3974, 7
        %v3976 = vsub.s32 2, %v3975
        %v3977 = vrot.slane %v3964, %v3976
        %v3978 = vlaneseq
        %v3979 = vshrl.u32 %v3978, 7
        %v3980 = vsub.s32 3, %v3979
        %v3981 = vrot.slane %v3964, %v3980
        %v4002 = vunpack.c.l.b16 %v3948
        %v4003 = vunpack.c.h.b16 %v3948
        %v4004 = vunpack.c.l.b16 %v3949
        %v4005 = vunpack.c.h.b16 %v3949
        %v4006 = vunpack.c.l.b16 %v3950
        %v4007 = vunpack.c.h.b16 %v3950
        %v4008 = vunpack.c.l.b16 %v3951
        %v4009 = vunpack.c.h.b16 %v3951
        %v4010 = vunpack.c.l.b16 %v3952
        %v4011 = vunpack.c.h.b16 %v3952
        %v4012 = vunpack.c.l.b16 %v3953
        %v4013 = vunpack.c.h.b16 %v3953
        %v4014 = vunpack.c.l.b16 %v3954
        %v4015 = vunpack.c.h.b16 %v3954
        %v4016 = vunpack.c.l.b16 %v3955
        %v4017 = vunpack.c.h.b16 %v3955
        %v4018 = vunpack.c.l.b16 %v3956
        %v4019 = vunpack.c.h.b16 %v3956
        %v4020 = vunpack.c.l.b16 %v3957
        %v4021 = vunpack.c.h.b16 %v3957
        %v4022 = vunpack.c.l.b16 %v3958
        %v4023 = vunpack.c.h.b16 %v3958
        %v4024 = vunpack.c.l.b16 %v3959
        %v4025 = vunpack.c.h.b16 %v3959
        %v4026 = vunpack.c.l.b16 %v3960
        %v4027 = vunpack.c.h.b16 %v3960
        %v4028 = vunpack.c.l.b16 %v3961
        %v4029 = vunpack.c.h.b16 %v3961
        %v4030 = vunpack.c.l.b16 %v3962
        %v4031 = vunpack.c.h.b16 %v3962
        %v4032 = vunpack.c.l.b16 %v3963
        %v4033 = vunpack.c.h.b16 %v3963
        %v4034 = vpack.c.b16 %v4006, %v4002
        %v4035 = vpack.c.b16 %v4007, %v4003
        %v4036 = vpack.c.b16 %v4008, %v4004
        %v4037 = vpack.c.b16 %v4009, %v4005
        %v4038 = vpack.c.b16 %v4014, %v4010
        %v4039 = vpack.c.b16 %v4015, %v4011
        %v4040 = vpack.c.b16 %v4016, %v4012
        %v4041 = vpack.c.b16 %v4017, %v4013
        %v4042 = vpack.c.b16 %v4022, %v4018
        %v4043 = vpack.c.b16 %v4023, %v4019
        %v4044 = vpack.c.b16 %v4024, %v4020
        %v4045 = vpack.c.b16 %v4025, %v4021
        %v4046 = vpack.c.b16 %v4030, %v4026
        %v4047 = vpack.c.b16 %v4031, %v4027
        %v4048 = vpack.c.b16 %v4032, %v4028
        %v4049 = vpack.c.b16 %v4033, %v4029
        %4066 = vmatprep.subr.bf16.mxu0 %v4035
        %4067 = vmatpush1.bf16.msra.mxu0 %v4034
        %4068 = vmatprep.subr.bf16.mxu0 %v4039
        %4069 = vmatpush1.bf16.msra.mxu0 %v4038
        %4070 = vmatprep.subr.bf16.mxu0 %v4043
        %4071 = vmatpush1.bf16.msra.mxu0 %v4042
        %4072 = vmatprep.subr.bf16.mxu0 %v4047
        %4073 = vmatpush1.bf16.msra.mxu0 %v4046
        %4074 = vmatprep.subr.bf16.mxu0 0
        %4075 = vmatpush1.bf16.msra.mxu0 0
        %4076 = vmatprep.subr.bf16.mxu0 0
        %4077 = vmatpush1.bf16.msra.mxu0 0
        %4078 = vmatprep.subr.bf16.mxu0 0
        %4079 = vmatpush1.bf16.msra.mxu0 0
        %4080 = vmatprep.subr.bf16.mxu0 0
        %4081 = vmatpush1.bf16.msra.mxu0 0
        %4082 = vmatprep.subr.bf16.mxu0 0
        %4083 = vmatpush1.bf16.msra.mxu0 0
        %4084 = vmatprep.subr.bf16.mxu0 0
        %4085 = vmatpush1.bf16.msra.mxu0 0
        %4086 = vmatprep.subr.bf16.mxu0 0
        %4087 = vmatpush1.bf16.msra.mxu0 0
        %4088 = vmatprep.subr.bf16.mxu0 0
        %4089 = vmatpush1.bf16.msra.mxu0 0
        %4090 = vmatprep.subr.bf16.mxu0 0
        %4091 = vmatpush1.bf16.msra.mxu0 0
        %4092 = vmatprep.subr.bf16.mxu0 0
        %4093 = vmatpush1.bf16.msra.mxu0 0
        %4094 = vmatprep.subr.bf16.mxu0 0
        %4095 = vmatpush1.bf16.msra.mxu0 0
        %4096 = vmatprep.subr.bf16.mxu0 0
        %4097 = vmatpush1.bf16.msra.mxu0 0
        %4098 = vmatprep.mubr.bf16.mxu0 0
        %4099 = vmatmul.mubr.bf16.gmra.mrb[0].mxu0 %v1716
        %v4100 = vpop.f32.mrb[0].mxu0
        %v4101 = vadd.f32 %v3969, %v4100
        %v4102 = vpop.f32.mrb[0].mxu0
        %v4103 = vadd.f32 %v3973, %v4102
        %v4104 = vpop.f32.mrb[0].mxu0
        %v4105 = vadd.f32 %v3969, %v4104
        %v4106 = vpop.f32.mrb[0].mxu0
        %v4107 = vadd.f32 %v3973, %v4106
        %4108 = vdwg.mxu0
        %4109 = vmatprep.subr.bf16.mxu0 %v4037
        %4110 = vmatpush1.bf16.msra.mxu0 %v4036
        %4111 = vmatprep.subr.bf16.mxu0 %v4041
        %4112 = vmatpush1.bf16.msra.mxu0 %v4040
        %4113 = vmatprep.subr.bf16.mxu0 %v4045
        %4114 = vmatpush1.bf16.msra.mxu0 %v4044
        %4115 = vmatprep.subr.bf16.mxu0 %v4049
        %4116 = vmatpush1.bf16.msra.mxu0 %v4048
        %4117 = vmatprep.subr.bf16.mxu0 0
        %4118 = vmatpush1.bf16.msra.mxu0 0
        %4119 = vmatprep.subr.bf16.mxu0 0
        %4120 = vmatpush1.bf16.msra.mxu0 0
        %4121 = vmatprep.subr.bf16.mxu0 0
        %4122 = vmatpush1.bf16.msra.mxu0 0
        %4123 = vmatprep.subr.bf16.mxu0 0
        %4124 = vmatpush1.bf16.msra.mxu0 0
        %4125 = vmatprep.subr.bf16.mxu0 0
        %4126 = vmatpush1.bf16.msra.mxu0 0
        %4127 = vmatprep.subr.bf16.mxu0 0
        %4128 = vmatpush1.bf16.msra.mxu0 0
        %4129 = vmatprep.subr.bf16.mxu0 0
        %4130 = vmatpush1.bf16.msra.mxu0 0
        %4131 = vmatprep.subr.bf16.mxu0 0
        %4132 = vmatpush1.bf16.msra.mxu0 0
        %4133 = vmatprep.subr.bf16.mxu0 0
        %4134 = vmatpush1.bf16.msra.mxu0 0
        %4135 = vmatprep.subr.bf16.mxu0 0
        %4136 = vmatpush1.bf16.msra.mxu0 0
        %4137 = vmatprep.subr.bf16.mxu0 0
        %4138 = vmatpush1.bf16.msra.mxu0 0
        %4139 = vmatprep.subr.bf16.mxu0 0
        %4140 = vmatpush1.bf16.msra.mxu0 0
        %4141 = vmatprep.mubr.bf16.mxu0 0
        %4142 = vmatmul.mubr.bf16.gmra.mrb[0].mxu0 %v1716
        %v4143 = vpop.f32.mrb[0].mxu0
        %v4144 = vadd.f32 %v3977, %v4143
        %v4145 = vpop.f32.mrb[0].mxu0
        %v4146 = vadd.f32 %v3981, %v4145
        %v4147 = vpop.f32.mrb[0].mxu0
        %v4148 = vadd.f32 %v3977, %v4147
        %v4149 = vpop.f32.mrb[0].mxu0
        %v4150 = vadd.f32 %v3981, %v4149
        %4151 = vdwg.mxu0
        %v4152 = vmul.f32 %v4101, 0.5
        %v4153 = vmul.f32 %v4103, 0.5
        %v4154 = vmul.f32 %v4144, 0.5
        %v4155 = vmul.f32 %v4146, 0.5
        %v4156 = vmul.f32 %v4105, 0.5
        %v4157 = vmul.f32 %v4107, 0.5
        %v4158 = vmul.f32 %v4148, 0.5
        %v4159 = vmul.f32 %v4150, 0.5
        %v4160 = vmul.f32 %v4101, 0.70710677
        %v4161 = vmul.f32 %v4103, 0.70710677
        %v4162 = vmul.f32 %v4144, 0.70710677
        %v4163 = vmul.f32 %v4146, 0.70710677
        %v4164 = vmul.f32 %v4105, 0.70710677
        %v4165 = vmul.f32 %v4107, 0.70710677
        %v4166 = vmul.f32 %v4148, 0.70710677
        %v4167 = vmul.f32 %v4150, 0.70710677
        %v4168 = verf.f32.pop %v4160
        %v4169 = verf.f32.pop %v4161
        %v4170 = verf.f32.pop %v4162
        %v4171 = verf.f32.pop %v4163
        %v4172 = verf.f32.pop %v4164
        %v4173 = verf.f32.pop %v4165
        %v4174 = verf.f32.pop %v4166
        %v4175 = verf.f32.pop %v4167
        %v4176 = vadd.f32 %v4168, 1.0
        %v4177 = vadd.f32 %v4169, 1.0
        %v4178 = vadd.f32 %v4170, 1.0
        %v4179 = vadd.f32 %v4171, 1.0
        %v4180 = vadd.f32 %v4172, 1.0
        %v4181 = vadd.f32 %v4173, 1.0
        %v4182 = vadd.f32 %v4174, 1.0
        %v4183 = vadd.f32 %v4175, 1.0
        %v4184 = vmul.f32 %v4152, %v4176
        %v4185 = vmul.f32 %v4153, %v4177
        %v4186 = vmul.f32 %v4154, %v4178
        %v4187 = vmul.f32 %v4155, %v4179
        %v4188 = vmul.f32 %v4156, %v4180
        %v4189 = vmul.f32 %v4157, %v4181
        %v4190 = vmul.f32 %v4158, %v4182
        %v4191 = vmul.f32 %v4159, %v4183
        %v4192 = vld [vmem:[%s17 + $0x400] sm:$0xf]
        %v4193 = vld [vmem:[%s17 + $0x404] sm:$0xf]
        %v4194 = vld [vmem:[%s17 + $0x408] sm:$0xf]
        %v4195 = vld [vmem:[%s17 + $0x40c] sm:$0xf]
        %v4196 = vld [vmem:[%s17 + $0x410] sm:$0xf]
        %v4197 = vld [vmem:[%s17 + $0x414] sm:$0xf]
        %v4198 = vld [vmem:[%s17 + $0x418] sm:$0xf]
        %v4199 = vld [vmem:[%s17 + $0x41c] sm:$0xf]
        %v4200 = vld [vmem:[%s17 + $0x420] sm:$0xf]
        %v4201 = vld [vmem:[%s17 + $0x424] sm:$0xf]
        %v4202 = vld [vmem:[%s17 + $0x428] sm:$0xf]
        %v4203 = vld [vmem:[%s17 + $0x42c] sm:$0xf]
        %v4204 = vld [vmem:[%s17 + $0x430] sm:$0xf]
        %v4205 = vld [vmem:[%s17 + $0x434] sm:$0xf]
        %v4206 = vld [vmem:[%s17 + $0x438] sm:$0xf]
        %v4207 = vld [vmem:[%s17 + $0x43c] sm:$0xf]
        %v4208 = vld [vmem:[%s17 + $0x440] sm:$0xf]
        %v4209 = vld [vmem:[%s17 + $0x444] sm:$0xf]
        %v4210 = vld [vmem:[%s17 + $0x448] sm:$0xf]
        %v4211 = vld [vmem:[%s17 + $0x44c] sm:$0xf]
        %v4212 = vld [vmem:[%s17 + $0x450] sm:$0xf]
        %v4213 = vld [vmem:[%s17 + $0x454] sm:$0xf]
        %v4214 = vld [vmem:[%s17 + $0x458] sm:$0xf]
        %v4215 = vld [vmem:[%s17 + $0x45c] sm:$0xf]
        %v4216 = vld [vmem:[%s17 + $0x460] sm:$0xf]
        %v4217 = vld [vmem:[%s17 + $0x464] sm:$0xf]
        %v4218 = vld [vmem:[%s17 + $0x468] sm:$0xf]
        %v4219 = vld [vmem:[%s17 + $0x46c] sm:$0xf]
        %v4220 = vld [vmem:[%s17 + $0x470] sm:$0xf]
        %v4221 = vld [vmem:[%s17 + $0x474] sm:$0xf]
        %v4222 = vld [vmem:[%s17 + $0x478] sm:$0xf]
        %v4223 = vld [vmem:[%s17 + $0x47c] sm:$0xf]
        %v4224 = vld [vmem:[%s17 + $0x480] sm:$0xf]
        %v4225 = vld [vmem:[%s17 + $0x484] sm:$0xf]
        %v4226 = vld [vmem:[%s17 + $0x488] sm:$0xf]
        %v4227 = vld [vmem:[%s17 + $0x48c] sm:$0xf]
        %v4228 = vld [vmem:[%s17 + $0x490] sm:$0xf]
        %v4229 = vld [vmem:[%s17 + $0x494] sm:$0xf]
        %v4230 = vld [vmem:[%s17 + $0x498] sm:$0xf]
        %v4231 = vld [vmem:[%s17 + $0x49c] sm:$0xf]
        %v4232 = vld [vmem:[%s17 + $0x4a0] sm:$0xf]
        %v4233 = vld [vmem:[%s17 + $0x4a4] sm:$0xf]
        %v4234 = vld [vmem:[%s17 + $0x4a8] sm:$0xf]
        %v4235 = vld [vmem:[%s17 + $0x4ac] sm:$0xf]
        %v4236 = vld [vmem:[%s17 + $0x4b0] sm:$0xf]
        %v4237 = vld [vmem:[%s17 + $0x4b4] sm:$0xf]
        %v4238 = vld [vmem:[%s17 + $0x4b8] sm:$0xf]
        %v4239 = vld [vmem:[%s17 + $0x4bc] sm:$0xf]
        %v4240 = vld [vmem:[%s17 + $0x4c0] sm:$0xf]
        %v4241 = vld [vmem:[%s17 + $0x4c4] sm:$0xf]
        %v4242 = vld [vmem:[%s17 + $0x4c8] sm:$0xf]
        %v4243 = vld [vmem:[%s17 + $0x4cc] sm:$0xf]
        %v4244 = vld [vmem:[%s17 + $0x4d0] sm:$0xf]
        %v4245 = vld [vmem:[%s17 + $0x4d4] sm:$0xf]
        %v4246 = vld [vmem:[%s17 + $0x4d8] sm:$0xf]
        %v4247 = vld [vmem:[%s17 + $0x4dc] sm:$0xf]
        %v4248 = vld [vmem:[%s17 + $0x4e0] sm:$0xf]
        %v4249 = vld [vmem:[%s17 + $0x4e4] sm:$0xf]
        %v4250 = vld [vmem:[%s17 + $0x4e8] sm:$0xf]
        %v4251 = vld [vmem:[%s17 + $0x4ec] sm:$0xf]
        %v4252 = vld [vmem:[%s17 + $0x4f0] sm:$0xf]
        %v4253 = vld [vmem:[%s17 + $0x4f4] sm:$0xf]
        %v4254 = vld [vmem:[%s17 + $0x4f8] sm:$0xf]
        %v4255 = vld [vmem:[%s17 + $0x4fc] sm:$0xf]
        %v4256 = vpack.c.bf16 %v4188, %v4184
        %v4257 = vpack.c.bf16 %v4189, %v4185
        %v4258 = vpack.c.bf16 %v4190, %v4186
        %v4259 = vpack.c.bf16 %v4191, %v4187
        %v4324 = vunpack.c.l.b16 %v4192
        %v4325 = vunpack.c.l.b16 %v4193
        %v4326 = vunpack.c.l.b16 %v4194
        %v4327 = vunpack.c.l.b16 %v4195
        %v4328 = vunpack.c.l.b16 %v4196
        %v4329 = vunpack.c.l.b16 %v4197
        %v4330 = vunpack.c.l.b16 %v4198
        %v4331 = vunpack.c.l.b16 %v4199
        %v4332 = vunpack.c.l.b16 %v4200
        %v4333 = vunpack.c.l.b16 %v4201
        %v4334 = vunpack.c.l.b16 %v4202
        %v4335 = vunpack.c.l.b16 %v4203
        %v4336 = vunpack.c.l.b16 %v4204
        %v4337 = vunpack.c.l.b16 %v4205
        %v4338 = vunpack.c.l.b16 %v4206
        %v4339 = vunpack.c.l.b16 %v4207
        %v4340 = vunpack.c.l.b16 %v4208
        %v4341 = vunpack.c.l.b16 %v4209
        %v4342 = vunpack.c.l.b16 %v4210
        %v4343 = vunpack.c.l.b16 %v4211
        %v4344 = vunpack.c.l.b16 %v4212
        %v4345 = vunpack.c.l.b16 %v4213
        %v4346 = vunpack.c.l.b16 %v4214
        %v4347 = vunpack.c.l.b16 %v4215
        %v4348 = vunpack.c.l.b16 %v4216
        %v4349 = vunpack.c.l.b16 %v4217
        %v4350 = vunpack.c.l.b16 %v4218
        %v4351 = vunpack.c.l.b16 %v4219
        %v4352 = vunpack.c.l.b16 %v4220
        %v4353 = vunpack.c.l.b16 %v4221
        %v4354 = vunpack.c.l.b16 %v4222
        %v4355 = vunpack.c.l.b16 %v4223
        %v4356 = vunpack.c.l.b16 %v4224
        %v4357 = vunpack.c.l.b16 %v4225
        %v4358 = vunpack.c.l.b16 %v4226
        %v4359 = vunpack.c.l.b16 %v4227
        %v4360 = vunpack.c.l.b16 %v4228
        %v4361 = vunpack.c.l.b16 %v4229
        %v4362 = vunpack.c.l.b16 %v4230
        %v4363 = vunpack.c.l.b16 %v4231
        %v4364 = vunpack.c.l.b16 %v4232
        %v4365 = vunpack.c.l.b16 %v4233
        %v4366 = vunpack.c.l.b16 %v4234
        %v4367 = vunpack.c.l.b16 %v4235
        %v4368 = vunpack.c.l.b16 %v4236
        %v4369 = vunpack.c.l.b16 %v4237
        %v4370 = vunpack.c.l.b16 %v4238
        %v4371 = vunpack.c.l.b16 %v4239
        %v4372 = vunpack.c.l.b16 %v4240
        %v4373 = vunpack.c.l.b16 %v4241
        %v4374 = vunpack.c.l.b16 %v4242
        %v4375 = vunpack.c.l.b16 %v4243
        %v4376 = vunpack.c.l.b16 %v4244
        %v4377 = vunpack.c.l.b16 %v4245
        %v4378 = vunpack.c.l.b16 %v4246
        %v4379 = vunpack.c.l.b16 %v4247
        %v4380 = vunpack.c.l.b16 %v4248
        %v4381 = vunpack.c.l.b16 %v4249
        %v4382 = vunpack.c.l.b16 %v4250
        %v4383 = vunpack.c.l.b16 %v4251
        %v4384 = vunpack.c.l.b16 %v4252
        %v4385 = vunpack.c.l.b16 %v4253
        %v4386 = vunpack.c.l.b16 %v4254
        %v4387 = vunpack.c.l.b16 %v4255
        %v4388 = vpack.c.b16 %v4325, %v4324
        %v4389 = vpack.c.b16 %v4327, %v4326
        %v4390 = vpack.c.b16 %v4329, %v4328
        %v4391 = vpack.c.b16 %v4331, %v4330
        %v4392 = vpack.c.b16 %v4333, %v4332
        %v4393 = vpack.c.b16 %v4335, %v4334
        %v4394 = vpack.c.b16 %v4337, %v4336
        %v4395 = vpack.c.b16 %v4339, %v4338
        %v4396 = vpack.c.b16 %v4341, %v4340
        %v4397 = vpack.c.b16 %v4343, %v4342
        %v4398 = vpack.c.b16 %v4345, %v4344
        %v4399 = vpack.c.b16 %v4347, %v4346
        %v4400 = vpack.c.b16 %v4349, %v4348
        %v4401 = vpack.c.b16 %v4351, %v4350
        %v4402 = vpack.c.b16 %v4353, %v4352
        %v4403 = vpack.c.b16 %v4355, %v4354
        %v4404 = vpack.c.b16 %v4357, %v4356
        %v4405 = vpack.c.b16 %v4359, %v4358
        %v4406 = vpack.c.b16 %v4361, %v4360
        %v4407 = vpack.c.b16 %v4363, %v4362
        %v4408 = vpack.c.b16 %v4365, %v4364
        %v4409 = vpack.c.b16 %v4367, %v4366
        %v4410 = vpack.c.b16 %v4369, %v4368
        %v4411 = vpack.c.b16 %v4371, %v4370
        %v4412 = vpack.c.b16 %v4373, %v4372
        %v4413 = vpack.c.b16 %v4375, %v4374
        %v4414 = vpack.c.b16 %v4377, %v4376
        %v4415 = vpack.c.b16 %v4379, %v4378
        %v4416 = vpack.c.b16 %v4381, %v4380
        %v4417 = vpack.c.b16 %v4383, %v4382
        %v4418 = vpack.c.b16 %v4385, %v4384
        %v4419 = vpack.c.b16 %v4387, %v4386
        %4452 = vmatprep.subr.bf16.mxu0 0
        %4453 = vmatpush1.bf16.msra.mxu0 %v4388
        %4454 = vmatprep.subr.bf16.mxu0 0
        %4455 = vmatpush1.bf16.msra.mxu0 %v4389
        %4456 = vmatprep.subr.bf16.mxu0 0
        %4457 = vmatpush1.bf16.msra.mxu0 %v4390
        %4458 = vmatprep.subr.bf16.mxu0 0
        %4459 = vmatpush1.bf16.msra.mxu0 %v4391
        %4460 = vmatprep.subr.bf16.mxu0 0
        %4461 = vmatpush1.bf16.msra.mxu0 %v4392
        %4462 = vmatprep.subr.bf16.mxu0 0
        %4463 = vmatpush1.bf16.msra.mxu0 %v4393
        %4464 = vmatprep.subr.bf16.mxu0 0
        %4465 = vmatpush1.bf16.msra.mxu0 %v4394
        %4466 = vmatprep.subr.bf16.mxu0 0
        %4467 = vmatpush1.bf16.msra.mxu0 %v4395
        %4468 = vmatprep.subr.bf16.mxu0 0
        %4469 = vmatpush1.bf16.msra.mxu0 %v4396
        %4470 = vmatprep.subr.bf16.mxu0 0
        %4471 = vmatpush1.bf16.msra.mxu0 %v4397
        %4472 = vmatprep.subr.bf16.mxu0 0
        %4473 = vmatpush1.bf16.msra.mxu0 %v4398
        %4474 = vmatprep.subr.bf16.mxu0 0
        %4475 = vmatpush1.bf16.msra.mxu0 %v4399
        %4476 = vmatprep.subr.bf16.mxu0 0
        %4477 = vmatpush1.bf16.msra.mxu0 %v4400
        %4478 = vmatprep.subr.bf16.mxu0 0
        %4479 = vmatpush1.bf16.msra.mxu0 %v4401
        %4480 = vmatprep.subr.bf16.mxu0 0
        %4481 = vmatpush1.bf16.msra.mxu0 %v4402
        %4482 = vmatprep.subr.bf16.mxu0 0
        %4483 = vmatpush1.bf16.msra.mxu0 %v4403
        %4484 = vmatprep.mubr.bf16.mxu0 %v4257
        %4485 = vmatmul.mubr.bf16.gmra.mrb[0].mxu0 %v4256
        %v4486 = vpop.f32.mrb[0].mxu0
        %v4487 = vadd.f32 0.0, %v4486
        %v4488 = vpop.f32.mrb[0].mxu0
        %v4489 = vpop.f32.mrb[0].mxu0
        %v4490 = vadd.f32 0.0, %v4489
        %v4491 = vpop.f32.mrb[0].mxu0
        %4492 = vdwg.mxu0
        %4493 = vmatprep.subr.bf16.mxu0 0
        %4494 = vmatpush1.bf16.msra.mxu0 %v4404
        %4495 = vmatprep.subr.bf16.mxu0 0
        %4496 = vmatpush1.bf16.msra.mxu0 %v4405
        %4497 = vmatprep.subr.bf16.mxu0 0
        %4498 = vmatpush1.bf16.msra.mxu0 %v4406
        %4499 = vmatprep.subr.bf16.mxu0 0
        %4500 = vmatpush1.bf16.msra.mxu0 %v4407
        %4501 = vmatprep.subr.bf16.mxu0 0
        %4502 = vmatpush1.bf16.msra.mxu0 %v4408
        %4503 = vmatprep.subr.bf16.mxu0 0
        %4504 = vmatpush1.bf16.msra.mxu0 %v4409
        %4505 = vmatprep.subr.bf16.mxu0 0
        %4506 = vmatpush1.bf16.msra.mxu0 %v4410
        %4507 = vmatprep.subr.bf16.mxu0 0
        %4508 = vmatpush1.bf16.msra.mxu0 %v4411
        %4509 = vmatprep.subr.bf16.mxu0 0
        %4510 = vmatpush1.bf16.msra.mxu0 %v4412
        %4511 = vmatprep.subr.bf16.mxu0 0
        %4512 = vmatpush1.bf16.msra.mxu0 %v4413
        %4513 = vmatprep.subr.bf16.mxu0 0
        %4514 = vmatpush1.bf16.msra.mxu0 %v4414
        %4515 = vmatprep.subr.bf16.mxu0 0
        %4516 = vmatpush1.bf16.msra.mxu0 %v4415
        %4517 = vmatprep.subr.bf16.mxu0 0
        %4518 = vmatpush1.bf16.msra.mxu0 %v4416
        %4519 = vmatprep.subr.bf16.mxu0 0
        %4520 = vmatpush1.bf16.msra.mxu0 %v4417
        %4521 = vmatprep.subr.bf16.mxu0 0
        %4522 = vmatpush1.bf16.msra.mxu0 %v4418
        %4523 = vmatprep.subr.bf16.mxu0 0
        %4524 = vmatpush1.bf16.msra.mxu0 %v4419
        %4525 = vmatprep.mubr.bf16.mxu0 %v4259
        %4526 = vmatmul.mubr.bf16.gmra.mrb[0].mxu0 %v4258
        %v4527 = vpop.f32.mrb[0].mxu0
        %v4528 = vadd.f32 %v4487, %v4527
        %v4529 = vpop.f32.mrb[0].mxu0
        %v4530 = vpop.f32.mrb[0].mxu0
        %v4531 = vadd.f32 %v4490, %v4530
        %v4532 = vpop.f32.mrb[0].mxu0
        %4533 = vdwg.mxu0
        %v4534 = vadd.f32 %v3946, %v4528
        %v4535 = vadd.f32 %v3947, %v4531
        %v4536 = vld [vmem:[%s15 + $0x50] sm:$0xff]
        %v4537 = vld [vmem:[%s15 + $0x58] sm:$0xff]
        %v4538 = vld [vmem:[%s15 + $0xb0] sm:$0xff]
        %v4539 = vld [vmem:[%s15 + $0xb8] sm:$0xff]
        %v4540 = vld [vmem:[%s15 + $0x110] sm:$0xff]
        %v4541 = vld [vmem:[%s15 + $0x118] sm:$0xff]
        %v4542 = vld [vmem:[%s15 + $0x170] sm:$0xff]
        %v4543 = vld [vmem:[%s15 + $0x178] sm:$0xff]
        %v4544 = vld [vmem:[%s15 + $0x1d0] sm:$0xff]
        %v4545 = vld [vmem:[%s15 + $0x1d8] sm:$0xff]
        %v4546 = vld [vmem:[%s15 + $0x230] sm:$0xff]
        %v4547 = vld [vmem:[%s15 + $0x238] sm:$0xff]
        %v4548 = vld [vmem:[%s15 + $0x290] sm:$0xff]
        %v4549 = vld [vmem:[%s15 + $0x298] sm:$0xff]
        %v4550 = vld [vmem:[%s15 + $0x2f0] sm:$0xff]
        %v4551 = vld [vmem:[%s15 + $0x2f8] sm:$0xff]
        %v4552 = vld [vmem:[%s16 + $0x14] sm:$0xf]
        %v4554 = vlaneseq
        %v4555 = vshrl.u32 %v4554, 7
        %v4556 = vsub.s32 0, %v4555
        %v4557 = vrot.slane %v4552, %v4556
        %v4558 = vlaneseq
        %v4559 = vshrl.u32 %v4558, 7
        %v4560 = vsub.s32 1, %v4559
        %v4561 = vrot.slane %v4552, %v4560
        %v4562 = vlaneseq
        %v4563 = vshrl.u32 %v4562, 7
        %v4564 = vsub.s32 2, %v4563
        %v4565 = vrot.slane %v4552, %v4564
        %v4566 = vlaneseq
        %v4567 = vshrl.u32 %v4566, 7
        %v4568 = vsub.s32 3, %v4567
        %v4569 = vrot.slane %v4552, %v4568
        %v4590 = vunpack.c.l.b16 %v4536
        %v4591 = vunpack.c.h.b16 %v4536
        %v4592 = vunpack.c.l.b16 %v4537
        %v4593 = vunpack.c.h.b16 %v4537
        %v4594 = vunpack.c.l.b16 %v4538
        %v4595 = vunpack.c.h.b16 %v4538
        %v4596 = vunpack.c.l.b16 %v4539
        %v4597 = vunpack.c.h.b16 %v4539
        %v4598 = vunpack.c.l.b16 %v4540
        %v4599 = vunpack.c.h.b16 %v4540
        %v4600 = vunpack.c.l.b16 %v4541
        %v4601 = vunpack.c.h.b16 %v4541
        %v4602 = vunpack.c.l.b16 %v4542
        %v4603 = vunpack.c.h.b16 %v4542
        %v4604 = vunpack.c.l.b16 %v4543
        %v4605 = vunpack.c.h.b16 %v4543
        %v4606 = vunpack.c.l.b16 %v4544
        %v4607 = vunpack.c.h.b16 %v4544
        %v4608 = vunpack.c.l.b16 %v4545
        %v4609 = vunpack.c.h.b16 %v4545
        %v4610 = vunpack.c.l.b16 %v4546
        %v4611 = vunpack.c.h.b16 %v4546
        %v4612 = vunpack.c.l.b16 %v4547
        %v4613 = vunpack.c.h.b16 %v4547
        %v4614 = vunpack.c.l.b16 %v4548
        %v4615 = vunpack.c.h.b16 %v4548
        %v4616 = vunpack.c.l.b16 %v4549
        %v4617 = vunpack.c.h.b16 %v4549
        %v4618 = vunpack.c.l.b16 %v4550
        %v4619 = vunpack.c.h.b16 %v4550
        %v4620 = vunpack.c.l.b16 %v4551
        %v4621 = vunpack.c.h.b16 %v4551
        %v4622 = vpack.c.b16 %v4594, %v4590
        %v4623 = vpack.c.b16 %v4595, %v4591
        %v4624 = vpack.c.b16 %v4596, %v4592
        %v4625 = vpack.c.b16 %v4597, %v4593
        %v4626 = vpack.c.b16 %v4602, %v4598
        %v4627 = vpack.c.b16 %v4603, %v4599
        %v4628 = vpack.c.b16 %v4604, %v4600
        %v4629 = vpack.c.b16 %v4605, %v4601
        %v4630 = vpack.c.b16 %v4610, %v4606
        %v4631 = vpack.c.b16 %v4611, %v4607
        %v4632 = vpack.c.b16 %v4612, %v4608
        %v4633 = vpack.c.b16 %v4613, %v4609
        %v4634 = vpack.c.b16 %v4618, %v4614
        %v4635 = vpack.c.b16 %v4619, %v4615
        %v4636 = vpack.c.b16 %v4620, %v4616
        %v4637 = vpack.c.b16 %v4621, %v4617
        %4654 = vmatprep.subr.bf16.mxu0 %v4623
        %4655 = vmatpush1.bf16.msra.mxu0 %v4622
        %4656 = vmatprep.subr.bf16.mxu0 %v4627
        %4657 = vmatpush1.bf16.msra.mxu0 %v4626
        %4658 = vmatprep.subr.bf16.mxu0 %v4631
        %4659 = vmatpush1.bf16.msra.mxu0 %v4630
        %4660 = vmatprep.subr.bf16.mxu0 %v4635
        %4661 = vmatpush1.bf16.msra.mxu0 %v4634
        %4662 = vmatprep.subr.bf16.mxu0 0
        %4663 = vmatpush1.bf16.msra.mxu0 0
        %4664 = vmatprep.subr.bf16.mxu0 0
        %4665 = vmatpush1.bf16.msra.mxu0 0
        %4666 = vmatprep.subr.bf16.mxu0 0
        %4667 = vmatpush1.bf16.msra.mxu0 0
        %4668 = vmatprep.subr.bf16.mxu0 0
        %4669 = vmatpush1.bf16.msra.mxu0 0
        %4670 = vmatprep.subr.bf16.mxu0 0
        %4671 = vmatpush1.bf16.msra.mxu0 0
        %4672 = vmatprep.subr.bf16.mxu0 0
        %4673 = vmatpush1.bf16.msra.mxu0 0
        %4674 = vmatprep.subr.bf16.mxu0 0
        %4675 = vmatpush1.bf16.msra.mxu0 0
        %4676 = vmatprep.subr.bf16.mxu0 0
        %4677 = vmatpush1.bf16.msra.mxu0 0
        %4678 = vmatprep.subr.bf16.mxu0 0
        %4679 = vmatpush1.bf16.msra.mxu0 0
        %4680 = vmatprep.subr.bf16.mxu0 0
        %4681 = vmatpush1.bf16.msra.mxu0 0
        %4682 = vmatprep.subr.bf16.mxu0 0
        %4683 = vmatpush1.bf16.msra.mxu0 0
        %4684 = vmatprep.subr.bf16.mxu0 0
        %4685 = vmatpush1.bf16.msra.mxu0 0
        %4686 = vmatprep.mubr.bf16.mxu0 0
        %4687 = vmatmul.mubr.bf16.gmra.mrb[0].mxu0 %v1716
        %v4688 = vpop.f32.mrb[0].mxu0
        %v4689 = vadd.f32 %v4557, %v4688
        %v4690 = vpop.f32.mrb[0].mxu0
        %v4691 = vadd.f32 %v4561, %v4690
        %v4692 = vpop.f32.mrb[0].mxu0
        %v4693 = vadd.f32 %v4557, %v4692
        %v4694 = vpop.f32.mrb[0].mxu0
        %v4695 = vadd.f32 %v4561, %v4694
        %4696 = vdwg.mxu0
        %4697 = vmatprep.subr.bf16.mxu0 %v4625
        %4698 = vmatpush1.bf16.msra.mxu0 %v4624
        %4699 = vmatprep.subr.bf16.mxu0 %v4629
        %4700 = vmatpush1.bf16.msra.mxu0 %v4628
        %4701 = vmatprep.subr.bf16.mxu0 %v4633
        %4702 = vmatpush1.bf16.msra.mxu0 %v4632
        %4703 = vmatprep.subr.bf16.mxu0 %v4637
        %4704 = vmatpush1.bf16.msra.mxu0 %v4636
        %4705 = vmatprep.subr.bf16.mxu0 0
        %4706 = vmatpush1.bf16.msra.mxu0 0
        %4707 = vmatprep.subr.bf16.mxu0 0
        %4708 = vmatpush1.bf16.msra.mxu0 0
        %4709 = vmatprep.subr.bf16.mxu0 0
        %4710 = vmatpush1.bf16.msra.mxu0 0
        %4711 = vmatprep.subr.bf16.mxu0 0
        %4712 = vmatpush1.bf16.msra.mxu0 0
        %4713 = vmatprep.subr.bf16.mxu0 0
        %4714 = vmatpush1.bf16.msra.mxu0 0
        %4715 = vmatprep.subr.bf16.mxu0 0
        %4716 = vmatpush1.bf16.msra.mxu0 0
        %4717 = vmatprep.subr.bf16.mxu0 0
        %4718 = vmatpush1.bf16.msra.mxu0 0
        %4719 = vmatprep.subr.bf16.mxu0 0
        %4720 = vmatpush1.bf16.msra.mxu0 0
        %4721 = vmatprep.subr.bf16.mxu0 0
        %4722 = vmatpush1.bf16.msra.mxu0 0
        %4723 = vmatprep.subr.bf16.mxu0 0
        %4724 = vmatpush1.bf16.msra.mxu0 0
        %4725 = vmatprep.subr.bf16.mxu0 0
        %4726 = vmatpush1.bf16.msra.mxu0 0
        %4727 = vmatprep.subr.bf16.mxu0 0
        %4728 = vmatpush1.bf16.msra.mxu0 0
        %4729 = vmatprep.mubr.bf16.mxu0 0
        %4730 = vmatmul.mubr.bf16.gmra.mrb[0].mxu0 %v1716
        %v4731 = vpop.f32.mrb[0].mxu0
        %v4732 = vadd.f32 %v4565, %v4731
        %v4733 = vpop.f32.mrb[0].mxu0
        %v4734 = vadd.f32 %v4569, %v4733
        %v4735 = vpop.f32.mrb[0].mxu0
        %v4736 = vadd.f32 %v4565, %v4735
        %v4737 = vpop.f32.mrb[0].mxu0
        %v4738 = vadd.f32 %v4569, %v4737
        %4739 = vdwg.mxu0
        %v4740 = vmul.f32 %v4689, 0.5
        %v4741 = vmul.f32 %v4691, 0.5
        %v4742 = vmul.f32 %v4732, 0.5
        %v4743 = vmul.f32 %v4734, 0.5
        %v4744 = vmul.f32 %v4693, 0.5
        %v4745 = vmul.f32 %v4695, 0.5
        %v4746 = vmul.f32 %v4736, 0.5
        %v4747 = vmul.f32 %v4738, 0.5
        %v4748 = vmul.f32 %v4689, 0.70710677
        %v4749 = vmul.f32 %v4691, 0.70710677
        %v4750 = vmul.f32 %v4732, 0.70710677
        %v4751 = vmul.f32 %v4734, 0.70710677
        %v4752 = vmul.f32 %v4693, 0.70710677
        %v4753 = vmul.f32 %v4695, 0.70710677
        %v4754 = vmul.f32 %v4736, 0.70710677
        %v4755 = vmul.f32 %v4738, 0.70710677
        %v4756 = verf.f32.pop %v4748
        %v4757 = verf.f32.pop %v4749
        %v4758 = verf.f32.pop %v4750
        %v4759 = verf.f32.pop %v4751
        %v4760 = verf.f32.pop %v4752
        %v4761 = verf.f32.pop %v4753
        %v4762 = verf.f32.pop %v4754
        %v4763 = verf.f32.pop %v4755
        %v4764 = vadd.f32 %v4756, 1.0
        %v4765 = vadd.f32 %v4757, 1.0
        %v4766 = vadd.f32 %v4758, 1.0
        %v4767 = vadd.f32 %v4759, 1.0
        %v4768 = vadd.f32 %v4760, 1.0
        %v4769 = vadd.f32 %v4761, 1.0
        %v4770 = vadd.f32 %v4762, 1.0
        %v4771 = vadd.f32 %v4763, 1.0
        %v4772 = vmul.f32 %v4740, %v4764
        %v4773 = vmul.f32 %v4741, %v4765
        %v4774 = vmul.f32 %v4742, %v4766
        %v4775 = vmul.f32 %v4743, %v4767
        %v4776 = vmul.f32 %v4744, %v4768
        %v4777 = vmul.f32 %v4745, %v4769
        %v4778 = vmul.f32 %v4746, %v4770
        %v4779 = vmul.f32 %v4747, %v4771
        %v4780 = vld [vmem:[%s17 + $0x500] sm:$0xf]
        %v4781 = vld [vmem:[%s17 + $0x504] sm:$0xf]
        %v4782 = vld [vmem:[%s17 + $0x508] sm:$0xf]
        %v4783 = vld [vmem:[%s17 + $0x50c] sm:$0xf]
        %v4784 = vld [vmem:[%s17 + $0x510] sm:$0xf]
        %v4785 = vld [vmem:[%s17 + $0x514] sm:$0xf]
        %v4786 = vld [vmem:[%s17 + $0x518] sm:$0xf]
        %v4787 = vld [vmem:[%s17 + $0x51c] sm:$0xf]
        %v4788 = vld [vmem:[%s17 + $0x520] sm:$0xf]
        %v4789 = vld [vmem:[%s17 + $0x524] sm:$0xf]
        %v4790 = vld [vmem:[%s17 + $0x528] sm:$0xf]
        %v4791 = vld [vmem:[%s17 + $0x52c] sm:$0xf]
        %v4792 = vld [vmem:[%s17 + $0x530] sm:$0xf]
        %v4793 = vld [vmem:[%s17 + $0x534] sm:$0xf]
        %v4794 = vld [vmem:[%s17 + $0x538] sm:$0xf]
        %v4795 = vld [vmem:[%s17 + $0x53c] sm:$0xf]
        %v4796 = vld [vmem:[%s17 + $0x540] sm:$0xf]
        %v4797 = vld [vmem:[%s17 + $0x544] sm:$0xf]
        %v4798 = vld [vmem:[%s17 + $0x548] sm:$0xf]
        %v4799 = vld [vmem:[%s17 + $0x54c] sm:$0xf]
        %v4800 = vld [vmem:[%s17 + $0x550] sm:$0xf]
        %v4801 = vld [vmem:[%s17 + $0x554] sm:$0xf]
        %v4802 = vld [vmem:[%s17 + $0x558] sm:$0xf]
        %v4803 = vld [vmem:[%s17 + $0x55c] sm:$0xf]
        %v4804 = vld [vmem:[%s17 + $0x560] sm:$0xf]
        %v4805 = vld [vmem:[%s17 + $0x564] sm:$0xf]
        %v4806 = vld [vmem:[%s17 + $0x568] sm:$0xf]
        %v4807 = vld [vmem:[%s17 + $0x56c] sm:$0xf]
        %v4808 = vld [vmem:[%s17 + $0x570] sm:$0xf]
        %v4809 = vld [vmem:[%s17 + $0x574] sm:$0xf]
        %v4810 = vld [vmem:[%s17 + $0x578] sm:$0xf]
        %v4811 = vld [vmem:[%s17 + $0x57c] sm:$0xf]
        %v4812 = vld [vmem:[%s17 + $0x580] sm:$0xf]
        %v4813 = vld [vmem:[%s17 + $0x584] sm:$0xf]
        %v4814 = vld [vmem:[%s17 + $0x588] sm:$0xf]
        %v4815 = vld [vmem:[%s17 + $0x58c] sm:$0xf]
        %v4816 = vld [vmem:[%s17 + $0x590] sm:$0xf]
        %v4817 = vld [vmem:[%s17 + $0x594] sm:$0xf]
        %v4818 = vld [vmem:[%s17 + $0x598] sm:$0xf]
        %v4819 = vld [vmem:[%s17 + $0x59c] sm:$0xf]
        %v4820 = vld [vmem:[%s17 + $0x5a0] sm:$0xf]
        %v4821 = vld [vmem:[%s17 + $0x5a4] sm:$0xf]
        %v4822 = vld [vmem:[%s17 + $0x5a8] sm:$0xf]
        %v4823 = vld [vmem:[%s17 + $0x5ac] sm:$0xf]
        %v4824 = vld [vmem:[%s17 + $0x5b0] sm:$0xf]
        %v4825 = vld [vmem:[%s17 + $0x5b4] sm:$0xf]
        %v4826 = vld [vmem:[%s17 + $0x5b8] sm:$0xf]
        %v4827 = vld [vmem:[%s17 + $0x5bc] sm:$0xf]
        %v4828 = vld [vmem:[%s17 + $0x5c0] sm:$0xf]
        %v4829 = vld [vmem:[%s17 + $0x5c4] sm:$0xf]
        %v4830 = vld [vmem:[%s17 + $0x5c8] sm:$0xf]
        %v4831 = vld [vmem:[%s17 + $0x5cc] sm:$0xf]
        %v4832 = vld [vmem:[%s17 + $0x5d0] sm:$0xf]
        %v4833 = vld [vmem:[%s17 + $0x5d4] sm:$0xf]
        %v4834 = vld [vmem:[%s17 + $0x5d8] sm:$0xf]
        %v4835 = vld [vmem:[%s17 + $0x5dc] sm:$0xf]
        %v4836 = vld [vmem:[%s17 + $0x5e0] sm:$0xf]
        %v4837 = vld [vmem:[%s17 + $0x5e4] sm:$0xf]
        %v4838 = vld [vmem:[%s17 + $0x5e8] sm:$0xf]
        %v4839 = vld [vmem:[%s17 + $0x5ec] sm:$0xf]
        %v4840 = vld [vmem:[%s17 + $0x5f0] sm:$0xf]
        %v4841 = vld [vmem:[%s17 + $0x5f4] sm:$0xf]
        %v4842 = vld [vmem:[%s17 + $0x5f8] sm:$0xf]
        %v4843 = vld [vmem:[%s17 + $0x5fc] sm:$0xf]
        %v4844 = vpack.c.bf16 %v4776, %v4772
        %v4845 = vpack.c.bf16 %v4777, %v4773
        %v4846 = vpack.c.bf16 %v4778, %v4774
        %v4847 = vpack.c.bf16 %v4779, %v4775
        %v4912 = vunpack.c.l.b16 %v4780
        %v4913 = vunpack.c.l.b16 %v4781
        %v4914 = vunpack.c.l.b16 %v4782
        %v4915 = vunpack.c.l.b16 %v4783
        %v4916 = vunpack.c.l.b16 %v4784
        %v4917 = vunpack.c.l.b16 %v4785
        %v4918 = vunpack.c.l.b16 %v4786
        %v4919 = vunpack.c.l.b16 %v4787
        %v4920 = vunpack.c.l.b16 %v4788
        %v4921 = vunpack.c.l.b16 %v4789
        %v4922 = vunpack.c.l.b16 %v4790
        %v4923 = vunpack.c.l.b16 %v4791
        %v4924 = vunpack.c.l.b16 %v4792
        %v4925 = vunpack.c.l.b16 %v4793
        %v4926 = vunpack.c.l.b16 %v4794
        %v4927 = vunpack.c.l.b16 %v4795
        %v4928 = vunpack.c.l.b16 %v4796
        %v4929 = vunpack.c.l.b16 %v4797
        %v4930 = vunpack.c.l.b16 %v4798
        %v4931 = vunpack.c.l.b16 %v4799
        %v4932 = vunpack.c.l.b16 %v4800
        %v4933 = vunpack.c.l.b16 %v4801
        %v4934 = vunpack.c.l.b16 %v4802
        %v4935 = vunpack.c.l.b16 %v4803
        %v4936 = vunpack.c.l.b16 %v4804
        %v4937 = vunpack.c.l.b16 %v4805
        %v4938 = vunpack.c.l.b16 %v4806
        %v4939 = vunpack.c.l.b16 %v4807
        %v4940 = vunpack.c.l.b16 %v4808
        %v4941 = vunpack.c.l.b16 %v4809
        %v4942 = vunpack.c.l.b16 %v4810
        %v4943 = vunpack.c.l.b16 %v4811
        %v4944 = vunpack.c.l.b16 %v4812
        %v4945 = vunpack.c.l.b16 %v4813
        %v4946 = vunpack.c.l.b16 %v4814
        %v4947 = vunpack.c.l.b16 %v4815
        %v4948 = vunpack.c.l.b16 %v4816
        %v4949 = vunpack.c.l.b16 %v4817
        %v4950 = vunpack.c.l.b16 %v4818
        %v4951 = vunpack.c.l.b16 %v4819
        %v4952 = vunpack.c.l.b16 %v4820
        %v4953 = vunpack.c.l.b16 %v4821
        %v4954 = vunpack.c.l.b16 %v4822
        %v4955 = vunpack.c.l.b16 %v4823
        %v4956 = vunpack.c.l.b16 %v4824
        %v4957 = vunpack.c.l.b16 %v4825
        %v4958 = vunpack.c.l.b16 %v4826
        %v4959 = vunpack.c.l.b16 %v4827
        %v4960 = vunpack.c.l.b16 %v4828
        %v4961 = vunpack.c.l.b16 %v4829
        %v4962 = vunpack.c.l.b16 %v4830
        %v4963 = vunpack.c.l.b16 %v4831
        %v4964 = vunpack.c.l.b16 %v4832
        %v4965 = vunpack.c.l.b16 %v4833
        %v4966 = vunpack.c.l.b16 %v4834
        %v4967 = vunpack.c.l.b16 %v4835
        %v4968 = vunpack.c.l.b16 %v4836
        %v4969 = vunpack.c.l.b16 %v4837
        %v4970 = vunpack.c.l.b16 %v4838
        %v4971 = vunpack.c.l.b16 %v4839
        %v4972 = vunpack.c.l.b16 %v4840
        %v4973 = vunpack.c.l.b16 %v4841
        %v4974 = vunpack.c.l.b16 %v4842
        %v4975 = vunpack.c.l.b16 %v4843
        %v4976 = vpack.c.b16 %v4913, %v4912
        %v4977 = vpack.c.b16 %v4915, %v4914
        %v4978 = vpack.c.b16 %v4917, %v4916
        %v4979 = vpack.c.b16 %v4919, %v4918
        %v4980 = vpack.c.b16 %v4921, %v4920
        %v4981 = vpack.c.b16 %v4923, %v4922
        %v4982 = vpack.c.b16 %v4925, %v4924
        %v4983 = vpack.c.b16 %v4927, %v4926
        %v4984 = vpack.c.b16 %v4929, %v4928
        %v4985 = vpack.c.b16 %v4931, %v4930
        %v4986 = vpack.c.b16 %v4933, %v4932
        %v4987 = vpack.c.b16 %v4935, %v4934
        %v4988 = vpack.c.b16 %v4937, %v4936
        %v4989 = vpack.c.b16 %v4939, %v4938
        %v4990 = vpack.c.b16 %v4941, %v4940
        %v4991 = vpack.c.b16 %v4943, %v4942
        %v4992 = vpack.c.b16 %v4945, %v4944
        %v4993 = vpack.c.b16 %v4947, %v4946
        %v4994 = vpack.c.b16 %v4949, %v4948
        %v4995 = vpack.c.b16 %v4951, %v4950
        %v4996 = vpack.c.b16 %v4953, %v4952
        %v4997 = vpack.c.b16 %v4955, %v4954
        %v4998 = vpack.c.b16 %v4957, %v4956
        %v4999 = vpack.c.b16 %v4959, %v4958
        %v5000 = vpack.c.b16 %v4961, %v4960
        %v5001 = vpack.c.b16 %v4963, %v4962
        %v5002 = vpack.c.b16 %v4965, %v4964
        %v5003 = vpack.c.b16 %v4967, %v4966
        %v5004 = vpack.c.b16 %v4969, %v4968
        %v5005 = vpack.c.b16 %v4971, %v4970
        %v5006 = vpack.c.b16 %v4973, %v4972
        %v5007 = vpack.c.b16 %v4975, %v4974
        %5040 = vmatprep.subr.bf16.mxu0 0
        %5041 = vmatpush1.bf16.msra.mxu0 %v4976
        %5042 = vmatprep.subr.bf16.mxu0 0
        %5043 = vmatpush1.bf16.msra.mxu0 %v4977
        %5044 = vmatprep.subr.bf16.mxu0 0
        %5045 = vmatpush1.bf16.msra.mxu0 %v4978
        %5046 = vmatprep.subr.bf16.mxu0 0
        %5047 = vmatpush1.bf16.msra.mxu0 %v4979
        %5048 = vmatprep.subr.bf16.mxu0 0
        %5049 = vmatpush1.bf16.msra.mxu0 %v4980
        %5050 = vmatprep.subr.bf16.mxu0 0
        %5051 = vmatpush1.bf16.msra.mxu0 %v4981
        %5052 = vmatprep.subr.bf16.mxu0 0
        %5053 = vmatpush1.bf16.msra.mxu0 %v4982
        %5054 = vmatprep.subr.bf16.mxu0 0
        %5055 = vmatpush1.bf16.msra.mxu0 %v4983
        %5056 = vmatprep.subr.bf16.mxu0 0
        %5057 = vmatpush1.bf16.msra.mxu0 %v4984
        %5058 = vmatprep.subr.bf16.mxu0 0
        %5059 = vmatpush1.bf16.msra.mxu0 %v4985
        %5060 = vmatprep.subr.bf16.mxu0 0
        %5061 = vmatpush1.bf16.msra.mxu0 %v4986
        %5062 = vmatprep.subr.bf16.mxu0 0
        %5063 = vmatpush1.bf16.msra.mxu0 %v4987
        %5064 = vmatprep.subr.bf16.mxu0 0
        %5065 = vmatpush1.bf16.msra.mxu0 %v4988
        %5066 = vmatprep.subr.bf16.mxu0 0
        %5067 = vmatpush1.bf16.msra.mxu0 %v4989
        %5068 = vmatprep.subr.bf16.mxu0 0
        %5069 = vmatpush1.bf16.msra.mxu0 %v4990
        %5070 = vmatprep.subr.bf16.mxu0 0
        %5071 = vmatpush1.bf16.msra.mxu0 %v4991
        %5072 = vmatprep.mubr.bf16.mxu0 %v4845
        %5073 = vmatmul.mubr.bf16.gmra.mrb[0].mxu0 %v4844
        %v5074 = vpop.f32.mrb[0].mxu0
        %v5075 = vadd.f32 0.0, %v5074
        %v5076 = vpop.f32.mrb[0].mxu0
        %v5077 = vpop.f32.mrb[0].mxu0
        %v5078 = vadd.f32 0.0, %v5077
        %v5079 = vpop.f32.mrb[0].mxu0
        %5080 = vdwg.mxu0
        %5081 = vmatprep.subr.bf16.mxu0 0
        %5082 = vmatpush1.bf16.msra.mxu0 %v4992
        %5083 = vmatprep.subr.bf16.mxu0 0
        %5084 = vmatpush1.bf16.msra.mxu0 %v4993
        %5085 = vmatprep.subr.bf16.mxu0 0
        %5086 = vmatpush1.bf16.msra.mxu0 %v4994
        %5087 = vmatprep.subr.bf16.mxu0 0
        %5088 = vmatpush1.bf16.msra.mxu0 %v4995
        %5089 = vmatprep.subr.bf16.mxu0 0
        %5090 = vmatpush1.bf16.msra.mxu0 %v4996
        %5091 = vmatprep.subr.bf16.mxu0 0
        %5092 = vmatpush1.bf16.msra.mxu0 %v4997
        %5093 = vmatprep.subr.bf16.mxu0 0
        %5094 = vmatpush1.bf16.msra.mxu0 %v4998
        %5095 = vmatprep.subr.bf16.mxu0 0
        %5096 = vmatpush1.bf16.msra.mxu0 %v4999
        %5097 = vmatprep.subr.bf16.mxu0 0
        %5098 = vmatpush1.bf16.msra.mxu0 %v5000
        %5099 = vmatprep.subr.bf16.mxu0 0
        %5100 = vmatpush1.bf16.msra.mxu0 %v5001
        %5101 = vmatprep.subr.bf16.mxu0 0
        %5102 = vmatpush1.bf16.msra.mxu0 %v5002
        %5103 = vmatprep.subr.bf16.mxu0 0
        %5104 = vmatpush1.bf16.msra.mxu0 %v5003
        %5105 = vmatprep.subr.bf16.mxu0 0
        %5106 = vmatpush1.bf16.msra.mxu0 %v5004
        %5107 = vmatprep.subr.bf16.mxu0 0
        %5108 = vmatpush1.bf16.msra.mxu0 %v5005
        %5109 = vmatprep.subr.bf16.mxu0 0
        %5110 = vmatpush1.bf16.msra.mxu0 %v5006
        %5111 = vmatprep.subr.bf16.mxu0 0
        %5112 = vmatpush1.bf16.msra.mxu0 %v5007
        %5113 = vmatprep.mubr.bf16.mxu0 %v4847
        %5114 = vmatmul.mubr.bf16.gmra.mrb[0].mxu0 %v4846
        %v5115 = vpop.f32.mrb[0].mxu0
        %v5116 = vadd.f32 %v5075, %v5115
        %v5117 = vpop.f32.mrb[0].mxu0
        %v5118 = vpop.f32.mrb[0].mxu0
        %v5119 = vadd.f32 %v5078, %v5118
        %v5120 = vpop.f32.mrb[0].mxu0
        %5121 = vdwg.mxu0
        %v5122 = vadd.f32 %v4534, %v5116
        %v5123 = vadd.f32 %v4535, %v5119
        %v5124 = vld [vmem:[%s18] sm:$0x1]
        %v5126 = vlaneseq
        %v5127 = vshrl.u32 %v5126, 7
        %v5128 = vsub.s32 0, %v5127
        %v5129 = vrot.slane %v5124, %v5128
        %v5131 = vadd.f32 %v5122, %v5129
        %v5132 = vadd.f32 %v5123, %v5129
        %v5133 = vld [vmem:[%s19] sm:$0x1]
        %v5135 = vlaneseq
        %v5136 = vshrl.u32 %v5135, 7
        %v5137 = vsub.s32 0, %v5136
        %v5138 = vrot.slane %v5133, %v5137
        %v5140 = vmul.f32 %v5138, %v5131
        %v5141 = vmul.f32 %v5138, %v5132
        %v5142 = vadd.f32 %v1550, %v5140
        %v5143 = vadd.f32 %v1551, %v5141
        %5144 = vst.msk [vmem:[%s637] sm:$0xff] %vm655, %v5142
        %5145 = vst.msk [vmem:[%s637 + $0x8] sm:$0xff] %vm655, %v5143
        %s5146 = sand.u32 %s472, 1
        %s5147 = scalar_lea.sflag [#allocation3], %s5146
        %s5148 = sand.u32 %s472, 1
        %s5149 = smul.addr %s5148, 16
        %s5150 = scalar_lea.vmem [#allocation2], %s5149
        // Predicated region
        $region101: #{graph_conditioned_layer.1} parent=99 // pred_check
          %p5151 = pneg %p482
        $region102: #{graph_conditioned_layer.1} parent=99 // pred_check_branch
          %5153 = sbr.rel (%p5151) target = $region104
        $region103: #{graph_conditioned_layer.1} parent=99 // pred_region
          %s5155 = ssub.s32 256, 256
          %5156 = vsyncadd %s5147, %s5155
          %s5157 = smul.addr %s34, 2
          %s5158 = smul.addr %s5157, 128
          %s5159 = scalar_lea.hbm %s20, %s5158
          %s5160 = sshll.u32 %s5150, 4
          %s5161 = int_to_ptr.vmem [resolvable:$true] %s5160
          %5166 = dma.vmem_to_hbm [thread:$0]  %s5161, 256, %s5159, %s5147, 128, 128, 8
        $region104: #{graph_conditioned_layer.1} parent=99 // pred_fallthru
          _
      $region100: #{graph_conditioned_layer.1} parent=5 // pred_fallthru
        _
      %p5167 = scmp.le.s32.totalorder 2, %s29
      // Predicated region
      $region105: #{graph_conditioned_layer.1} parent=5 // pred_check
        %p5168 = pneg %p5167
      $region106: #{graph_conditioned_layer.1} parent=5 // pred_check_branch
        %5170 = sbr.rel (%p5168) target = $region108
      $region107: #{graph_conditioned_layer.1} parent=5 // pred_region
        %s5171 = ssub.s32 %s29, 2
        // Predicated region
        $region109: #{graph_conditioned_layer.1} parent=107 // pred_check
          %p5172 = pneg %p488
        $region110: #{graph_conditioned_layer.1} parent=107 // pred_check_branch
          %5174 = sbr.rel (%p5172) target = $region112
        $region111: #{graph_conditioned_layer.1} parent=107 // pred_region
          %s5175 = sand.u32 %s473, 1
          %s5176 = scalar_lea.sflag [#allocation3], %s5175
          %s5177 = sand.u32 %s473, 1
          %s5178 = smul.addr %s5177, 16
          %s5179 = scalar_lea.vmem [#allocation2], %s5178
          %5180 = dma.done %s5176, 256
        $region112: #{graph_conditioned_layer.1} parent=107 // pred_fallthru
          _
      $region108: #{graph_conditioned_layer.1} parent=5 // pred_fallthru
        _
    $region6: #{graph_conditioned_layer.1} parent=1 // loop_footer
      %s33 = sadd.s32 1, %s29
    $region7: #{graph_conditioned_layer.1} parent=1 // loop_footer_branch
      %28 = sbr.rel target = $region3
    $region8: #{graph_conditioned_layer.1} parent=1 // loop_exit
      _
    %5181 = vsyncpa [#allocation3], 1
    %s5182 = scalar_lea.sflag [#allocation3], 1
    %5183 = vsyncpa %s5182, 1

</llo_original>
